<compile_context>
chip_gen: v6e
topology: v6e:2x2x1
jax: 0.10.0
libtpu: 0.0.40
codegen_flags: <defaults>
</compile_context>

<pallas_src>
import functools

import jax
import jax.numpy as jnp
import numpy as np
from jax.experimental import pallas as pl
from jax.experimental.pallas import tpu as pltpu

_TRANS_B = (((1,), (1,)), ((), ()))   # contract last dims of both operands


def _gat_attention(xp_bf, adj, att_src_rows, att_dst_cols, head_mask, bias,
                   *, heads, concat):
    """Dense multi-head GAT attention + aggregation on full VMEM tiles.

    xp_bf:        [N, H*F] bf16  (= x @ W, heads packed along the lane axis)
    adj:          [N, N]   f32   adj[i, j] = 1 iff edge j -> i (self loops incl.)
    att_src_rows: [H, H*F] bf16  row h holds att_src[h] in head-h's lane block
    att_dst_cols: [H*F, H] bf16  col h holds att_dst[h] in head-h's lane block
    head_mask:    [H, H*F] f32   1.0 on head h's lane block (only when concat)
    bias:         [1, H*F] (concat) or [1, F] (heads == 1) f32
    """
    assert concat or heads == 1  # module only uses concat=False with heads=1
    f32 = jnp.float32
    bf16 = jnp.bfloat16

    # All per-head scores in two MXU matmuls (no per-head lane slicing of xp).
    # s_rows[h, j] = att_src_h . xp_j  -- already laid out as a [1, N] row, so
    # no XLU transpose is needed before the broadcast-add below.
    s_rows = jax.lax.dot_general(att_src_rows, xp_bf, _TRANS_B,
                                 preferred_element_type=f32)           # [H, N]
    # d_cols[i, h] = att_dst_h . xp_i
    d_cols = jnp.dot(xp_bf, att_dst_cols, preferred_element_type=f32)  # [N, H]

    out = None
    for h in range(heads):
        # e[i, j] = leaky_relu(a_dst.x'_i + a_src.x'_j); rows=target, cols=source
        e = d_cols[:, h:h + 1] + s_rows[h:h + 1, :]                    # [N, N]
        e = jnp.where(e > 0, e, 0.2 * e)                               # LeakyReLU(0.2)
        e = jnp.where(adj > 0, e, -1e30)                               # single mask select
        m = jnp.max(e, axis=-1, keepdims=True)
        p = jnp.exp(e - m)                  # masked entries underflow to exactly 0
        denom = jnp.sum(p, axis=-1, keepdims=True)
        inv = pl.reciprocal(jnp.maximum(denom, 1e-30), approx=True)    # EUP slot
        alpha = (p * inv).astype(bf16)                                 # softmax over sources
        # Full-width aggregation; masking afterwards == aggregating only head
        # h's lane block (column selection commutes with alpha @ (.)).
        agg = jnp.dot(alpha, xp_bf, preferred_element_type=f32)        # [N, H*F]
        if concat:
            agg = agg * head_mask[h:h + 1, :]
        out = agg if out is None else out + agg

    return out + bias


def gat_ae_residual_kernel(
    x_ref, adj_ref,
    w_ae1_ref, b_ae1_ref, w_ae2_ref, b_ae2_ref,
    w_g1_ref, as1_ref, ad1_ref, hm1_ref, b_g1_ref,
    w_r1_ref, b_r1_ref,
    w_g2_ref, as2_ref, ad2_ref, b_g2_ref,
    w_r2_ref, b_r2_ref,
    out_ref, *, heads,
):
    f32 = jnp.float32
    bf16 = jnp.bfloat16

    x = x_ref[...].astype(bf16)
    adj = adj_ref[...]

    # --- Autoencoder.forward: relu(fc1) -> relu(fc2) (fc3 is unused in forward) ---
    h1 = jnp.maximum(
        jnp.dot(x, w_ae1_ref[...], preferred_element_type=f32) + b_ae1_ref[...], 0.0)
    x_enc = jnp.maximum(
        jnp.dot(h1.astype(bf16), w_ae2_ref[...], preferred_element_type=f32)
        + b_ae2_ref[...], 0.0)
    x_enc_bf = x_enc.astype(bf16)

    # --- GAT layer 1 (heads=H, concat=True) + residual_fc1, relu ---
    xp1 = jnp.dot(x_enc_bf, w_g1_ref[...], preferred_element_type=f32).astype(bf16)
    g1 = _gat_attention(xp1, adj, as1_ref[...], ad1_ref[...], hm1_ref[...],
                        b_g1_ref[...], heads=heads, concat=True)
    r1 = jnp.dot(x_enc_bf, w_r1_ref[...], preferred_element_type=f32) + b_r1_ref[...]
    x_mid = jnp.maximum(g1 + r1, 0.0)
    x_mid_bf = x_mid.astype(bf16)

    # --- GAT layer 2 (heads=1, concat=False) + residual_fc2 (lane-padded) ---
    xp2 = jnp.dot(x_mid_bf, w_g2_ref[...], preferred_element_type=f32).astype(bf16)
    g2 = _gat_attention(xp2, adj, as2_ref[...], ad2_ref[...], None,
                        b_g2_ref[...], heads=1, concat=False)
    r2 = jnp.dot(x_mid_bf, w_r2_ref[...], preferred_element_type=f32) + b_r2_ref[...]

    out_ref[...] = g2 + r2     # [N, OUT_PAD] -> full 128-lane unmasked store


def pack_params(params, heads, out_pad):
    """Host-side repack: bf16 matmul operands, block-layout attention vectors,
    head masks, and zero-padded lane-dense layer-2 parameters."""
    f32, bf16 = jnp.float32, jnp.bfloat16
    F1 = params["att_src1"].shape[1]
    HF1 = heads * F1
    out_dim = params["w_g2"].shape[1]
    assert out_pad % 128 == 0 and out_pad >= out_dim

    a_src = np.asarray(params["att_src1"], np.float32)
    a_dst = np.asarray(params["att_dst1"], np.float32)
    as1 = np.zeros((heads, HF1), np.float32)
    ad1 = np.zeros((HF1, heads), np.float32)
    hm1 = np.zeros((heads, HF1), np.float32)
    for h in range(heads):
        as1[h, h * F1:(h + 1) * F1] = a_src[h]
        ad1[h * F1:(h + 1) * F1, h] = a_dst[h]
        hm1[h, h * F1:(h + 1) * F1] = 1.0

    def pad_cols(a):
        a = np.asarray(a, np.float32)
        out = np.zeros((a.shape[0], out_pad), np.float32)
        out[:, :a.shape[1]] = a
        return out

    packed = {
        "w_ae1": jnp.asarray(params["w_ae1"], bf16),
        "b_ae1": jnp.asarray(params["b_ae1"], f32),
        "w_ae2": jnp.asarray(params["w_ae2"], bf16),
        "b_ae2": jnp.asarray(params["b_ae2"], f32),
        "w_g1": jnp.asarray(params["w_g1"], bf16),
        "as1": jnp.asarray(as1, bf16),
        "ad1": jnp.asarray(ad1, bf16),
        "hm1": jnp.asarray(hm1, f32),
        "b_g1": jnp.asarray(params["b_g1"], f32),
        "w_r1": jnp.asarray(params["w_r1"], bf16),
        "b_r1": jnp.asarray(params["b_r1"], f32),
        # layer-2 params zero-padded to a lane-dense (multiple-of-128) width;
        # padded output columns are exactly 0 and sliced off outside the kernel.
        "w_g2": jnp.asarray(pad_cols(params["w_g2"]), bf16),
        "as2": jnp.asarray(pad_cols(params["att_src2"]), bf16),     # [1, out_pad]
        "ad2": jnp.asarray(pad_cols(params["att_dst2"]).T, bf16),   # [out_pad, 1]
        "b_g2": jnp.asarray(pad_cols(params["b_g2"]), f32),
        "w_r2": jnp.asarray(pad_cols(params["w_r2"]), bf16),
        "b_r2": jnp.asarray(pad_cols(params["b_r2"]), f32),
    }
    return packed, out_dim


def gat_with_autoencoder_residual(x, adj, params, *, heads, out_pad=128):
    N = x.shape[0]
    p, out_dim = pack_params(params, heads, out_pad)
    args = (
        x, adj,
        p["w_ae1"], p["b_ae1"], p["w_ae2"], p["b_ae2"],
        p["w_g1"], p["as1"], p["ad1"], p["hm1"], p["b_g1"],
        p["w_r1"], p["b_r1"],
        p["w_g2"], p["as2"], p["ad2"], p["b_g2"],
        p["w_r2"], p["b_r2"],
    )
    out_padded = pl.pallas_call(
        functools.partial(gat_ae_residual_kernel, heads=heads),
        out_shape=jax.ShapeDtypeStruct((N, out_pad), jnp.float32),
        in_specs=[pl.BlockSpec(memory_space=pltpu.MemorySpace.VMEM)] * len(args),
        out_specs=pl.BlockSpec(memory_space=pltpu.MemorySpace.VMEM),
    )(*args)
    return out_padded[:, :out_dim]


# ------------------------- plain-JAX f32 reference ---------------------------
def _reference(x, adj, p):
    def gat(xin, w, a_s, a_d, b, concat):
        H, F = a_s.shape
        xp = xin @ w
        outs = []
        for h in range(H):
            xh = xp[:, h * F:(h + 1) * F]
            s = (xh * a_s[h]).sum(-1, keepdims=True)
            d = (xh * a_d[h]).sum(-1, keepdims=True)
            e = d + s.T
            e = jnp.where(e > 0, e, 0.2 * e)
            e = jnp.where(adj > 0, e, -jnp.inf)
            e = e - jnp.max(e, axis=-1, keepdims=True)
            pm = jnp.exp(e) * adj
            alpha = pm / pm.sum(-1, keepdims=True)
            outs.append(alpha @ xh)
        o = jnp.concatenate(outs, -1) if concat else sum(outs) / H
        return o + b

    h = jax.nn.relu(x @ p["w_ae1"] + p["b_ae1"])
    x_enc = jax.nn.relu(h @ p["w_ae2"] + p["b_ae2"])
    g1 = gat(x_enc, p["w_g1"], p["att_src1"], p["att_dst1"], p["b_g1"], True)
    r1 = x_enc @ p["w_r1"] + p["b_r1"]
    xm = jax.nn.relu(g1 + r1)
    g2 = gat(xm, p["w_g2"], p["att_src2"], p["att_dst2"], p["b_g2"], False)
    r2 = xm @ p["w_r2"] + p["b_r2"]
    return g2 + r2


# ------------------------------- setup ----------------------------------------
def make_params(key, input_dim, hidden_dim, output_dim, encoding_dim, heads):
    ks = jax.random.split(key, 16)
    s = 0.1
    f32 = jnp.float32
    return {
        # Autoencoder (fc3 exists in __init__ but is unused by forward)
        "w_ae1": s * jax.random.normal(ks[0], (input_dim, encoding_dim), f32),
        "b_ae1": s * jax.random.normal(ks[1], (1, encoding_dim), f32),
        "w_ae2": s * jax.random.normal(ks[2], (encoding_dim, encoding_dim), f32),
        "b_ae2": s * jax.random.normal(ks[3], (1, encoding_dim), f32),
        # GATConv 1: encoding_dim -> hidden_dim, heads, concat=True
        "w_g1": s * jax.random.normal(ks[4], (encoding_dim, heads * hidden_dim), f32),
        "att_src1": s * jax.random.normal(ks[5], (heads, hidden_dim), f32),
        "att_dst1": s * jax.random.normal(ks[6], (heads, hidden_dim), f32),
        "b_g1": s * jax.random.normal(ks[7], (1, heads * hidden_dim), f32),
        # residual_fc1: encoding_dim -> hidden_dim*heads
        "w_r1": s * jax.random.normal(ks[8], (encoding_dim, heads * hidden_dim), f32),
        "b_r1": s * jax.random.normal(ks[9], (1, heads * hidden_dim), f32),
        # GATConv 2: hidden_dim*heads -> output_dim, heads=1, concat=False
        "w_g2": s * jax.random.normal(ks[10], (heads * hidden_dim, output_dim), f32),
        "att_src2": s * jax.random.normal(ks[11], (1, output_dim), f32),
        "att_dst2": s * jax.random.normal(ks[12], (1, output_dim), f32),
        "b_g2": s * jax.random.normal(ks[13], (1, output_dim), f32),
        # residual_fc2: hidden_dim*heads -> output_dim
        "w_r2": s * jax.random.normal(ks[14], (heads * hidden_dim, output_dim), f32),
        "b_r2": s * jax.random.normal(ks[15], (1, output_dim), f32),
    }


if __name__ == "__main__":
    NUM_GRAPHS = 16
    NODES_PER_GRAPH = 8          # 16 x 8 = 128 nodes -> sublane/lane-dense adj
    N = NUM_GRAPHS * NODES_PER_GRAPH
    input_dim = 64
    hidden_dim = 64
    output_dim = 8
    encoding_dim = 64
    heads = 2                    # heads * hidden_dim = 128 -> lane-dense GAT1

    key = jax.random.PRNGKey(0)
    k_x, k_p = jax.random.split(key)

    x = jax.random.normal(k_x, (N, input_dim), jnp.float32)

    # PyG-style batch of NUM_GRAPHS bidirectional ring graphs (disconnected
    # union == independent per-graph forward), with GATConv's default self loops.
    srcs, dsts = [], []
    for g in range(NUM_GRAPHS):
        off = g * NODES_PER_GRAPH
        a = np.arange(NODES_PER_GRAPH)
        srcs += [off + a, off + (a + 1) % NODES_PER_GRAPH]
        dsts += [off + (a + 1) % NODES_PER_GRAPH, off + a]
    src = np.concatenate(srcs)
    dst = np.concatenate(dsts)
    adj_np = np.zeros((N, N), np.float32)   # adj[target, source] = 1
    adj_np[dst, src] = 1.0
    np.fill_diagonal(adj_np, 1.0)           # self loops
    adj = jnp.asarray(adj_np)

    params = make_params(k_p, input_dim, hidden_dim, output_dim, encoding_dim, heads)

    out = gat_with_autoencoder_residual(x, adj, params, heads=heads)
    out = jax.block_until_ready(out)
    assert out.shape == (N, output_dim)

    ref = _reference(x, adj, params)
    # bf16 MXU operands compared against an all-f32 reference -> 2e-2 tolerance.
    np.testing.assert_allclose(np.asarray(out), np.asarray(ref), rtol=2e-2, atol=2e-2)

    print("KERNEL_OK")
</pallas_src>

<mosaic_0001>
module attributes {stable_mosaic.version = 11 : i64} {
  func.func @gat_ae_residual_kernel(%arg0: memref<128x64xf32, #tpu.memory_space<vmem>>, %arg1: memref<128x128xf32, #tpu.memory_space<vmem>>, %arg2: memref<64x64xbf16, #tpu.memory_space<vmem>>, %arg3: memref<1x64xf32, #tpu.memory_space<vmem>>, %arg4: memref<64x64xbf16, #tpu.memory_space<vmem>>, %arg5: memref<1x64xf32, #tpu.memory_space<vmem>>, %arg6: memref<64x128xbf16, #tpu.memory_space<vmem>>, %arg7: memref<2x128xbf16, #tpu.memory_space<vmem>>, %arg8: memref<128x2xbf16, #tpu.memory_space<vmem>>, %arg9: memref<2x128xf32, #tpu.memory_space<vmem>>, %arg10: memref<1x128xf32, #tpu.memory_space<vmem>>, %arg11: memref<64x128xbf16, #tpu.memory_space<vmem>>, %arg12: memref<1x128xf32, #tpu.memory_space<vmem>>, %arg13: memref<128x128xbf16, #tpu.memory_space<vmem>>, %arg14: memref<1x128xbf16, #tpu.memory_space<vmem>>, %arg15: memref<128x1xbf16, #tpu.memory_space<vmem>>, %arg16: memref<1x128xf32, #tpu.memory_space<vmem>>, %arg17: memref<128x128xbf16, #tpu.memory_space<vmem>>, %arg18: memref<1x128xf32, #tpu.memory_space<vmem>>, %arg19: memref<128x128xf32, #tpu.memory_space<vmem>>) attributes {dimension_semantics = [], scalar_prefetch = 0 : i64, scratch_operands = 0 : i64, tpu.core_type = #tpu.core_type<tc>} {
    %c0 = arith.constant 0 : index
    %c0_0 = arith.constant 0 : index
    %0 = vector.load %arg0[%c0, %c0_0] : memref<128x64xf32, #tpu.memory_space<vmem>>, vector<128x64xf32>
    %1 = arith.truncf %0 : vector<128x64xf32> to vector<128x64xbf16>
    %c0_1 = arith.constant 0 : index
    %c0_2 = arith.constant 0 : index
    %2 = vector.load %arg1[%c0_1, %c0_2] : memref<128x128xf32, #tpu.memory_space<vmem>>, vector<128x128xf32>
    %c0_3 = arith.constant 0 : index
    %c0_4 = arith.constant 0 : index
    %3 = vector.load %arg2[%c0_3, %c0_4] : memref<64x64xbf16, #tpu.memory_space<vmem>>, vector<64x64xbf16>
    %cst = arith.constant dense<0.000000e+00> : vector<128x64xf32>
    %4 = tpu.matmul %1, %3, %cst {dimension_numbers = #tpu.dot_dimension_numbers<[1], [0], [0], [1], [0, 0, 1, 1], [], []>} : vector<128x64xbf16>, vector<64x64xbf16>, vector<128x64xf32> -> vector<128x64xf32>
    %c0_5 = arith.constant 0 : index
    %c0_6 = arith.constant 0 : index
    %5 = vector.load %arg3[%c0_5, %c0_6] : memref<1x64xf32, #tpu.memory_space<vmem>>, vector<1x64xf32>
    %6 = vector.broadcast %5 : vector<1x64xf32> to vector<128x64xf32>
    %7 = arith.addf %4, %6 : vector<128x64xf32>
    %cst_7 = arith.constant 0.000000e+00 : f32
    %8 = vector.broadcast %cst_7 : f32 to vector<128x64xf32>
    %9 = arith.maximumf %7, %8 : vector<128x64xf32>
    %10 = arith.truncf %9 : vector<128x64xf32> to vector<128x64xbf16>
    %c0_8 = arith.constant 0 : index
    %c0_9 = arith.constant 0 : index
    %11 = vector.load %arg4[%c0_8, %c0_9] : memref<64x64xbf16, #tpu.memory_space<vmem>>, vector<64x64xbf16>
    %cst_10 = arith.constant dense<0.000000e+00> : vector<128x64xf32>
    %12 = tpu.matmul %10, %11, %cst_10 {dimension_numbers = #tpu.dot_dimension_numbers<[1], [0], [0], [1], [0, 0, 1, 1], [], []>} : vector<128x64xbf16>, vector<64x64xbf16>, vector<128x64xf32> -> vector<128x64xf32>
    %c0_11 = arith.constant 0 : index
    %c0_12 = arith.constant 0 : index
    %13 = vector.load %arg5[%c0_11, %c0_12] : memref<1x64xf32, #tpu.memory_space<vmem>>, vector<1x64xf32>
    %14 = vector.broadcast %13 : vector<1x64xf32> to vector<128x64xf32>
    %15 = arith.addf %12, %14 : vector<128x64xf32>
    %cst_13 = arith.constant 0.000000e+00 : f32
    %16 = vector.broadcast %cst_13 : f32 to vector<128x64xf32>
    %17 = arith.maximumf %15, %16 : vector<128x64xf32>
    %18 = arith.truncf %17 : vector<128x64xf32> to vector<128x64xbf16>
    %c0_14 = arith.constant 0 : index
    %c0_15 = arith.constant 0 : index
    %19 = vector.load %arg6[%c0_14, %c0_15] : memref<64x128xbf16, #tpu.memory_space<vmem>>, vector<64x128xbf16>
    %cst_16 = arith.constant dense<0.000000e+00> : vector<128x128xf32>
    %20 = tpu.matmul %18, %19, %cst_16 {dimension_numbers = #tpu.dot_dimension_numbers<[1], [0], [0], [1], [0, 0, 1, 1], [], []>} : vector<128x64xbf16>, vector<64x128xbf16>, vector<128x128xf32> -> vector<128x128xf32>
    %21 = arith.truncf %20 : vector<128x128xf32> to vector<128x128xbf16>
    %c0_17 = arith.constant 0 : index
    %c0_18 = arith.constant 0 : index
    %22 = vector.load %arg7[%c0_17, %c0_18] : memref<2x128xbf16, #tpu.memory_space<vmem>>, vector<2x128xbf16>
    %c0_19 = arith.constant 0 : index
    %c0_20 = arith.constant 0 : index
    %23 = vector.load %arg8[%c0_19, %c0_20] : memref<128x2xbf16, #tpu.memory_space<vmem>>, vector<128x2xbf16>
    %c0_21 = arith.constant 0 : index
    %c0_22 = arith.constant 0 : index
    %24 = vector.load %arg9[%c0_21, %c0_22] : memref<2x128xf32, #tpu.memory_space<vmem>>, vector<2x128xf32>
    %c0_23 = arith.constant 0 : index
    %c0_24 = arith.constant 0 : index
    %25 = vector.load %arg10[%c0_23, %c0_24] : memref<1x128xf32, #tpu.memory_space<vmem>>, vector<1x128xf32>
    %cst_25 = arith.constant dense<0.000000e+00> : vector<2x128xf32>
    %26 = tpu.matmul %22, %21, %cst_25 {dimension_numbers = #tpu.dot_dimension_numbers<[1], [1], [0], [0], [0, 0, 1, 0], [], []>} : vector<2x128xbf16>, vector<128x128xbf16>, vector<2x128xf32> -> vector<2x128xf32>
    %cst_26 = arith.constant dense<0.000000e+00> : vector<128x2xf32>
    %27 = tpu.matmul %21, %23, %cst_26 {dimension_numbers = #tpu.dot_dimension_numbers<[1], [0], [0], [1], [0, 0, 1, 1], [], []>} : vector<128x128xbf16>, vector<128x2xbf16>, vector<128x2xf32> -> vector<128x2xf32>
    %28 = vector.extract_strided_slice %27 {offsets = [0, 0], sizes = [128, 1], strides = [1, 1]} : vector<128x2xf32> to vector<128x1xf32>
    %29 = vector.extract_strided_slice %26 {offsets = [0, 0], sizes = [1, 128], strides = [1, 1]} : vector<2x128xf32> to vector<1x128xf32>
    %30 = vector.broadcast %28 : vector<128x1xf32> to vector<128x128xf32>
    %31 = vector.broadcast %29 : vector<1x128xf32> to vector<128x128xf32>
    %32 = arith.addf %30, %31 : vector<128x128xf32>
    %cst_27 = arith.constant 0.000000e+00 : f32
    %33 = vector.broadcast %cst_27 : f32 to vector<128x128xf32>
    %34 = arith.cmpf ogt, %32, %33 : vector<128x128xf32>
    %cst_28 = arith.constant 2.000000e-01 : f32
    %35 = vector.broadcast %cst_28 : f32 to vector<128x128xf32>
    %36 = arith.mulf %35, %32 : vector<128x128xf32>
    %37 = arith.select %34, %32, %36 : vector<128x128xi1>, vector<128x128xf32>
    %cst_29 = arith.constant 0.000000e+00 : f32
    %38 = vector.broadcast %cst_29 : f32 to vector<128x128xf32>
    %39 = arith.cmpf ogt, %2, %38 : vector<128x128xf32>
    %cst_30 = arith.constant -1.000000e+30 : f32
    %40 = vector.broadcast %cst_30 : f32 to vector<128x128xf32>
    %41 = arith.select %39, %37, %40 : vector<128x128xi1>, vector<128x128xf32>
    %cst_31 = arith.constant dense<0xFF800000> : vector<128xf32>
    %42 = vector.multi_reduction <maximumf>, %41, %cst_31 [1] : vector<128x128xf32> to vector<128xf32>
    %43 = vector.shape_cast %42 : vector<128xf32> to vector<128x1xf32>
    %44 = vector.broadcast %43 : vector<128x1xf32> to vector<128x128xf32>
    %45 = arith.subf %41, %44 : vector<128x128xf32>
    %46 = math.exp %45 : vector<128x128xf32>
    %cst_32 = arith.constant dense<0.000000e+00> : vector<128xf32>
    %47 = vector.multi_reduction <add>, %46, %cst_32 [1] : vector<128x128xf32> to vector<128xf32>
    %48 = vector.shape_cast %47 : vector<128xf32> to vector<128x1xf32>
    %cst_33 = arith.constant 1.000000e-30 : f32
    %49 = vector.broadcast %cst_33 : f32 to vector<128x1xf32>
    %50 = arith.maximumf %48, %49 : vector<128x1xf32>
    %51 = tpu.reciprocal %50 {approx = true} : vector<128x1xf32> -> vector<128x1xf32>
    %52 = vector.broadcast %51 : vector<128x1xf32> to vector<128x128xf32>
    %53 = arith.mulf %46, %52 : vector<128x128xf32>
    %54 = arith.truncf %53 : vector<128x128xf32> to vector<128x128xbf16>
    %cst_34 = arith.constant dense<0.000000e+00> : vector<128x128xf32>
    %55 = tpu.matmul %54, %21, %cst_34 {dimension_numbers = #tpu.dot_dimension_numbers<[1], [0], [0], [1], [0, 0, 1, 1], [], []>} : vector<128x128xbf16>, vector<128x128xbf16>, vector<128x128xf32> -> vector<128x128xf32>
    %56 = vector.extract_strided_slice %24 {offsets = [0, 0], sizes = [1, 128], strides = [1, 1]} : vector<2x128xf32> to vector<1x128xf32>
    %57 = vector.broadcast %56 : vector<1x128xf32> to vector<128x128xf32>
    %58 = arith.mulf %55, %57 : vector<128x128xf32>
    %59 = vector.extract_strided_slice %27 {offsets = [0, 1], sizes = [128, 1], strides = [1, 1]} : vector<128x2xf32> to vector<128x1xf32>
    %60 = vector.extract_strided_slice %26 {offsets = [1, 0], sizes = [1, 128], strides = [1, 1]} : vector<2x128xf32> to vector<1x128xf32>
    %61 = vector.broadcast %59 : vector<128x1xf32> to vector<128x128xf32>
    %62 = vector.broadcast %60 : vector<1x128xf32> to vector<128x128xf32>
    %63 = arith.addf %61, %62 : vector<128x128xf32>
    %cst_35 = arith.constant 0.000000e+00 : f32
    %64 = vector.broadcast %cst_35 : f32 to vector<128x128xf32>
    %65 = arith.cmpf ogt, %63, %64 : vector<128x128xf32>
    %cst_36 = arith.constant 2.000000e-01 : f32
    %66 = vector.broadcast %cst_36 : f32 to vector<128x128xf32>
    %67 = arith.mulf %66, %63 : vector<128x128xf32>
    %68 = arith.select %65, %63, %67 : vector<128x128xi1>, vector<128x128xf32>
    %cst_37 = arith.constant 0.000000e+00 : f32
    %69 = vector.broadcast %cst_37 : f32 to vector<128x128xf32>
    %70 = arith.cmpf ogt, %2, %69 : vector<128x128xf32>
    %cst_38 = arith.constant -1.000000e+30 : f32
    %71 = vector.broadcast %cst_38 : f32 to vector<128x128xf32>
    %72 = arith.select %70, %68, %71 : vector<128x128xi1>, vector<128x128xf32>
    %cst_39 = arith.constant dense<0xFF800000> : vector<128xf32>
    %73 = vector.multi_reduction <maximumf>, %72, %cst_39 [1] : vector<128x128xf32> to vector<128xf32>
    %74 = vector.shape_cast %73 : vector<128xf32> to vector<128x1xf32>
    %75 = vector.broadcast %74 : vector<128x1xf32> to vector<128x128xf32>
    %76 = arith.subf %72, %75 : vector<128x128xf32>
    %77 = math.exp %76 : vector<128x128xf32>
    %cst_40 = arith.constant dense<0.000000e+00> : vector<128xf32>
    %78 = vector.multi_reduction <add>, %77, %cst_40 [1] : vector<128x128xf32> to vector<128xf32>
    %79 = vector.shape_cast %78 : vector<128xf32> to vector<128x1xf32>
    %cst_41 = arith.constant 1.000000e-30 : f32
    %80 = vector.broadcast %cst_41 : f32 to vector<128x1xf32>
    %81 = arith.maximumf %79, %80 : vector<128x1xf32>
    %82 = tpu.reciprocal %81 {approx = true} : vector<128x1xf32> -> vector<128x1xf32>
    %83 = vector.broadcast %82 : vector<128x1xf32> to vector<128x128xf32>
    %84 = arith.mulf %77, %83 : vector<128x128xf32>
    %85 = arith.truncf %84 : vector<128x128xf32> to vector<128x128xbf16>
    %cst_42 = arith.constant dense<0.000000e+00> : vector<128x128xf32>
    %86 = tpu.matmul %85, %21, %cst_42 {dimension_numbers = #tpu.dot_dimension_numbers<[1], [0], [0], [1], [0, 0, 1, 1], [], []>} : vector<128x128xbf16>, vector<128x128xbf16>, vector<128x128xf32> -> vector<128x128xf32>
    %87 = vector.extract_strided_slice %24 {offsets = [1, 0], sizes = [1, 128], strides = [1, 1]} : vector<2x128xf32> to vector<1x128xf32>
    %88 = vector.broadcast %87 : vector<1x128xf32> to vector<128x128xf32>
    %89 = arith.mulf %86, %88 : vector<128x128xf32>
    %90 = arith.addf %58, %89 : vector<128x128xf32>
    %91 = vector.broadcast %25 : vector<1x128xf32> to vector<128x128xf32>
    %92 = arith.addf %90, %91 : vector<128x128xf32>
    %c0_43 = arith.constant 0 : index
    %c0_44 = arith.constant 0 : index
    %93 = vector.load %arg11[%c0_43, %c0_44] : memref<64x128xbf16, #tpu.memory_space<vmem>>, vector<64x128xbf16>
    %cst_45 = arith.constant dense<0.000000e+00> : vector<128x128xf32>
    %94 = tpu.matmul %18, %93, %cst_45 {dimension_numbers = #tpu.dot_dimension_numbers<[1], [0], [0], [1], [0, 0, 1, 1], [], []>} : vector<128x64xbf16>, vector<64x128xbf16>, vector<128x128xf32> -> vector<128x128xf32>
    %c0_46 = arith.constant 0 : index
    %c0_47 = arith.constant 0 : index
    %95 = vector.load %arg12[%c0_46, %c0_47] : memref<1x128xf32, #tpu.memory_space<vmem>>, vector<1x128xf32>
    %96 = vector.broadcast %95 : vector<1x128xf32> to vector<128x128xf32>
    %97 = arith.addf %94, %96 : vector<128x128xf32>
    %98 = arith.addf %92, %97 : vector<128x128xf32>
    %cst_48 = arith.constant 0.000000e+00 : f32
    %99 = vector.broadcast %cst_48 : f32 to vector<128x128xf32>
    %100 = arith.maximumf %98, %99 : vector<128x128xf32>
    %101 = arith.truncf %100 : vector<128x128xf32> to vector<128x128xbf16>
    %c0_49 = arith.constant 0 : index
    %c0_50 = arith.constant 0 : index
    %102 = vector.load %arg13[%c0_49, %c0_50] : memref<128x128xbf16, #tpu.memory_space<vmem>>, vector<128x128xbf16>
    %cst_51 = arith.constant dense<0.000000e+00> : vector<128x128xf32>
    %103 = tpu.matmul %101, %102, %cst_51 {dimension_numbers = #tpu.dot_dimension_numbers<[1], [0], [0], [1], [0, 0, 1, 1], [], []>} : vector<128x128xbf16>, vector<128x128xbf16>, vector<128x128xf32> -> vector<128x128xf32>
    %104 = arith.truncf %103 : vector<128x128xf32> to vector<128x128xbf16>
    %c0_52 = arith.constant 0 : index
    %c0_53 = arith.constant 0 : index
    %105 = vector.load %arg14[%c0_52, %c0_53] : memref<1x128xbf16, #tpu.memory_space<vmem>>, vector<1x128xbf16>
    %c0_54 = arith.constant 0 : index
    %c0_55 = arith.constant 0 : index
    %106 = vector.load %arg15[%c0_54, %c0_55] : memref<128x1xbf16, #tpu.memory_space<vmem>>, vector<128x1xbf16>
    %c0_56 = arith.constant 0 : index
    %c0_57 = arith.constant 0 : index
    %107 = vector.load %arg16[%c0_56, %c0_57] : memref<1x128xf32, #tpu.memory_space<vmem>>, vector<1x128xf32>
    %cst_58 = arith.constant dense<0.000000e+00> : vector<1x128xf32>
    %108 = tpu.matmul %105, %104, %cst_58 {dimension_numbers = #tpu.dot_dimension_numbers<[1], [1], [0], [0], [0, 0, 1, 0], [], []>} : vector<1x128xbf16>, vector<128x128xbf16>, vector<1x128xf32> -> vector<1x128xf32>
    %cst_59 = arith.constant dense<0.000000e+00> : vector<128x1xf32>
    %109 = tpu.matmul %104, %106, %cst_59 {dimension_numbers = #tpu.dot_dimension_numbers<[1], [0], [0], [1], [0, 0, 1, 1], [], []>} : vector<128x128xbf16>, vector<128x1xbf16>, vector<128x1xf32> -> vector<128x1xf32>
    %110 = vector.broadcast %109 : vector<128x1xf32> to vector<128x128xf32>
    %111 = vector.broadcast %108 : vector<1x128xf32> to vector<128x128xf32>
    %112 = arith.addf %110, %111 : vector<128x128xf32>
    %cst_60 = arith.constant 0.000000e+00 : f32
    %113 = vector.broadcast %cst_60 : f32 to vector<128x128xf32>
    %114 = arith.cmpf ogt, %112, %113 : vector<128x128xf32>
    %cst_61 = arith.constant 2.000000e-01 : f32
    %115 = vector.broadcast %cst_61 : f32 to vector<128x128xf32>
    %116 = arith.mulf %115, %112 : vector<128x128xf32>
    %117 = arith.select %114, %112, %116 : vector<128x128xi1>, vector<128x128xf32>
    %cst_62 = arith.constant 0.000000e+00 : f32
    %118 = vector.broadcast %cst_62 : f32 to vector<128x128xf32>
    %119 = arith.cmpf ogt, %2, %118 : vector<128x128xf32>
    %cst_63 = arith.constant -1.000000e+30 : f32
    %120 = vector.broadcast %cst_63 : f32 to vector<128x128xf32>
    %121 = arith.select %119, %117, %120 : vector<128x128xi1>, vector<128x128xf32>
    %cst_64 = arith.constant dense<0xFF800000> : vector<128xf32>
    %122 = vector.multi_reduction <maximumf>, %121, %cst_64 [1] : vector<128x128xf32> to vector<128xf32>
    %123 = vector.shape_cast %122 : vector<128xf32> to vector<128x1xf32>
    %124 = vector.broadcast %123 : vector<128x1xf32> to vector<128x128xf32>
    %125 = arith.subf %121, %124 : vector<128x128xf32>
    %126 = math.exp %125 : vector<128x128xf32>
    %cst_65 = arith.constant dense<0.000000e+00> : vector<128xf32>
    %127 = vector.multi_reduction <add>, %126, %cst_65 [1] : vector<128x128xf32> to vector<128xf32>
    %128 = vector.shape_cast %127 : vector<128xf32> to vector<128x1xf32>
    %cst_66 = arith.constant 1.000000e-30 : f32
    %129 = vector.broadcast %cst_66 : f32 to vector<128x1xf32>
    %130 = arith.maximumf %128, %129 : vector<128x1xf32>
    %131 = tpu.reciprocal %130 {approx = true} : vector<128x1xf32> -> vector<128x1xf32>
    %132 = vector.broadcast %131 : vector<128x1xf32> to vector<128x128xf32>
    %133 = arith.mulf %126, %132 : vector<128x128xf32>
    %134 = arith.truncf %133 : vector<128x128xf32> to vector<128x128xbf16>
    %cst_67 = arith.constant dense<0.000000e+00> : vector<128x128xf32>
    %135 = tpu.matmul %134, %104, %cst_67 {dimension_numbers = #tpu.dot_dimension_numbers<[1], [0], [0], [1], [0, 0, 1, 1], [], []>} : vector<128x128xbf16>, vector<128x128xbf16>, vector<128x128xf32> -> vector<128x128xf32>
    %136 = vector.broadcast %107 : vector<1x128xf32> to vector<128x128xf32>
    %137 = arith.addf %135, %136 : vector<128x128xf32>
    %c0_68 = arith.constant 0 : index
    %c0_69 = arith.constant 0 : index
    %138 = vector.load %arg17[%c0_68, %c0_69] : memref<128x128xbf16, #tpu.memory_space<vmem>>, vector<128x128xbf16>
    %cst_70 = arith.constant dense<0.000000e+00> : vector<128x128xf32>
    %139 = tpu.matmul %101, %138, %cst_70 {dimension_numbers = #tpu.dot_dimension_numbers<[1], [0], [0], [1], [0, 0, 1, 1], [], []>} : vector<128x128xbf16>, vector<128x128xbf16>, vector<128x128xf32> -> vector<128x128xf32>
    %c0_71 = arith.constant 0 : index
    %c0_72 = arith.constant 0 : index
    %140 = vector.load %arg18[%c0_71, %c0_72] : memref<1x128xf32, #tpu.memory_space<vmem>>, vector<1x128xf32>
    %141 = vector.broadcast %140 : vector<1x128xf32> to vector<128x128xf32>
    %142 = arith.addf %139, %141 : vector<128x128xf32>
    %143 = arith.addf %137, %142 : vector<128x128xf32>
    %c0_73 = arith.constant 0 : index
    %c0_74 = arith.constant 0 : index
    %144 = vector.load %arg19[%c0_73, %c0_74] : memref<128x128xf32, #tpu.memory_space<vmem>>, vector<128x128xf32>
    tpu.vector_store %arg19[%c0_73, %c0_74], %143 {strides = array<i32>} : memref<128x128xf32, #tpu.memory_space<vmem>>, vector<128x128xf32>,
    return
  }
}

</mosaic_0001>

<llo_original>
// kernel: tpu_custom_call.1
$region0: #{tpu_custom_call.1}
  #allocation0 [shape = 'u32[]', space=smem, size = 0x4, offset = 0x4, fixed_abs, tag = 'smem constant byte address 0x4 - core index']
  #allocation1 [shape = 'u32[144,128]{1,0:T(1,128)}', space=vmem, size = 0x12000, scoped, tag = 'internal scratch']
  %s0 = inlined_call_operand.vmem [shape: f32[128,64], index: 0, kind: input, shape index: {}]
  %s1 = inlined_call_operand.vmem [shape: f32[128,128], index: 1, kind: input, shape index: {}]
  %s2 = inlined_call_operand.hbm [shape: bf16[64,64], index: 2, kind: input, shape index: {}]
  %s3 = inlined_call_operand.vmem [shape: f32[1,64], index: 3, kind: input, shape index: {}]
  %s4 = inlined_call_operand.hbm [shape: bf16[64,64], index: 4, kind: input, shape index: {}]
  %s5 = inlined_call_operand.vmem [shape: f32[1,64], index: 5, kind: input, shape index: {}]
  %s6 = inlined_call_operand.hbm [shape: bf16[64,128], index: 6, kind: input, shape index: {}]
  %s7 = inlined_call_operand.vmem [shape: bf16[2,128], index: 7, kind: input, shape index: {}]
  %s8 = inlined_call_operand.vmem [shape: bf16[128,2], index: 8, kind: input, shape index: {}]
  %s9 = inlined_call_operand.vmem [shape: f32[2,128], index: 9, kind: input, shape index: {}]
  %s10 = inlined_call_operand.vmem [shape: f32[1,128], index: 10, kind: input, shape index: {}]
  %s11 = inlined_call_operand.hbm [shape: bf16[64,128], index: 11, kind: input, shape index: {}]
  %s12 = inlined_call_operand.vmem [shape: f32[1,128], index: 12, kind: input, shape index: {}]
  %s13 = inlined_call_operand.vmem [shape: bf16[128,128], index: 13, kind: input, shape index: {}]
  %s14 = inlined_call_operand.vmem [shape: bf16[1,128], index: 14, kind: input, shape index: {}]
  %s15 = inlined_call_operand.vmem [shape: bf16[128,1], index: 15, kind: input, shape index: {}]
  %s16 = inlined_call_operand.vmem [shape: f32[1,128], index: 16, kind: input, shape index: {}]
  %s17 = inlined_call_operand.vmem [shape: bf16[128,128], index: 17, kind: input, shape index: {}]
  %s18 = inlined_call_operand.vmem [shape: f32[1,128], index: 18, kind: input, shape index: {}]
  %s19 = inlined_call_operand.hbm [shape: f32[128,128], index: 19, kind: output, shape index: {}]
  %s20 = sld [smem:[#allocation0]]
  $region102: #{tpu_custom_call.1} parent=0
    _
  %s22 = ssub.s32 1, %s20
  %s23 = scalar_select 0, %s22, %s20
  $region1: #{tpu_custom_call.1} parent=0
    #allocation2 [shape = 'u8[16384]{0}', space=vmem, size = 0x4000, scoped, tag = 'input window, operand 2, single buffered']
    #allocation3 [shape = 's32[1]{0}', space=sflag, size = 0x4, scoped, tag = 'scoped memory for tpu_custom_call.1']
    #allocation4 [shape = 's32[1]{0}', space=sflag, size = 0x4, scoped, tag = 'scoped memory for tpu_custom_call.1']
    #allocation5 [shape = 'u8[16384]{0}', space=vmem, size = 0x4000, scoped, tag = 'input window, operand 4, single buffered']
    #allocation6 [shape = 's32[1]{0}', space=sflag, size = 0x4, scoped, tag = 'scoped memory for tpu_custom_call.1']
    #allocation7 [shape = 'u8[16384]{0}', space=vmem, size = 0x4000, scoped, tag = 'input window, operand 6, single buffered']
    #allocation8 [shape = 'u8[16384]{0}', space=vmem, size = 0x4000, scoped, tag = 'input window, operand 11, single buffered']
    #allocation9 [shape = 's32[1]{0}', space=sflag, size = 0x4, scoped, tag = 'scoped memory for tpu_custom_call.1']
    #allocation10 [shape = 'u8[65536]{0}', space=vmem, size = 0x10000, scoped, tag = 'output window, operand 0, single buffered']
    %24 = vsyncpa [#allocation3], 0
    %25 = vsyncpa [#allocation6], 0
    %26 = vsyncpa [#allocation9], 0
    %27 = vsyncpa [#allocation4], 0
    // Predicated region
    $region2: #{tpu_custom_call.1} parent=1 // pred_check
      _
    $region3: #{tpu_custom_call.1} parent=1 // pred_check_branch
      %29 = sbr.rel (0) target = $region5
    $region4: #{tpu_custom_call.1} parent=1 // pred_region
      _
    $region5: #{tpu_custom_call.1} parent=1 // pred_fallthru
      _
    // Predicated region
    $region6: #{tpu_custom_call.1} parent=1 // pred_check
      _
    $region7: #{tpu_custom_call.1} parent=1 // pred_check_branch
      %31 = sbr.rel (0) target = $region9
    $region8: #{tpu_custom_call.1} parent=1 // pred_region
      _
    $region9: #{tpu_custom_call.1} parent=1 // pred_fallthru
      _
    // Predicated region
    $region10: #{tpu_custom_call.1} parent=1 // pred_check
      _
    $region11: #{tpu_custom_call.1} parent=1 // pred_check_branch
      %33 = sbr.rel (0) target = $region13
    $region12: #{tpu_custom_call.1} parent=1 // pred_region
      %s35 = ssub.s32 512, 512
      %36 = vsyncadd [#allocation3], %s35
      %s37 = sshll.u32 [#allocation2], 4
      %s38 = int_to_ptr.vmem [resolvable:$true] %s37
      %43 = dma.hbm_to_vmem [thread:$0]  %s2, 512, %s38, [#allocation3], 64, 64, 4
    $region13: #{tpu_custom_call.1} parent=1 // pred_fallthru
      _
    // Predicated region
    $region14: #{tpu_custom_call.1} parent=1 // pred_check
      _
    $region15: #{tpu_custom_call.1} parent=1 // pred_check_branch
      %45 = sbr.rel (0) target = $region17
    $region16: #{tpu_custom_call.1} parent=1 // pred_region
      _
    $region17: #{tpu_custom_call.1} parent=1 // pred_fallthru
      _
    // Predicated region
    $region18: #{tpu_custom_call.1} parent=1 // pred_check
      _
    $region19: #{tpu_custom_call.1} parent=1 // pred_check_branch
      %47 = sbr.rel (0) target = $region21
    $region20: #{tpu_custom_call.1} parent=1 // pred_region
      %s49 = ssub.s32 512, 512
      %50 = vsyncadd [#allocation6], %s49
      %s51 = sshll.u32 [#allocation5], 4
      %s52 = int_to_ptr.vmem [resolvable:$true] %s51
      %57 = dma.hbm_to_vmem [thread:$0]  %s4, 512, %s52, [#allocation6], 64, 64, 4
    $region21: #{tpu_custom_call.1} parent=1 // pred_fallthru
      _
    // Predicated region
    $region22: #{tpu_custom_call.1} parent=1 // pred_check
      _
    $region23: #{tpu_custom_call.1} parent=1 // pred_check_branch
      %59 = sbr.rel (0) target = $region25
    $region24: #{tpu_custom_call.1} parent=1 // pred_region
      _
    $region25: #{tpu_custom_call.1} parent=1 // pred_fallthru
      _
    // Predicated region
    $region26: #{tpu_custom_call.1} parent=1 // pred_check
      _
    $region27: #{tpu_custom_call.1} parent=1 // pred_check_branch
      %61 = sbr.rel (0) target = $region29
    $region28: #{tpu_custom_call.1} parent=1 // pred_region
      %s63 = ssub.s32 512, 512
      %64 = vsyncadd [#allocation6], %s63
      %s65 = sshll.u32 [#allocation7], 4
      %s66 = int_to_ptr.vmem [resolvable:$true] %s65
      %71 = dma.hbm_to_vmem [thread:$0]  %s6, 512, %s66, [#allocation6], 64, 64, 4
    $region29: #{tpu_custom_call.1} parent=1 // pred_fallthru
      _
    // Predicated region
    $region30: #{tpu_custom_call.1} parent=1 // pred_check
      _
    $region31: #{tpu_custom_call.1} parent=1 // pred_check_branch
      %73 = sbr.rel (0) target = $region33
    $region32: #{tpu_custom_call.1} parent=1 // pred_region
      _
    $region33: #{tpu_custom_call.1} parent=1 // pred_fallthru
      _
    // Predicated region
    $region34: #{tpu_custom_call.1} parent=1 // pred_check
      _
    $region35: #{tpu_custom_call.1} parent=1 // pred_check_branch
      %75 = sbr.rel (0) target = $region37
    $region36: #{tpu_custom_call.1} parent=1 // pred_region
      _
    $region37: #{tpu_custom_call.1} parent=1 // pred_fallthru
      _
    // Predicated region
    $region38: #{tpu_custom_call.1} parent=1 // pred_check
      _
    $region39: #{tpu_custom_call.1} parent=1 // pred_check_branch
      %77 = sbr.rel (0) target = $region41
    $region40: #{tpu_custom_call.1} parent=1 // pred_region
      _
    $region41: #{tpu_custom_call.1} parent=1 // pred_fallthru
      _
    // Predicated region
    $region42: #{tpu_custom_call.1} parent=1 // pred_check
      _
    $region43: #{tpu_custom_call.1} parent=1 // pred_check_branch
      %79 = sbr.rel (0) target = $region45
    $region44: #{tpu_custom_call.1} parent=1 // pred_region
      _
    $region45: #{tpu_custom_call.1} parent=1 // pred_fallthru
      _
    // Predicated region
    $region46: #{tpu_custom_call.1} parent=1 // pred_check
      _
    $region47: #{tpu_custom_call.1} parent=1 // pred_check_branch
      %81 = sbr.rel (0) target = $region49
    $region48: #{tpu_custom_call.1} parent=1 // pred_region
      %s83 = ssub.s32 512, 512
      %84 = vsyncadd [#allocation9], %s83
      %s85 = sshll.u32 [#allocation8], 4
      %s86 = int_to_ptr.vmem [resolvable:$true] %s85
      %91 = dma.hbm_to_vmem [thread:$0]  %s11, 512, %s86, [#allocation9], 64, 64, 4
    $region49: #{tpu_custom_call.1} parent=1 // pred_fallthru
      _
    // Predicated region
    $region50: #{tpu_custom_call.1} parent=1 // pred_check
      _
    $region51: #{tpu_custom_call.1} parent=1 // pred_check_branch
      %93 = sbr.rel (0) target = $region53
    $region52: #{tpu_custom_call.1} parent=1 // pred_region
      _
    $region53: #{tpu_custom_call.1} parent=1 // pred_fallthru
      _
    // Predicated region
    $region54: #{tpu_custom_call.1} parent=1 // pred_check
      _
    $region55: #{tpu_custom_call.1} parent=1 // pred_check_branch
      %95 = sbr.rel (0) target = $region57
    $region56: #{tpu_custom_call.1} parent=1 // pred_region
      _
    $region57: #{tpu_custom_call.1} parent=1 // pred_fallthru
      _
    // Predicated region
    $region58: #{tpu_custom_call.1} parent=1 // pred_check
      _
    $region59: #{tpu_custom_call.1} parent=1 // pred_check_branch
      %97 = sbr.rel (0) target = $region61
    $region60: #{tpu_custom_call.1} parent=1 // pred_region
      _
    $region61: #{tpu_custom_call.1} parent=1 // pred_fallthru
      _
    // Predicated region
    $region62: #{tpu_custom_call.1} parent=1 // pred_check
      _
    $region63: #{tpu_custom_call.1} parent=1 // pred_check_branch
      %99 = sbr.rel (0) target = $region65
    $region64: #{tpu_custom_call.1} parent=1 // pred_region
      _
    $region65: #{tpu_custom_call.1} parent=1 // pred_fallthru
      _
    // Predicated region
    $region66: #{tpu_custom_call.1} parent=1 // pred_check
      _
    $region67: #{tpu_custom_call.1} parent=1 // pred_check_branch
      %101 = sbr.rel (0) target = $region69
    $region68: #{tpu_custom_call.1} parent=1 // pred_region
      _
    $region69: #{tpu_custom_call.1} parent=1 // pred_fallthru
      _
    // Predicated region
    $region70: #{tpu_custom_call.1} parent=1 // pred_check
      _
    $region71: #{tpu_custom_call.1} parent=1 // pred_check_branch
      %103 = sbr.rel (0) target = $region73
    $region72: #{tpu_custom_call.1} parent=1 // pred_region
      _
    $region73: #{tpu_custom_call.1} parent=1 // pred_fallthru
      _
    // Predicated region
    $region74: #{tpu_custom_call.1} parent=1 // pred_check
      _
    $region75: #{tpu_custom_call.1} parent=1 // pred_check_branch
      %105 = sbr.rel (0) target = $region77
    $region76: #{tpu_custom_call.1} parent=1 // pred_region
      _
    $region77: #{tpu_custom_call.1} parent=1 // pred_fallthru
      _
    // Predicated region
    $region78: #{tpu_custom_call.1} parent=1 // pred_check
      _
    $region79: #{tpu_custom_call.1} parent=1 // pred_check_branch
      %107 = sbr.rel (0) target = $region81
    $region80: #{tpu_custom_call.1} parent=1 // pred_region
      %108 = dma.done [#allocation3], 512
    $region81: #{tpu_custom_call.1} parent=1 // pred_fallthru
      _
    // Predicated region
    $region82: #{tpu_custom_call.1} parent=1 // pred_check
      _
    $region83: #{tpu_custom_call.1} parent=1 // pred_check_branch
      %110 = sbr.rel (0) target = $region85
    $region84: #{tpu_custom_call.1} parent=1 // pred_region
      %111 = dma.done [#allocation6], 512
    $region85: #{tpu_custom_call.1} parent=1 // pred_fallthru
      _
    // Predicated region
    $region86: #{tpu_custom_call.1} parent=1 // pred_check
      _
    $region87: #{tpu_custom_call.1} parent=1 // pred_check_branch
      %113 = sbr.rel (0) target = $region89
    $region88: #{tpu_custom_call.1} parent=1 // pred_region
      %114 = dma.done [#allocation6], 512
    $region89: #{tpu_custom_call.1} parent=1 // pred_fallthru
      _
    // Predicated region
    $region90: #{tpu_custom_call.1} parent=1 // pred_check
      _
    $region91: #{tpu_custom_call.1} parent=1 // pred_check_branch
      %116 = sbr.rel (0) target = $region93
    $region92: #{tpu_custom_call.1} parent=1 // pred_region
      %117 = dma.done [#allocation9], 512
    $region93: #{tpu_custom_call.1} parent=1 // pred_fallthru
      _
    %v119 = vld [vmem:[%s0] sm:$0xff]
    %v120 = vld [vmem:[%s0 + $0x8] sm:$0xff]
    %v121 = vld [vmem:[%s0 + $0x10] sm:$0xff]
    %v122 = vld [vmem:[%s0 + $0x18] sm:$0xff]
    %v123 = vld [vmem:[%s0 + $0x20] sm:$0xff]
    %v124 = vld [vmem:[%s0 + $0x28] sm:$0xff]
    %v125 = vld [vmem:[%s0 + $0x30] sm:$0xff]
    %v126 = vld [vmem:[%s0 + $0x38] sm:$0xff]
    %v127 = vld [vmem:[%s0 + $0x40] sm:$0xff]
    %v128 = vld [vmem:[%s0 + $0x48] sm:$0xff]
    %v129 = vld [vmem:[%s0 + $0x50] sm:$0xff]
    %v130 = vld [vmem:[%s0 + $0x58] sm:$0xff]
    %v131 = vld [vmem:[%s0 + $0x60] sm:$0xff]
    %v132 = vld [vmem:[%s0 + $0x68] sm:$0xff]
    %v133 = vld [vmem:[%s0 + $0x70] sm:$0xff]
    %v134 = vld [vmem:[%s0 + $0x78] sm:$0xff]
    %v135 = vpack.c.bf16 %v120, %v119
    %v136 = vpack.c.bf16 %v122, %v121
    %v137 = vpack.c.bf16 %v124, %v123
    %v138 = vpack.c.bf16 %v126, %v125
    %v139 = vpack.c.bf16 %v128, %v127
    %v140 = vpack.c.bf16 %v130, %v129
    %v141 = vpack.c.bf16 %v132, %v131
    %v142 = vpack.c.bf16 %v134, %v133
    %v143 = vld [vmem:[%s1] sm:$0xff]
    %v144 = vld [vmem:[%s1 + $0x8] sm:$0xff]
    %v145 = vld [vmem:[%s1 + $0x10] sm:$0xff]
    %v146 = vld [vmem:[%s1 + $0x18] sm:$0xff]
    %v147 = vld [vmem:[%s1 + $0x20] sm:$0xff]
    %v148 = vld [vmem:[%s1 + $0x28] sm:$0xff]
    %v149 = vld [vmem:[%s1 + $0x30] sm:$0xff]
    %v150 = vld [vmem:[%s1 + $0x38] sm:$0xff]
    %v151 = vld [vmem:[%s1 + $0x40] sm:$0xff]
    %v152 = vld [vmem:[%s1 + $0x48] sm:$0xff]
    %v153 = vld [vmem:[%s1 + $0x50] sm:$0xff]
    %v154 = vld [vmem:[%s1 + $0x58] sm:$0xff]
    %v155 = vld [vmem:[%s1 + $0x60] sm:$0xff]
    %v156 = vld [vmem:[%s1 + $0x68] sm:$0xff]
    %v157 = vld [vmem:[%s1 + $0x70] sm:$0xff]
    %v158 = vld [vmem:[%s1 + $0x78] sm:$0xff]
    %v159 = vld [vmem:[#allocation2] sm:$0xf]
    %v160 = vld [vmem:[#allocation2 + $0x4] sm:$0xf]
    %v161 = vld [vmem:[#allocation2 + $0x8] sm:$0xf]
    %v162 = vld [vmem:[#allocation2 + $0xc] sm:$0xf]
    %v163 = vld [vmem:[#allocation2 + $0x10] sm:$0xf]
    %v164 = vld [vmem:[#allocation2 + $0x14] sm:$0xf]
    %v165 = vld [vmem:[#allocation2 + $0x18] sm:$0xf]
    %v166 = vld [vmem:[#allocation2 + $0x1c] sm:$0xf]
    %v167 = vld [vmem:[%s3] sm:$0x1]
    %v169 = vlaneseq
    %v170 = vshrl.u32 %v169, 7
    %v171 = vsub.s32 0, %v170
    %v172 = vrot.slane %v167, %v171
    %v182 = vunpack.c.l.b16 %v159
    %v183 = vunpack.c.l.b16 %v160
    %v184 = vunpack.c.l.b16 %v161
    %v185 = vunpack.c.l.b16 %v162
    %v186 = vunpack.c.l.b16 %v163
    %v187 = vunpack.c.l.b16 %v164
    %v188 = vunpack.c.l.b16 %v165
    %v189 = vunpack.c.l.b16 %v166
    %v190 = vpack.c.b16 %v183, %v182
    %v191 = vpack.c.b16 %v185, %v184
    %v192 = vpack.c.b16 %v187, %v186
    %v193 = vpack.c.b16 %v189, %v188
    %vm198 = vcmask 523264
    %v200 = vsel %vm198, %v135, 0
    %v203 = vsel %vm198, %v136, 0
    %v206 = vsel %vm198, %v137, 0
    %v209 = vsel %vm198, %v138, 0
    %v212 = vsel %vm198, %v139, 0
    %v215 = vsel %vm198, %v140, 0
    %v218 = vsel %vm198, %v141, 0
    %v221 = vsel %vm198, %v142, 0
    %223 = vmatprep.subr.bf16.mxu0 0
    %224 = vmatpush1.bf16.msra.mxu0 0
    %225 = vmatprep.subr.bf16.mxu0 0
    %226 = vmatpush1.bf16.msra.mxu0 0
    %227 = vmatprep.subr.bf16.mxu0 0
    %228 = vmatpush1.bf16.msra.mxu0 0
    %229 = vmatprep.subr.bf16.mxu0 0
    %230 = vmatpush1.bf16.msra.mxu0 0
    %231 = vmatprep.subr.bf16.mxu0 0
    %232 = vmatpush1.bf16.msra.mxu0 %v193
    %233 = vmatprep.subr.bf16.mxu0 0
    %234 = vmatpush1.bf16.msra.mxu0 %v192
    %235 = vmatprep.subr.bf16.mxu0 0
    %236 = vmatpush1.bf16.msra.mxu0 %v191
    %237 = vmatprep.subr.bf16.mxu0 0
    %238 = vmatpush1.bf16.msra.mxu0 %v190
    %239 = vmatprep.subr.bf16.mxu0 0
    %240 = vmatpush2.bf16.msra.mxu0 0
    %241 = vmatprep.subr.bf16.mxu0 0
    %242 = vmatpush2.bf16.msra.mxu0 0
    %243 = vmatprep.subr.bf16.mxu0 0
    %244 = vmatpush2.bf16.msra.mxu0 0
    %245 = vmatprep.subr.bf16.mxu0 0
    %246 = vmatpush2.bf16.msra.mxu0 0
    %247 = vmatprep.subr.bf16.mxu0 0
    %248 = vmatpush2.bf16.msra.mxu0 0
    %249 = vmatprep.subr.bf16.mxu0 0
    %250 = vmatpush2.bf16.msra.mxu0 0
    %251 = vmatprep.subr.bf16.mxu0 0
    %252 = vmatpush2.bf16.msra.mxu0 0
    %253 = vmatprep.subr.bf16.mxu0 0
    %254 = vmatpush2.bf16.msra.mxu0 0
    %255 = vmatprep.mubr.bf16.mxu0 0
    %256 = vmatmul.mubr.bf16.gmra.mxu0 %v200
    %v257 = vpop.f32.mrf.mxu0
    %v258 = vadd.f32 %v172, %v257
    %v259 = vpop.f32.mrf.mxu0
    %v260 = vpop.f32.mrf.mxu0
    %v261 = vadd.f32 %v172, %v260
    %v262 = vpop.f32.mrf.mxu0
    %263 = vmatprep.mubr.bf16.mxu0 0
    %264 = vmatmul.mubr.bf16.gmra.mxu0 %v203
    %v265 = vpop.f32.mrf.mxu0
    %v266 = vadd.f32 %v172, %v265
    %v267 = vpop.f32.mrf.mxu0
    %v268 = vpop.f32.mrf.mxu0
    %v269 = vadd.f32 %v172, %v268
    %v270 = vpop.f32.mrf.mxu0
    %271 = vmatprep.mubr.bf16.mxu0 0
    %272 = vmatmul.mubr.bf16.gmra.mxu0 %v206
    %v273 = vpop.f32.mrf.mxu0
    %v274 = vadd.f32 %v172, %v273
    %v275 = vpop.f32.mrf.mxu0
    %v276 = vpop.f32.mrf.mxu0
    %v277 = vadd.f32 %v172, %v276
    %v278 = vpop.f32.mrf.mxu0
    %279 = vmatprep.mubr.bf16.mxu0 0
    %280 = vmatmul.mubr.bf16.gmra.mxu0 %v209
    %v281 = vpop.f32.mrf.mxu0
    %v282 = vadd.f32 %v172, %v281
    %v283 = vpop.f32.mrf.mxu0
    %v284 = vpop.f32.mrf.mxu0
    %v285 = vadd.f32 %v172, %v284
    %v286 = vpop.f32.mrf.mxu0
    %287 = vmatprep.mubr.bf16.mxu0 0
    %288 = vmatmul.mubr.bf16.gmra.mxu0 %v212
    %v289 = vpop.f32.mrf.mxu0
    %v290 = vadd.f32 %v172, %v289
    %v291 = vpop.f32.mrf.mxu0
    %v292 = vpop.f32.mrf.mxu0
    %v293 = vadd.f32 %v172, %v292
    %v294 = vpop.f32.mrf.mxu0
    %295 = vmatprep.mubr.bf16.mxu0 0
    %296 = vmatmul.mubr.bf16.gmra.mxu0 %v215
    %v297 = vpop.f32.mrf.mxu0
    %v298 = vadd.f32 %v172, %v297
    %v299 = vpop.f32.mrf.mxu0
    %v300 = vpop.f32.mrf.mxu0
    %v301 = vadd.f32 %v172, %v300
    %v302 = vpop.f32.mrf.mxu0
    %303 = vmatprep.mubr.bf16.mxu0 0
    %304 = vmatmul.mubr.bf16.gmra.mxu0 %v218
    %v305 = vpop.f32.mrf.mxu0
    %v306 = vadd.f32 %v172, %v305
    %v307 = vpop.f32.mrf.mxu0
    %v308 = vpop.f32.mrf.mxu0
    %v309 = vadd.f32 %v172, %v308
    %v310 = vpop.f32.mrf.mxu0
    %311 = vmatprep.mubr.bf16.mxu0 0
    %312 = vmatmul.mubr.bf16.gmra.mxu0 %v221
    %v313 = vpop.f32.mrf.mxu0
    %v314 = vadd.f32 %v172, %v313
    %v315 = vpop.f32.mrf.mxu0
    %v316 = vpop.f32.mrf.mxu0
    %v317 = vadd.f32 %v172, %v316
    %v318 = vpop.f32.mrf.mxu0
    %319 = vdwg.mxu0
    %v320 = vmax.f32 %v258, 0.0
    %v321 = vmax.f32 %v261, 0.0
    %v322 = vmax.f32 %v266, 0.0
    %v323 = vmax.f32 %v269, 0.0
    %v324 = vmax.f32 %v274, 0.0
    %v325 = vmax.f32 %v277, 0.0
    %v326 = vmax.f32 %v282, 0.0
    %v327 = vmax.f32 %v285, 0.0
    %v328 = vmax.f32 %v290, 0.0
    %v329 = vmax.f32 %v293, 0.0
    %v330 = vmax.f32 %v298, 0.0
    %v331 = vmax.f32 %v301, 0.0
    %v332 = vmax.f32 %v306, 0.0
    %v333 = vmax.f32 %v309, 0.0
    %v334 = vmax.f32 %v314, 0.0
    %v335 = vmax.f32 %v317, 0.0
    %v336 = vpack.c.bf16 %v321, %v320
    %v337 = vpack.c.bf16 %v323, %v322
    %v338 = vpack.c.bf16 %v325, %v324
    %v339 = vpack.c.bf16 %v327, %v326
    %v340 = vpack.c.bf16 %v329, %v328
    %v341 = vpack.c.bf16 %v331, %v330
    %v342 = vpack.c.bf16 %v333, %v332
    %v343 = vpack.c.bf16 %v335, %v334
    %v344 = vld [vmem:[#allocation5] sm:$0xf]
    %v345 = vld [vmem:[#allocation5 + $0x4] sm:$0xf]
    %v346 = vld [vmem:[#allocation5 + $0x8] sm:$0xf]
    %v347 = vld [vmem:[#allocation5 + $0xc] sm:$0xf]
    %v348 = vld [vmem:[#allocation5 + $0x10] sm:$0xf]
    %v349 = vld [vmem:[#allocation5 + $0x14] sm:$0xf]
    %v350 = vld [vmem:[#allocation5 + $0x18] sm:$0xf]
    %v351 = vld [vmem:[#allocation5 + $0x1c] sm:$0xf]
    %v352 = vld [vmem:[%s5] sm:$0x1]
    %v354 = vlaneseq
    %v355 = vshrl.u32 %v354, 7
    %v356 = vsub.s32 0, %v355
    %v357 = vrot.slane %v352, %v356
    %v367 = vunpack.c.l.b16 %v344
    %v368 = vunpack.c.l.b16 %v345
    %v369 = vunpack.c.l.b16 %v346
    %v370 = vunpack.c.l.b16 %v347
    %v371 = vunpack.c.l.b16 %v348
    %v372 = vunpack.c.l.b16 %v349
    %v373 = vunpack.c.l.b16 %v350
    %v374 = vunpack.c.l.b16 %v351
    %v375 = vpack.c.b16 %v368, %v367
    %v376 = vpack.c.b16 %v370, %v369
    %v377 = vpack.c.b16 %v372, %v371
    %v378 = vpack.c.b16 %v374, %v373
    %v384 = vsel %vm198, %v336, 0
    %v387 = vsel %vm198, %v337, 0
    %v390 = vsel %vm198, %v338, 0
    %v393 = vsel %vm198, %v339, 0
    %v396 = vsel %vm198, %v340, 0
    %v399 = vsel %vm198, %v341, 0
    %v402 = vsel %vm198, %v342, 0
    %v405 = vsel %vm198, %v343, 0
    %407 = vmatprep.subr.bf16.mxu0 0
    %408 = vmatpush1.bf16.msra.mxu0 0
    %409 = vmatprep.subr.bf16.mxu0 0
    %410 = vmatpush1.bf16.msra.mxu0 0
    %411 = vmatprep.subr.bf16.mxu0 0
    %412 = vmatpush1.bf16.msra.mxu0 0
    %413 = vmatprep.subr.bf16.mxu0 0
    %414 = vmatpush1.bf16.msra.mxu0 0
    %415 = vmatprep.subr.bf16.mxu0 0
    %416 = vmatpush1.bf16.msra.mxu0 %v378
    %417 = vmatprep.subr.bf16.mxu0 0
    %418 = vmatpush1.bf16.msra.mxu0 %v377
    %419 = vmatprep.subr.bf16.mxu0 0
    %420 = vmatpush1.bf16.msra.mxu0 %v376
    %421 = vmatprep.subr.bf16.mxu0 0
    %422 = vmatpush1.bf16.msra.mxu0 %v375
    %423 = vmatprep.subr.bf16.mxu0 0
    %424 = vmatpush2.bf16.msra.mxu0 0
    %425 = vmatprep.subr.bf16.mxu0 0
    %426 = vmatpush2.bf16.msra.mxu0 0
    %427 = vmatprep.subr.bf16.mxu0 0
    %428 = vmatpush2.bf16.msra.mxu0 0
    %429 = vmatprep.subr.bf16.mxu0 0
    %430 = vmatpush2.bf16.msra.mxu0 0
    %431 = vmatprep.subr.bf16.mxu0 0
    %432 = vmatpush2.bf16.msra.mxu0 0
    %433 = vmatprep.subr.bf16.mxu0 0
    %434 = vmatpush2.bf16.msra.mxu0 0
    %435 = vmatprep.subr.bf16.mxu0 0
    %436 = vmatpush2.bf16.msra.mxu0 0
    %437 = vmatprep.subr.bf16.mxu0 0
    %438 = vmatpush2.bf16.msra.mxu0 0
    %439 = vmatprep.mubr.bf16.mxu0 0
    %440 = vmatmul.mubr.bf16.gmra.mxu0 %v384
    %v441 = vpop.f32.mrf.mxu0
    %v442 = vadd.f32 %v357, %v441
    %v443 = vpop.f32.mrf.mxu0
    %v444 = vpop.f32.mrf.mxu0
    %v445 = vadd.f32 %v357, %v444
    %v446 = vpop.f32.mrf.mxu0
    %447 = vmatprep.mubr.bf16.mxu0 0
    %448 = vmatmul.mubr.bf16.gmra.mxu0 %v387
    %v449 = vpop.f32.mrf.mxu0
    %v450 = vadd.f32 %v357, %v449
    %v451 = vpop.f32.mrf.mxu0
    %v452 = vpop.f32.mrf.mxu0
    %v453 = vadd.f32 %v357, %v452
    %v454 = vpop.f32.mrf.mxu0
    %455 = vmatprep.mubr.bf16.mxu0 0
    %456 = vmatmul.mubr.bf16.gmra.mxu0 %v390
    %v457 = vpop.f32.mrf.mxu0
    %v458 = vadd.f32 %v357, %v457
    %v459 = vpop.f32.mrf.mxu0
    %v460 = vpop.f32.mrf.mxu0
    %v461 = vadd.f32 %v357, %v460
    %v462 = vpop.f32.mrf.mxu0
    %463 = vmatprep.mubr.bf16.mxu0 0
    %464 = vmatmul.mubr.bf16.gmra.mxu0 %v393
    %v465 = vpop.f32.mrf.mxu0
    %v466 = vadd.f32 %v357, %v465
    %v467 = vpop.f32.mrf.mxu0
    %v468 = vpop.f32.mrf.mxu0
    %v469 = vadd.f32 %v357, %v468
    %v470 = vpop.f32.mrf.mxu0
    %471 = vmatprep.mubr.bf16.mxu0 0
    %472 = vmatmul.mubr.bf16.gmra.mxu0 %v396
    %v473 = vpop.f32.mrf.mxu0
    %v474 = vadd.f32 %v357, %v473
    %v475 = vpop.f32.mrf.mxu0
    %v476 = vpop.f32.mrf.mxu0
    %v477 = vadd.f32 %v357, %v476
    %v478 = vpop.f32.mrf.mxu0
    %479 = vmatprep.mubr.bf16.mxu0 0
    %480 = vmatmul.mubr.bf16.gmra.mxu0 %v399
    %v481 = vpop.f32.mrf.mxu0
    %v482 = vadd.f32 %v357, %v481
    %v483 = vpop.f32.mrf.mxu0
    %v484 = vpop.f32.mrf.mxu0
    %v485 = vadd.f32 %v357, %v484
    %v486 = vpop.f32.mrf.mxu0
    %487 = vmatprep.mubr.bf16.mxu0 0
    %488 = vmatmul.mubr.bf16.gmra.mxu0 %v402
    %v489 = vpop.f32.mrf.mxu0
    %v490 = vadd.f32 %v357, %v489
    %v491 = vpop.f32.mrf.mxu0
    %v492 = vpop.f32.mrf.mxu0
    %v493 = vadd.f32 %v357, %v492
    %v494 = vpop.f32.mrf.mxu0
    %495 = vmatprep.mubr.bf16.mxu0 0
    %496 = vmatmul.mubr.bf16.gmra.mxu0 %v405
    %v497 = vpop.f32.mrf.mxu0
    %v498 = vadd.f32 %v357, %v497
    %v499 = vpop.f32.mrf.mxu0
    %v500 = vpop.f32.mrf.mxu0
    %v501 = vadd.f32 %v357, %v500
    %v502 = vpop.f32.mrf.mxu0
    %503 = vdwg.mxu0
    %v504 = vmax.f32 %v442, 0.0
    %v505 = vmax.f32 %v445, 0.0
    %v506 = vmax.f32 %v450, 0.0
    %v507 = vmax.f32 %v453, 0.0
    %v508 = vmax.f32 %v458, 0.0
    %v509 = vmax.f32 %v461, 0.0
    %v510 = vmax.f32 %v466, 0.0
    %v511 = vmax.f32 %v469, 0.0
    %v512 = vmax.f32 %v474, 0.0
    %v513 = vmax.f32 %v477, 0.0
    %v514 = vmax.f32 %v482, 0.0
    %v515 = vmax.f32 %v485, 0.0
    %v516 = vmax.f32 %v490, 0.0
    %v517 = vmax.f32 %v493, 0.0
    %v518 = vmax.f32 %v498, 0.0
    %v519 = vmax.f32 %v501, 0.0
    %v520 = vpack.c.bf16 %v505, %v504
    %v521 = vpack.c.bf16 %v507, %v506
    %v522 = vpack.c.bf16 %v509, %v508
    %v523 = vpack.c.bf16 %v511, %v510
    %v524 = vpack.c.bf16 %v513, %v512
    %v525 = vpack.c.bf16 %v515, %v514
    %v526 = vpack.c.bf16 %v517, %v516
    %v527 = vpack.c.bf16 %v519, %v518
    %v528 = vld [vmem:[#allocation7] sm:$0xf]
    %v529 = vld [vmem:[#allocation7 + $0x4] sm:$0xf]
    %v530 = vld [vmem:[#allocation7 + $0x8] sm:$0xf]
    %v531 = vld [vmem:[#allocation7 + $0xc] sm:$0xf]
    %v532 = vld [vmem:[#allocation7 + $0x10] sm:$0xf]
    %v533 = vld [vmem:[#allocation7 + $0x14] sm:$0xf]
    %v534 = vld [vmem:[#allocation7 + $0x18] sm:$0xf]
    %v535 = vld [vmem:[#allocation7 + $0x1c] sm:$0xf]
    %v544 = vunpack.c.l.b16 %v528
    %v545 = vunpack.c.l.b16 %v529
    %v546 = vunpack.c.l.b16 %v530
    %v547 = vunpack.c.l.b16 %v531
    %v548 = vunpack.c.l.b16 %v532
    %v549 = vunpack.c.l.b16 %v533
    %v550 = vunpack.c.l.b16 %v534
    %v551 = vunpack.c.l.b16 %v535
    %v552 = vpack.c.b16 %v545, %v544
    %v553 = vpack.c.b16 %v547, %v546
    %v554 = vpack.c.b16 %v549, %v548
    %v555 = vpack.c.b16 %v551, %v550
    %v561 = vsel %vm198, %v520, 0
    %v564 = vsel %vm198, %v521, 0
    %v567 = vsel %vm198, %v522, 0
    %v570 = vsel %vm198, %v523, 0
    %v573 = vsel %vm198, %v524, 0
    %v576 = vsel %vm198, %v525, 0
    %v579 = vsel %vm198, %v526, 0
    %v582 = vsel %vm198, %v527, 0
    %584 = vmatprep.subr.bf16.mxu0 0
    %585 = vmatpush1.bf16.msra.mxu0 0
    %586 = vmatprep.subr.bf16.mxu0 0
    %587 = vmatpush1.bf16.msra.mxu0 0
    %588 = vmatprep.subr.bf16.mxu0 0
    %589 = vmatpush1.bf16.msra.mxu0 0
    %590 = vmatprep.subr.bf16.mxu0 0
    %591 = vmatpush1.bf16.msra.mxu0 0
    %592 = vmatprep.subr.bf16.mxu0 0
    %593 = vmatpush1.bf16.msra.mxu0 %v555
    %594 = vmatprep.subr.bf16.mxu0 0
    %595 = vmatpush1.bf16.msra.mxu0 %v554
    %596 = vmatprep.subr.bf16.mxu0 0
    %597 = vmatpush1.bf16.msra.mxu0 %v553
    %598 = vmatprep.subr.bf16.mxu0 0
    %599 = vmatpush1.bf16.msra.mxu0 %v552
    %600 = vmatprep.subr.bf16.mxu0 0
    %601 = vmatpush2.bf16.msra.mxu0 0
    %602 = vmatprep.subr.bf16.mxu0 0
    %603 = vmatpush2.bf16.msra.mxu0 0
    %604 = vmatprep.subr.bf16.mxu0 0
    %605 = vmatpush2.bf16.msra.mxu0 0
    %606 = vmatprep.subr.bf16.mxu0 0
    %607 = vmatpush2.bf16.msra.mxu0 0
    %608 = vmatprep.subr.bf16.mxu0 0
    %609 = vmatpush2.bf16.msra.mxu0 0
    %610 = vmatprep.subr.bf16.mxu0 0
    %611 = vmatpush2.bf16.msra.mxu0 0
    %612 = vmatprep.subr.bf16.mxu0 0
    %613 = vmatpush2.bf16.msra.mxu0 0
    %614 = vmatprep.subr.bf16.mxu0 0
    %615 = vmatpush2.bf16.msra.mxu0 0
    %616 = vmatprep.mubr.bf16.mxu0 0
    %617 = vmatmul.mubr.bf16.gmra.mxu0 %v561
    %v618 = vpop.f32.mrf.mxu0
    %v619 = vadd.f32 0.0, %v618
    %v620 = vpop.f32.mrf.mxu0
    %v621 = vpop.f32.mrf.mxu0
    %v622 = vadd.f32 0.0, %v621
    %v623 = vpop.f32.mrf.mxu0
    %624 = vmatprep.mubr.bf16.mxu0 0
    %625 = vmatmul.mubr.bf16.gmra.mxu0 %v564
    %v626 = vpop.f32.mrf.mxu0
    %v627 = vadd.f32 0.0, %v626
    %v628 = vpop.f32.mrf.mxu0
    %v629 = vpop.f32.mrf.mxu0
    %v630 = vadd.f32 0.0, %v629
    %v631 = vpop.f32.mrf.mxu0
    %632 = vmatprep.mubr.bf16.mxu0 0
    %633 = vmatmul.mubr.bf16.gmra.mxu0 %v567
    %v634 = vpop.f32.mrf.mxu0
    %v635 = vadd.f32 0.0, %v634
    %v636 = vpop.f32.mrf.mxu0
    %v637 = vpop.f32.mrf.mxu0
    %v638 = vadd.f32 0.0, %v637
    %v639 = vpop.f32.mrf.mxu0
    %640 = vmatprep.mubr.bf16.mxu0 0
    %641 = vmatmul.mubr.bf16.gmra.mxu0 %v570
    %v642 = vpop.f32.mrf.mxu0
    %v643 = vadd.f32 0.0, %v642
    %v644 = vpop.f32.mrf.mxu0
    %v645 = vpop.f32.mrf.mxu0
    %v646 = vadd.f32 0.0, %v645
    %v647 = vpop.f32.mrf.mxu0
    %648 = vmatprep.mubr.bf16.mxu0 0
    %649 = vmatmul.mubr.bf16.gmra.mxu0 %v573
    %v650 = vpop.f32.mrf.mxu0
    %v651 = vadd.f32 0.0, %v650
    %v652 = vpop.f32.mrf.mxu0
    %v653 = vpop.f32.mrf.mxu0
    %v654 = vadd.f32 0.0, %v653
    %v655 = vpop.f32.mrf.mxu0
    %656 = vmatprep.mubr.bf16.mxu0 0
    %657 = vmatmul.mubr.bf16.gmra.mxu0 %v576
    %v658 = vpop.f32.mrf.mxu0
    %v659 = vadd.f32 0.0, %v658
    %v660 = vpop.f32.mrf.mxu0
    %v661 = vpop.f32.mrf.mxu0
    %v662 = vadd.f32 0.0, %v661
    %v663 = vpop.f32.mrf.mxu0
    %664 = vmatprep.mubr.bf16.mxu0 0
    %665 = vmatmul.mubr.bf16.gmra.mxu0 %v579
    %v666 = vpop.f32.mrf.mxu0
    %v667 = vadd.f32 0.0, %v666
    %v668 = vpop.f32.mrf.mxu0
    %v669 = vpop.f32.mrf.mxu0
    %v670 = vadd.f32 0.0, %v669
    %v671 = vpop.f32.mrf.mxu0
    %672 = vmatprep.mubr.bf16.mxu0 0
    %673 = vmatmul.mubr.bf16.gmra.mxu0 %v582
    %v674 = vpop.f32.mrf.mxu0
    %v675 = vadd.f32 0.0, %v674
    %v676 = vpop.f32.mrf.mxu0
    %v677 = vpop.f32.mrf.mxu0
    %v678 = vadd.f32 0.0, %v677
    %v679 = vpop.f32.mrf.mxu0
    %680 = vdwg.mxu0
    %v681 = vpack.c.bf16 %v622, %v619
    %v682 = vpack.c.bf16 %v630, %v627
    %v683 = vpack.c.bf16 %v638, %v635
    %v684 = vpack.c.bf16 %v646, %v643
    %v685 = vpack.c.bf16 %v654, %v651
    %v686 = vpack.c.bf16 %v662, %v659
    %v687 = vpack.c.bf16 %v670, %v667
    %v688 = vpack.c.bf16 %v678, %v675
    %v689 = vld [vmem:[%s7] sm:$0x1]
    %v690 = vld [vmem:[%s8] sm:$0xf]
    %v691 = vld [vmem:[%s8 + $0x4] sm:$0xf]
    %v692 = vld [vmem:[%s8 + $0x8] sm:$0xf]
    %v693 = vld [vmem:[%s8 + $0xc] sm:$0xf]
    %v694 = vld [vmem:[%s8 + $0x10] sm:$0xf]
    %v695 = vld [vmem:[%s8 + $0x14] sm:$0xf]
    %v696 = vld [vmem:[%s8 + $0x18] sm:$0xf]
    %v697 = vld [vmem:[%s8 + $0x1c] sm:$0xf]
    %v698 = vld [vmem:[%s8 + $0x20] sm:$0xf]
    %v699 = vld [vmem:[%s8 + $0x24] sm:$0xf]
    %v700 = vld [vmem:[%s8 + $0x28] sm:$0xf]
    %v701 = vld [vmem:[%s8 + $0x2c] sm:$0xf]
    %v702 = vld [vmem:[%s8 + $0x30] sm:$0xf]
    %v703 = vld [vmem:[%s8 + $0x34] sm:$0xf]
    %v704 = vld [vmem:[%s8 + $0x38] sm:$0xf]
    %v705 = vld [vmem:[%s8 + $0x3c] sm:$0xf]
    %v706 = vld [vmem:[%s9] sm:$0x3]
    %v707 = vld [vmem:[%s10] sm:$0x1]
    %708 = vmatprep.subr.bf16.mxu0 0
    %709 = vmatpush1.bf16.xpose.msra.mxu0 %v688
    %710 = vmatprep.subr.bf16.mxu0 0
    %711 = vmatpush1.bf16.xpose.msra.mxu0 %v687
    %712 = vmatprep.subr.bf16.mxu0 0
    %713 = vmatpush1.bf16.xpose.msra.mxu0 %v686
    %714 = vmatprep.subr.bf16.mxu0 0
    %715 = vmatpush1.bf16.xpose.msra.mxu0 %v685
    %716 = vmatprep.subr.bf16.mxu0 0
    %717 = vmatpush1.bf16.xpose.msra.mxu0 %v684
    %718 = vmatprep.subr.bf16.mxu0 0
    %719 = vmatpush1.bf16.xpose.msra.mxu0 %v683
    %720 = vmatprep.subr.bf16.mxu0 0
    %721 = vmatpush1.bf16.xpose.msra.mxu0 %v682
    %722 = vmatprep.subr.bf16.mxu0 0
    %723 = vmatpush1.bf16.xpose.msra.mxu0 %v681
    %724 = vmatprep.subr.bf16.mxu0 0
    %725 = vmatpush2.bf16.xpose.msra.mxu0 0
    %726 = vmatprep.subr.bf16.mxu0 0
    %727 = vmatpush2.bf16.xpose.msra.mxu0 0
    %728 = vmatprep.subr.bf16.mxu0 0
    %729 = vmatpush2.bf16.xpose.msra.mxu0 0
    %730 = vmatprep.subr.bf16.mxu0 0
    %731 = vmatpush2.bf16.xpose.msra.mxu0 0
    %732 = vmatprep.subr.bf16.mxu0 0
    %733 = vmatpush2.bf16.xpose.msra.mxu0 0
    %734 = vmatprep.subr.bf16.mxu0 0
    %735 = vmatpush2.bf16.xpose.msra.mxu0 0
    %736 = vmatprep.subr.bf16.mxu0 0
    %737 = vmatpush2.bf16.xpose.msra.mxu0 0
    %738 = vmatprep.subr.bf16.mxu0 0
    %739 = vmatpush2.bf16.xpose.msra.mxu0 0
    %740 = vmatprep.mubr.bf16.mxu0 0
    %741 = vmatmul.mubr.bf16.gmra.mxu0 %v689
    %v742 = vpop.f32.mrf.mxu0
    %v743 = vadd.f32 0.0, %v742
    %v744 = vpop.f32.mrf.mxu0
    %v745 = vpop.f32.mrf.mxu0
    %v746 = vpop.f32.mrf.mxu0
    %747 = vdwg.mxu0
    %v764 = vunpack.c.l.b16 %v690
    %v765 = vunpack.c.l.b16 %v691
    %v766 = vunpack.c.l.b16 %v692
    %v767 = vunpack.c.l.b16 %v693
    %v768 = vunpack.c.l.b16 %v694
    %v769 = vunpack.c.l.b16 %v695
    %v770 = vunpack.c.l.b16 %v696
    %v771 = vunpack.c.l.b16 %v697
    %v772 = vunpack.c.l.b16 %v698
    %v773 = vunpack.c.l.b16 %v699
    %v774 = vunpack.c.l.b16 %v700
    %v775 = vunpack.c.l.b16 %v701
    %v776 = vunpack.c.l.b16 %v702
    %v777 = vunpack.c.l.b16 %v703
    %v778 = vunpack.c.l.b16 %v704
    %v779 = vunpack.c.l.b16 %v705
    %v780 = vpack.c.b16 %v765, %v764
    %v781 = vpack.c.b16 %v767, %v766
    %v782 = vpack.c.b16 %v769, %v768
    %v783 = vpack.c.b16 %v771, %v770
    %v784 = vpack.c.b16 %v773, %v772
    %v785 = vpack.c.b16 %v775, %v774
    %v786 = vpack.c.b16 %v777, %v776
    %v787 = vpack.c.b16 %v779, %v778
    %796 = vmatprep.subr.bf16.mxu0 0
    %797 = vmatpush1.bf16.msra.mxu0 %v787
    %798 = vmatprep.subr.bf16.mxu0 0
    %799 = vmatpush1.bf16.msra.mxu0 %v786
    %800 = vmatprep.subr.bf16.mxu0 0
    %801 = vmatpush1.bf16.msra.mxu0 %v785
    %802 = vmatprep.subr.bf16.mxu0 0
    %803 = vmatpush1.bf16.msra.mxu0 %v784
    %804 = vmatprep.subr.bf16.mxu0 0
    %805 = vmatpush1.bf16.msra.mxu0 %v783
    %806 = vmatprep.subr.bf16.mxu0 0
    %807 = vmatpush1.bf16.msra.mxu0 %v782
    %808 = vmatprep.subr.bf16.mxu0 0
    %809 = vmatpush1.bf16.msra.mxu0 %v781
    %810 = vmatprep.subr.bf16.mxu0 0
    %811 = vmatpush1.bf16.msra.mxu0 %v780
    %812 = vmatprep.subr.bf16.mxu0 0
    %813 = vmatpush2.bf16.msra.mxu0 0
    %814 = vmatprep.subr.bf16.mxu0 0
    %815 = vmatpush2.bf16.msra.mxu0 0
    %816 = vmatprep.subr.bf16.mxu0 0
    %817 = vmatpush2.bf16.msra.mxu0 0
    %818 = vmatprep.subr.bf16.mxu0 0
    %819 = vmatpush2.bf16.msra.mxu0 0
    %820 = vmatprep.subr.bf16.mxu0 0
    %821 = vmatpush2.bf16.msra.mxu0 0
    %822 = vmatprep.subr.bf16.mxu0 0
    %823 = vmatpush2.bf16.msra.mxu0 0
    %824 = vmatprep.subr.bf16.mxu0 0
    %825 = vmatpush2.bf16.msra.mxu0 0
    %826 = vmatprep.subr.bf16.mxu0 0
    %827 = vmatpush2.bf16.msra.mxu0 0
    %828 = vmatprep.mubr.bf16.mxu0 0
    %829 = vmatmul.mubr.bf16.gmra.mxu0 %v681
    %v830 = vpop.f32.mrf.mxu0
    %v831 = vadd.f32 0.0, %v830
    %v832 = vpop.f32.mrf.mxu0
    %v833 = vpop.f32.mrf.mxu0
    %v834 = vadd.f32 0.0, %v833
    %v835 = vpop.f32.mrf.mxu0
    %836 = vmatprep.mubr.bf16.mxu0 0
    %837 = vmatmul.mubr.bf16.gmra.mxu0 %v682
    %v838 = vpop.f32.mrf.mxu0
    %v839 = vadd.f32 0.0, %v838
    %v840 = vpop.f32.mrf.mxu0
    %v841 = vpop.f32.mrf.mxu0
    %v842 = vadd.f32 0.0, %v841
    %v843 = vpop.f32.mrf.mxu0
    %844 = vmatprep.mubr.bf16.mxu0 0
    %845 = vmatmul.mubr.bf16.gmra.mxu0 %v683
    %v846 = vpop.f32.mrf.mxu0
    %v847 = vadd.f32 0.0, %v846
    %v848 = vpop.f32.mrf.mxu0
    %v849 = vpop.f32.mrf.mxu0
    %v850 = vadd.f32 0.0, %v849
    %v851 = vpop.f32.mrf.mxu0
    %852 = vmatprep.mubr.bf16.mxu0 0
    %853 = vmatmul.mubr.bf16.gmra.mxu0 %v684
    %v854 = vpop.f32.mrf.mxu0
    %v855 = vadd.f32 0.0, %v854
    %v856 = vpop.f32.mrf.mxu0
    %v857 = vpop.f32.mrf.mxu0
    %v858 = vadd.f32 0.0, %v857
    %v859 = vpop.f32.mrf.mxu0
    %860 = vmatprep.mubr.bf16.mxu0 0
    %861 = vmatmul.mubr.bf16.gmra.mxu0 %v685
    %v862 = vpop.f32.mrf.mxu0
    %v863 = vadd.f32 0.0, %v862
    %v864 = vpop.f32.mrf.mxu0
    %v865 = vpop.f32.mrf.mxu0
    %v866 = vadd.f32 0.0, %v865
    %v867 = vpop.f32.mrf.mxu0
    %868 = vmatprep.mubr.bf16.mxu0 0
    %869 = vmatmul.mubr.bf16.gmra.mxu0 %v686
    %v870 = vpop.f32.mrf.mxu0
    %v871 = vadd.f32 0.0, %v870
    %v872 = vpop.f32.mrf.mxu0
    %v873 = vpop.f32.mrf.mxu0
    %v874 = vadd.f32 0.0, %v873
    %v875 = vpop.f32.mrf.mxu0
    %876 = vmatprep.mubr.bf16.mxu0 0
    %877 = vmatmul.mubr.bf16.gmra.mxu0 %v687
    %v878 = vpop.f32.mrf.mxu0
    %v879 = vadd.f32 0.0, %v878
    %v880 = vpop.f32.mrf.mxu0
    %v881 = vpop.f32.mrf.mxu0
    %v882 = vadd.f32 0.0, %v881
    %v883 = vpop.f32.mrf.mxu0
    %884 = vmatprep.mubr.bf16.mxu0 0
    %885 = vmatmul.mubr.bf16.gmra.mxu0 %v688
    %v886 = vpop.f32.mrf.mxu0
    %v887 = vadd.f32 0.0, %v886
    %v888 = vpop.f32.mrf.mxu0
    %v889 = vpop.f32.mrf.mxu0
    %v890 = vadd.f32 0.0, %v889
    %v891 = vpop.f32.mrf.mxu0
    %892 = vdwg.mxu0
    %894 = vset.pattern.permute.xlu0 0
    %895 = vperm.xlu0 %894, %v831
    %v896 = vpop.permute.xlu0 %895
    %899 = vset.pattern.permute.xlu0 0
    %900 = vperm.xlu0 %899, %v834
    %v901 = vpop.permute.xlu0 %900
    %904 = vset.pattern.permute.xlu0 0
    %905 = vperm.xlu0 %904, %v839
    %v906 = vpop.permute.xlu0 %905
    %909 = vset.pattern.permute.xlu0 0
    %910 = vperm.xlu0 %909, %v842
    %v911 = vpop.permute.xlu0 %910
    %914 = vset.pattern.permute.xlu0 0
    %915 = vperm.xlu0 %914, %v847
    %v916 = vpop.permute.xlu0 %915
    %919 = vset.pattern.permute.xlu0 0
    %920 = vperm.xlu0 %919, %v850
    %v921 = vpop.permute.xlu0 %920
    %924 = vset.pattern.permute.xlu0 0
    %925 = vperm.xlu0 %924, %v855
    %v926 = vpop.permute.xlu0 %925
    %929 = vset.pattern.permute.xlu0 0
    %930 = vperm.xlu0 %929, %v858
    %v931 = vpop.permute.xlu0 %930
    %934 = vset.pattern.permute.xlu0 0
    %935 = vperm.xlu0 %934, %v863
    %v936 = vpop.permute.xlu0 %935
    %939 = vset.pattern.permute.xlu0 0
    %940 = vperm.xlu0 %939, %v866
    %v941 = vpop.permute.xlu0 %940
    %944 = vset.pattern.permute.xlu0 0
    %945 = vperm.xlu0 %944, %v871
    %v946 = vpop.permute.xlu0 %945
    %949 = vset.pattern.permute.xlu0 0
    %950 = vperm.xlu0 %949, %v874
    %v951 = vpop.permute.xlu0 %950
    %954 = vset.pattern.permute.xlu0 0
    %955 = vperm.xlu0 %954, %v879
    %v956 = vpop.permute.xlu0 %955
    %959 = vset.pattern.permute.xlu0 0
    %960 = vperm.xlu0 %959, %v882
    %v961 = vpop.permute.xlu0 %960
    %964 = vset.pattern.permute.xlu0 0
    %965 = vperm.xlu0 %964, %v887
    %v966 = vpop.permute.xlu0 %965
    %969 = vset.pattern.permute.xlu0 0
    %970 = vperm.xlu0 %969, %v890
    %v971 = vpop.permute.xlu0 %970
    %v973 = vlaneseq
    %v974 = vshrl.u32 %v973, 7
    %v975 = vsub.s32 0, %v974
    %v976 = vrot.slane %v743, %v975
    %v977 = vadd.f32 %v896, %v976
    %v978 = vadd.f32 %v901, %v976
    %v979 = vadd.f32 %v906, %v976
    %v980 = vadd.f32 %v911, %v976
    %v981 = vadd.f32 %v916, %v976
    %v982 = vadd.f32 %v921, %v976
    %v983 = vadd.f32 %v926, %v976
    %v984 = vadd.f32 %v931, %v976
    %v985 = vadd.f32 %v936, %v976
    %v986 = vadd.f32 %v941, %v976
    %v987 = vadd.f32 %v946, %v976
    %v988 = vadd.f32 %v951, %v976
    %v989 = vadd.f32 %v956, %v976
    %v990 = vadd.f32 %v961, %v976
    %v991 = vadd.f32 %v966, %v976
    %v992 = vadd.f32 %v971, %v976
    %vm993 = vcmp.gt.f32.partialorder %v977, 0.0
    %vm994 = vcmp.gt.f32.partialorder %v978, 0.0
    %vm995 = vcmp.gt.f32.partialorder %v979, 0.0
    %vm996 = vcmp.gt.f32.partialorder %v980, 0.0
    %vm997 = vcmp.gt.f32.partialorder %v981, 0.0
    %vm998 = vcmp.gt.f32.partialorder %v982, 0.0
    %vm999 = vcmp.gt.f32.partialorder %v983, 0.0
    %vm1000 = vcmp.gt.f32.partialorder %v984, 0.0
    %vm1001 = vcmp.gt.f32.partialorder %v985, 0.0
    %vm1002 = vcmp.gt.f32.partialorder %v986, 0.0
    %vm1003 = vcmp.gt.f32.partialorder %v987, 0.0
    %vm1004 = vcmp.gt.f32.partialorder %v988, 0.0
    %vm1005 = vcmp.gt.f32.partialorder %v989, 0.0
    %vm1006 = vcmp.gt.f32.partialorder %v990, 0.0
    %vm1007 = vcmp.gt.f32.partialorder %v991, 0.0
    %vm1008 = vcmp.gt.f32.partialorder %v992, 0.0
    %v1009 = vmul.f32 %v977, 0.2
    %v1010 = vmul.f32 %v978, 0.2
    %v1011 = vmul.f32 %v979, 0.2
    %v1012 = vmul.f32 %v980, 0.2
    %v1013 = vmul.f32 %v981, 0.2
    %v1014 = vmul.f32 %v982, 0.2
    %v1015 = vmul.f32 %v983, 0.2
    %v1016 = vmul.f32 %v984, 0.2
    %v1017 = vmul.f32 %v985, 0.2
    %v1018 = vmul.f32 %v986, 0.2
    %v1019 = vmul.f32 %v987, 0.2
    %v1020 = vmul.f32 %v988, 0.2
    %v1021 = vmul.f32 %v989, 0.2
    %v1022 = vmul.f32 %v990, 0.2
    %v1023 = vmul.f32 %v991, 0.2
    %v1024 = vmul.f32 %v992, 0.2
    %v1025 = vsel %vm993, %v977, %v1009
    %v1026 = vsel %vm994, %v978, %v1010
    %v1027 = vsel %vm995, %v979, %v1011
    %v1028 = vsel %vm996, %v980, %v1012
    %v1029 = vsel %vm997, %v981, %v1013
    %v1030 = vsel %vm998, %v982, %v1014
    %v1031 = vsel %vm999, %v983, %v1015
    %v1032 = vsel %vm1000, %v984, %v1016
    %v1033 = vsel %vm1001, %v985, %v1017
    %v1034 = vsel %vm1002, %v986, %v1018
    %v1035 = vsel %vm1003, %v987, %v1019
    %v1036 = vsel %vm1004, %v988, %v1020
    %v1037 = vsel %vm1005, %v989, %v1021
    %v1038 = vsel %vm1006, %v990, %v1022
    %v1039 = vsel %vm1007, %v991, %v1023
    %v1040 = vsel %vm1008, %v992, %v1024
    %vm1041 = vcmp.gt.f32.partialorder %v143, 0.0
    %vm1042 = vcmp.gt.f32.partialorder %v144, 0.0
    %vm1043 = vcmp.gt.f32.partialorder %v145, 0.0
    %vm1044 = vcmp.gt.f32.partialorder %v146, 0.0
    %vm1045 = vcmp.gt.f32.partialorder %v147, 0.0
    %vm1046 = vcmp.gt.f32.partialorder %v148, 0.0
    %vm1047 = vcmp.gt.f32.partialorder %v149, 0.0
    %vm1048 = vcmp.gt.f32.partialorder %v150, 0.0
    %vm1049 = vcmp.gt.f32.partialorder %v151, 0.0
    %vm1050 = vcmp.gt.f32.partialorder %v152, 0.0
    %vm1051 = vcmp.gt.f32.partialorder %v153, 0.0
    %vm1052 = vcmp.gt.f32.partialorder %v154, 0.0
    %vm1053 = vcmp.gt.f32.partialorder %v155, 0.0
    %vm1054 = vcmp.gt.f32.partialorder %v156, 0.0
    %vm1055 = vcmp.gt.f32.partialorder %v157, 0.0
    %vm1056 = vcmp.gt.f32.partialorder %v158, 0.0
    %v1057 = vsel %vm1041, %v1025, -1e+30
    %v1058 = vsel %vm1042, %v1026, -1e+30
    %v1059 = vsel %vm1043, %v1027, -1e+30
    %v1060 = vsel %vm1044, %v1028, -1e+30
    %v1061 = vsel %vm1045, %v1029, -1e+30
    %v1062 = vsel %vm1046, %v1030, -1e+30
    %v1063 = vsel %vm1047, %v1031, -1e+30
    %v1064 = vsel %vm1048, %v1032, -1e+30
    %v1065 = vsel %vm1049, %v1033, -1e+30
    %v1066 = vsel %vm1050, %v1034, -1e+30
    %v1067 = vsel %vm1051, %v1035, -1e+30
    %v1068 = vsel %vm1052, %v1036, -1e+30
    %v1069 = vsel %vm1053, %v1037, -1e+30
    %v1070 = vsel %vm1054, %v1038, -1e+30
    %v1071 = vsel %vm1055, %v1039, -1e+30
    %v1072 = vsel %vm1056, %v1040, -1e+30
    %1073 = vmax.xlane.f32.xlu0 %v1057
    %v1074 = vpop.xlane.xlu0 %1073
    %1075 = vmax.xlane.f32.xlu0 %v1058
    %v1076 = vpop.xlane.xlu0 %1075
    %1077 = vmax.xlane.f32.xlu0 %v1059
    %v1078 = vpop.xlane.xlu0 %1077
    %1079 = vmax.xlane.f32.xlu0 %v1060
    %v1080 = vpop.xlane.xlu0 %1079
    %1081 = vmax.xlane.f32.xlu0 %v1061
    %v1082 = vpop.xlane.xlu0 %1081
    %1083 = vmax.xlane.f32.xlu0 %v1062
    %v1084 = vpop.xlane.xlu0 %1083
    %1085 = vmax.xlane.f32.xlu0 %v1063
    %v1086 = vpop.xlane.xlu0 %1085
    %1087 = vmax.xlane.f32.xlu0 %v1064
    %v1088 = vpop.xlane.xlu0 %1087
    %1089 = vmax.xlane.f32.xlu0 %v1065
    %v1090 = vpop.xlane.xlu0 %1089
    %1091 = vmax.xlane.f32.xlu0 %v1066
    %v1092 = vpop.xlane.xlu0 %1091
    %1093 = vmax.xlane.f32.xlu0 %v1067
    %v1094 = vpop.xlane.xlu0 %1093
    %1095 = vmax.xlane.f32.xlu0 %v1068
    %v1096 = vpop.xlane.xlu0 %1095
    %1097 = vmax.xlane.f32.xlu0 %v1069
    %v1098 = vpop.xlane.xlu0 %1097
    %1099 = vmax.xlane.f32.xlu0 %v1070
    %v1100 = vpop.xlane.xlu0 %1099
    %1101 = vmax.xlane.f32.xlu0 %v1071
    %v1102 = vpop.xlane.xlu0 %1101
    %1103 = vmax.xlane.f32.xlu0 %v1072
    %v1104 = vpop.xlane.xlu0 %1103
    %v1105 = vsub.f32 %v1057, %v1074
    %v1106 = vsub.f32 %v1058, %v1076
    %v1107 = vsub.f32 %v1059, %v1078
    %v1108 = vsub.f32 %v1060, %v1080
    %v1109 = vsub.f32 %v1061, %v1082
    %v1110 = vsub.f32 %v1062, %v1084
    %v1111 = vsub.f32 %v1063, %v1086
    %v1112 = vsub.f32 %v1064, %v1088
    %v1113 = vsub.f32 %v1065, %v1090
    %v1114 = vsub.f32 %v1066, %v1092
    %v1115 = vsub.f32 %v1067, %v1094
    %v1116 = vsub.f32 %v1068, %v1096
    %v1117 = vsub.f32 %v1069, %v1098
    %v1118 = vsub.f32 %v1070, %v1100
    %v1119 = vsub.f32 %v1071, %v1102
    %v1120 = vsub.f32 %v1072, %v1104
    %v1121 = vmul.f32 %v1105, 1.442695
    %v1122 = vpow.pop %v1121
    %v1123 = vmul.f32 %v1106, 1.442695
    %v1124 = vpow.pop %v1123
    %v1125 = vmul.f32 %v1107, 1.442695
    %v1126 = vpow.pop %v1125
    %v1127 = vmul.f32 %v1108, 1.442695
    %v1128 = vpow.pop %v1127
    %v1129 = vmul.f32 %v1109, 1.442695
    %v1130 = vpow.pop %v1129
    %v1131 = vmul.f32 %v1110, 1.442695
    %v1132 = vpow.pop %v1131
    %v1133 = vmul.f32 %v1111, 1.442695
    %v1134 = vpow.pop %v1133
    %v1135 = vmul.f32 %v1112, 1.442695
    %v1136 = vpow.pop %v1135
    %v1137 = vmul.f32 %v1113, 1.442695
    %v1138 = vpow.pop %v1137
    %v1139 = vmul.f32 %v1114, 1.442695
    %v1140 = vpow.pop %v1139
    %v1141 = vmul.f32 %v1115, 1.442695
    %v1142 = vpow.pop %v1141
    %v1143 = vmul.f32 %v1116, 1.442695
    %v1144 = vpow.pop %v1143
    %v1145 = vmul.f32 %v1117, 1.442695
    %v1146 = vpow.pop %v1145
    %v1147 = vmul.f32 %v1118, 1.442695
    %v1148 = vpow.pop %v1147
    %v1149 = vmul.f32 %v1119, 1.442695
    %v1150 = vpow.pop %v1149
    %v1151 = vmul.f32 %v1120, 1.442695
    %v1152 = vpow.pop %v1151
    %1153 = vadd.xlane.f32.xlu0 %v1122
    %v1154 = vpop.xlane.xlu0 %1153
    %1155 = vadd.xlane.f32.xlu0 %v1124
    %v1156 = vpop.xlane.xlu0 %1155
    %1157 = vadd.xlane.f32.xlu0 %v1126
    %v1158 = vpop.xlane.xlu0 %1157
    %1159 = vadd.xlane.f32.xlu0 %v1128
    %v1160 = vpop.xlane.xlu0 %1159
    %1161 = vadd.xlane.f32.xlu0 %v1130
    %v1162 = vpop.xlane.xlu0 %1161
    %1163 = vadd.xlane.f32.xlu0 %v1132
    %v1164 = vpop.xlane.xlu0 %1163
    %1165 = vadd.xlane.f32.xlu0 %v1134
    %v1166 = vpop.xlane.xlu0 %1165
    %1167 = vadd.xlane.f32.xlu0 %v1136
    %v1168 = vpop.xlane.xlu0 %1167
    %1169 = vadd.xlane.f32.xlu0 %v1138
    %v1170 = vpop.xlane.xlu0 %1169
    %1171 = vadd.xlane.f32.xlu0 %v1140
    %v1172 = vpop.xlane.xlu0 %1171
    %1173 = vadd.xlane.f32.xlu0 %v1142
    %v1174 = vpop.xlane.xlu0 %1173
    %1175 = vadd.xlane.f32.xlu0 %v1144
    %v1176 = vpop.xlane.xlu0 %1175
    %1177 = vadd.xlane.f32.xlu0 %v1146
    %v1178 = vpop.xlane.xlu0 %1177
    %1179 = vadd.xlane.f32.xlu0 %v1148
    %v1180 = vpop.xlane.xlu0 %1179
    %1181 = vadd.xlane.f32.xlu0 %v1150
    %v1182 = vpop.xlane.xlu0 %1181
    %1183 = vadd.xlane.f32.xlu0 %v1152
    %v1184 = vpop.xlane.xlu0 %1183
    %v1185 = vmax.f32 %v1154, 1e-30
    %v1186 = vmax.f32 %v1156, 1e-30
    %v1187 = vmax.f32 %v1158, 1e-30
    %v1188 = vmax.f32 %v1160, 1e-30
    %v1189 = vmax.f32 %v1162, 1e-30
    %v1190 = vmax.f32 %v1164, 1e-30
    %v1191 = vmax.f32 %v1166, 1e-30
    %v1192 = vmax.f32 %v1168, 1e-30
    %v1193 = vmax.f32 %v1170, 1e-30
    %v1194 = vmax.f32 %v1172, 1e-30
    %v1195 = vmax.f32 %v1174, 1e-30
    %v1196 = vmax.f32 %v1176, 1e-30
    %v1197 = vmax.f32 %v1178, 1e-30
    %v1198 = vmax.f32 %v1180, 1e-30
    %v1199 = vmax.f32 %v1182, 1e-30
    %v1200 = vmax.f32 %v1184, 1e-30
    %v1201 = vrcp.pop %v1185
    %v1202 = vrcp.pop %v1186
    %v1203 = vrcp.pop %v1187
    %v1204 = vrcp.pop %v1188
    %v1205 = vrcp.pop %v1189
    %v1206 = vrcp.pop %v1190
    %v1207 = vrcp.pop %v1191
    %v1208 = vrcp.pop %v1192
    %v1209 = vrcp.pop %v1193
    %v1210 = vrcp.pop %v1194
    %v1211 = vrcp.pop %v1195
    %v1212 = vrcp.pop %v1196
    %v1213 = vrcp.pop %v1197
    %v1214 = vrcp.pop %v1198
    %v1215 = vrcp.pop %v1199
    %v1216 = vrcp.pop %v1200
    %v1217 = vmul.f32 %v1122, %v1201
    %v1218 = vmul.f32 %v1124, %v1202
    %v1219 = vmul.f32 %v1126, %v1203
    %v1220 = vmul.f32 %v1128, %v1204
    %v1221 = vmul.f32 %v1130, %v1205
    %v1222 = vmul.f32 %v1132, %v1206
    %v1223 = vmul.f32 %v1134, %v1207
    %v1224 = vmul.f32 %v1136, %v1208
    %v1225 = vmul.f32 %v1138, %v1209
    %v1226 = vmul.f32 %v1140, %v1210
    %v1227 = vmul.f32 %v1142, %v1211
    %v1228 = vmul.f32 %v1144, %v1212
    %v1229 = vmul.f32 %v1146, %v1213
    %v1230 = vmul.f32 %v1148, %v1214
    %v1231 = vmul.f32 %v1150, %v1215
    %v1232 = vmul.f32 %v1152, %v1216
    %v1233 = vpack.c.bf16 %v1218, %v1217
    %v1234 = vpack.c.bf16 %v1220, %v1219
    %v1235 = vpack.c.bf16 %v1222, %v1221
    %v1236 = vpack.c.bf16 %v1224, %v1223
    %v1237 = vpack.c.bf16 %v1226, %v1225
    %v1238 = vpack.c.bf16 %v1228, %v1227
    %v1239 = vpack.c.bf16 %v1230, %v1229
    %v1240 = vpack.c.bf16 %v1232, %v1231
    %1241 = vmatprep.subr.bf16.mxu0 0
    %1242 = vmatpush1.bf16.msra.mxu0 %v688
    %1243 = vmatprep.subr.bf16.mxu0 0
    %1244 = vmatpush1.bf16.msra.mxu0 %v687
    %1245 = vmatprep.subr.bf16.mxu0 0
    %1246 = vmatpush1.bf16.msra.mxu0 %v686
    %1247 = vmatprep.subr.bf16.mxu0 0
    %1248 = vmatpush1.bf16.msra.mxu0 %v685
    %1249 = vmatprep.subr.bf16.mxu0 0
    %1250 = vmatpush1.bf16.msra.mxu0 %v684
    %1251 = vmatprep.subr.bf16.mxu0 0
    %1252 = vmatpush1.bf16.msra.mxu0 %v683
    %1253 = vmatprep.subr.bf16.mxu0 0
    %1254 = vmatpush1.bf16.msra.mxu0 %v682
    %1255 = vmatprep.subr.bf16.mxu0 0
    %1256 = vmatpush1.bf16.msra.mxu0 %v681
    %1257 = vmatprep.subr.bf16.mxu0 0
    %1258 = vmatpush2.bf16.msra.mxu0 0
    %1259 = vmatprep.subr.bf16.mxu0 0
    %1260 = vmatpush2.bf16.msra.mxu0 0
    %1261 = vmatprep.subr.bf16.mxu0 0
    %1262 = vmatpush2.bf16.msra.mxu0 0
    %1263 = vmatprep.subr.bf16.mxu0 0
    %1264 = vmatpush2.bf16.msra.mxu0 0
    %1265 = vmatprep.subr.bf16.mxu0 0
    %1266 = vmatpush2.bf16.msra.mxu0 0
    %1267 = vmatprep.subr.bf16.mxu0 0
    %1268 = vmatpush2.bf16.msra.mxu0 0
    %1269 = vmatprep.subr.bf16.mxu0 0
    %1270 = vmatpush2.bf16.msra.mxu0 0
    %1271 = vmatprep.subr.bf16.mxu0 0
    %1272 = vmatpush2.bf16.msra.mxu0 0
    %1273 = vmatprep.mubr.bf16.mxu0 0
    %1274 = vmatmul.mubr.bf16.gmra.mxu0 %v1233
    %v1275 = vpop.f32.mrf.mxu0
    %v1276 = vadd.f32 0.0, %v1275
    %v1277 = vpop.f32.mrf.mxu0
    %v1278 = vpop.f32.mrf.mxu0
    %v1279 = vadd.f32 0.0, %v1278
    %v1280 = vpop.f32.mrf.mxu0
    %1281 = vmatprep.mubr.bf16.mxu0 0
    %1282 = vmatmul.mubr.bf16.gmra.mxu0 %v1234
    %v1283 = vpop.f32.mrf.mxu0
    %v1284 = vadd.f32 0.0, %v1283
    %v1285 = vpop.f32.mrf.mxu0
    %v1286 = vpop.f32.mrf.mxu0
    %v1287 = vadd.f32 0.0, %v1286
    %v1288 = vpop.f32.mrf.mxu0
    %1289 = vmatprep.mubr.bf16.mxu0 0
    %1290 = vmatmul.mubr.bf16.gmra.mxu0 %v1235
    %v1291 = vpop.f32.mrf.mxu0
    %v1292 = vadd.f32 0.0, %v1291
    %v1293 = vpop.f32.mrf.mxu0
    %v1294 = vpop.f32.mrf.mxu0
    %v1295 = vadd.f32 0.0, %v1294
    %v1296 = vpop.f32.mrf.mxu0
    %1297 = vmatprep.mubr.bf16.mxu0 0
    %1298 = vmatmul.mubr.bf16.gmra.mxu0 %v1236
    %v1299 = vpop.f32.mrf.mxu0
    %v1300 = vadd.f32 0.0, %v1299
    %v1301 = vpop.f32.mrf.mxu0
    %v1302 = vpop.f32.mrf.mxu0
    %v1303 = vadd.f32 0.0, %v1302
    %v1304 = vpop.f32.mrf.mxu0
    %1305 = vmatprep.mubr.bf16.mxu0 0
    %1306 = vmatmul.mubr.bf16.gmra.mxu0 %v1237
    %v1307 = vpop.f32.mrf.mxu0
    %v1308 = vadd.f32 0.0, %v1307
    %v1309 = vpop.f32.mrf.mxu0
    %v1310 = vpop.f32.mrf.mxu0
    %v1311 = vadd.f32 0.0, %v1310
    %v1312 = vpop.f32.mrf.mxu0
    %1313 = vmatprep.mubr.bf16.mxu0 0
    %1314 = vmatmul.mubr.bf16.gmra.mxu0 %v1238
    %v1315 = vpop.f32.mrf.mxu0
    %v1316 = vadd.f32 0.0, %v1315
    %v1317 = vpop.f32.mrf.mxu0
    %v1318 = vpop.f32.mrf.mxu0
    %v1319 = vadd.f32 0.0, %v1318
    %v1320 = vpop.f32.mrf.mxu0
    %1321 = vmatprep.mubr.bf16.mxu0 0
    %1322 = vmatmul.mubr.bf16.gmra.mxu0 %v1239
    %v1323 = vpop.f32.mrf.mxu0
    %v1324 = vadd.f32 0.0, %v1323
    %v1325 = vpop.f32.mrf.mxu0
    %v1326 = vpop.f32.mrf.mxu0
    %v1327 = vadd.f32 0.0, %v1326
    %v1328 = vpop.f32.mrf.mxu0
    %1329 = vmatprep.mubr.bf16.mxu0 0
    %1330 = vmatmul.mubr.bf16.gmra.mxu0 %v1240
    %v1331 = vpop.f32.mrf.mxu0
    %v1332 = vadd.f32 0.0, %v1331
    %v1333 = vpop.f32.mrf.mxu0
    %v1334 = vpop.f32.mrf.mxu0
    %v1335 = vadd.f32 0.0, %v1334
    %v1336 = vpop.f32.mrf.mxu0
    %1337 = vdwg.mxu0
    %v1338 = vlaneseq
    %v1339 = vshrl.u32 %v1338, 7
    %v1340 = vsub.s32 0, %v1339
    %v1341 = vrot.slane %v706, %v1340
    %v1342 = vmul.f32 %v1276, %v1341
    %v1343 = vmul.f32 %v1279, %v1341
    %v1344 = vmul.f32 %v1284, %v1341
    %v1345 = vmul.f32 %v1287, %v1341
    %v1346 = vmul.f32 %v1292, %v1341
    %v1347 = vmul.f32 %v1295, %v1341
    %v1348 = vmul.f32 %v1300, %v1341
    %v1349 = vmul.f32 %v1303, %v1341
    %v1350 = vmul.f32 %v1308, %v1341
    %v1351 = vmul.f32 %v1311, %v1341
    %v1352 = vmul.f32 %v1316, %v1341
    %v1353 = vmul.f32 %v1319, %v1341
    %v1354 = vmul.f32 %v1324, %v1341
    %v1355 = vmul.f32 %v1327, %v1341
    %v1356 = vmul.f32 %v1332, %v1341
    %v1357 = vmul.f32 %v1335, %v1341
    %1358 = vset.pattern.permute.xlu0 1
    %1359 = vperm.xlu0 %1358, %v831
    %v1360 = vpop.permute.xlu0 %1359
    %1362 = vset.pattern.permute.xlu0 1
    %1363 = vperm.xlu0 %1362, %v834
    %v1364 = vpop.permute.xlu0 %1363
    %1366 = vset.pattern.permute.xlu0 1
    %1367 = vperm.xlu0 %1366, %v839
    %v1368 = vpop.permute.xlu0 %1367
    %1370 = vset.pattern.permute.xlu0 1
    %1371 = vperm.xlu0 %1370, %v842
    %v1372 = vpop.permute.xlu0 %1371
    %1374 = vset.pattern.permute.xlu0 1
    %1375 = vperm.xlu0 %1374, %v847
    %v1376 = vpop.permute.xlu0 %1375
    %1378 = vset.pattern.permute.xlu0 1
    %1379 = vperm.xlu0 %1378, %v850
    %v1380 = vpop.permute.xlu0 %1379
    %1382 = vset.pattern.permute.xlu0 1
    %1383 = vperm.xlu0 %1382, %v855
    %v1384 = vpop.permute.xlu0 %1383
    %1386 = vset.pattern.permute.xlu0 1
    %1387 = vperm.xlu0 %1386, %v858
    %v1388 = vpop.permute.xlu0 %1387
    %1390 = vset.pattern.permute.xlu0 1
    %1391 = vperm.xlu0 %1390, %v863
    %v1392 = vpop.permute.xlu0 %1391
    %1394 = vset.pattern.permute.xlu0 1
    %1395 = vperm.xlu0 %1394, %v866
    %v1396 = vpop.permute.xlu0 %1395
    %1398 = vset.pattern.permute.xlu0 1
    %1399 = vperm.xlu0 %1398, %v871
    %v1400 = vpop.permute.xlu0 %1399
    %1402 = vset.pattern.permute.xlu0 1
    %1403 = vperm.xlu0 %1402, %v874
    %v1404 = vpop.permute.xlu0 %1403
    %1406 = vset.pattern.permute.xlu0 1
    %1407 = vperm.xlu0 %1406, %v879
    %v1408 = vpop.permute.xlu0 %1407
    %1410 = vset.pattern.permute.xlu0 1
    %1411 = vperm.xlu0 %1410, %v882
    %v1412 = vpop.permute.xlu0 %1411
    %1414 = vset.pattern.permute.xlu0 1
    %1415 = vperm.xlu0 %1414, %v887
    %v1416 = vpop.permute.xlu0 %1415
    %1418 = vset.pattern.permute.xlu0 1
    %1419 = vperm.xlu0 %1418, %v890
    %v1420 = vpop.permute.xlu0 %1419
    %v1422 = vlaneseq
    %v1423 = vshrl.u32 %v1422, 7
    %v1424 = vsub.s32 1, %v1423
    %v1425 = vrot.slane %v743, %v1424
    %v1426 = vadd.f32 %v1360, %v1425
    %v1427 = vadd.f32 %v1364, %v1425
    %v1428 = vadd.f32 %v1368, %v1425
    %v1429 = vadd.f32 %v1372, %v1425
    %v1430 = vadd.f32 %v1376, %v1425
    %v1431 = vadd.f32 %v1380, %v1425
    %v1432 = vadd.f32 %v1384, %v1425
    %v1433 = vadd.f32 %v1388, %v1425
    %v1434 = vadd.f32 %v1392, %v1425
    %v1435 = vadd.f32 %v1396, %v1425
    %v1436 = vadd.f32 %v1400, %v1425
    %v1437 = vadd.f32 %v1404, %v1425
    %v1438 = vadd.f32 %v1408, %v1425
    %v1439 = vadd.f32 %v1412, %v1425
    %v1440 = vadd.f32 %v1416, %v1425
    %v1441 = vadd.f32 %v1420, %v1425
    %vm1442 = vcmp.gt.f32.partialorder %v1426, 0.0
    %vm1443 = vcmp.gt.f32.partialorder %v1427, 0.0
    %vm1444 = vcmp.gt.f32.partialorder %v1428, 0.0
    %vm1445 = vcmp.gt.f32.partialorder %v1429, 0.0
    %vm1446 = vcmp.gt.f32.partialorder %v1430, 0.0
    %vm1447 = vcmp.gt.f32.partialorder %v1431, 0.0
    %vm1448 = vcmp.gt.f32.partialorder %v1432, 0.0
    %vm1449 = vcmp.gt.f32.partialorder %v1433, 0.0
    %vm1450 = vcmp.gt.f32.partialorder %v1434, 0.0
    %vm1451 = vcmp.gt.f32.partialorder %v1435, 0.0
    %vm1452 = vcmp.gt.f32.partialorder %v1436, 0.0
    %vm1453 = vcmp.gt.f32.partialorder %v1437, 0.0
    %vm1454 = vcmp.gt.f32.partialorder %v1438, 0.0
    %vm1455 = vcmp.gt.f32.partialorder %v1439, 0.0
    %vm1456 = vcmp.gt.f32.partialorder %v1440, 0.0
    %vm1457 = vcmp.gt.f32.partialorder %v1441, 0.0
    %v1458 = vmul.f32 %v1426, 0.2
    %v1459 = vmul.f32 %v1427, 0.2
    %v1460 = vmul.f32 %v1428, 0.2
    %v1461 = vmul.f32 %v1429, 0.2
    %v1462 = vmul.f32 %v1430, 0.2
    %v1463 = vmul.f32 %v1431, 0.2
    %v1464 = vmul.f32 %v1432, 0.2
    %v1465 = vmul.f32 %v1433, 0.2
    %v1466 = vmul.f32 %v1434, 0.2
    %v1467 = vmul.f32 %v1435, 0.2
    %v1468 = vmul.f32 %v1436, 0.2
    %v1469 = vmul.f32 %v1437, 0.2
    %v1470 = vmul.f32 %v1438, 0.2
    %v1471 = vmul.f32 %v1439, 0.2
    %v1472 = vmul.f32 %v1440, 0.2
    %v1473 = vmul.f32 %v1441, 0.2
    %v1474 = vsel %vm1442, %v1426, %v1458
    %v1475 = vsel %vm1443, %v1427, %v1459
    %v1476 = vsel %vm1444, %v1428, %v1460
    %v1477 = vsel %vm1445, %v1429, %v1461
    %v1478 = vsel %vm1446, %v1430, %v1462
    %v1479 = vsel %vm1447, %v1431, %v1463
    %v1480 = vsel %vm1448, %v1432, %v1464
    %v1481 = vsel %vm1449, %v1433, %v1465
    %v1482 = vsel %vm1450, %v1434, %v1466
    %v1483 = vsel %vm1451, %v1435, %v1467
    %v1484 = vsel %vm1452, %v1436, %v1468
    %v1485 = vsel %vm1453, %v1437, %v1469
    %v1486 = vsel %vm1454, %v1438, %v1470
    %v1487 = vsel %vm1455, %v1439, %v1471
    %v1488 = vsel %vm1456, %v1440, %v1472
    %v1489 = vsel %vm1457, %v1441, %v1473
    %v1490 = vsel %vm1041, %v1474, -1e+30
    %v1491 = vsel %vm1042, %v1475, -1e+30
    %v1492 = vsel %vm1043, %v1476, -1e+30
    %v1493 = vsel %vm1044, %v1477, -1e+30
    %v1494 = vsel %vm1045, %v1478, -1e+30
    %v1495 = vsel %vm1046, %v1479, -1e+30
    %v1496 = vsel %vm1047, %v1480, -1e+30
    %v1497 = vsel %vm1048, %v1481, -1e+30
    %v1498 = vsel %vm1049, %v1482, -1e+30
    %v1499 = vsel %vm1050, %v1483, -1e+30
    %v1500 = vsel %vm1051, %v1484, -1e+30
    %v1501 = vsel %vm1052, %v1485, -1e+30
    %v1502 = vsel %vm1053, %v1486, -1e+30
    %v1503 = vsel %vm1054, %v1487, -1e+30
    %v1504 = vsel %vm1055, %v1488, -1e+30
    %v1505 = vsel %vm1056, %v1489, -1e+30
    %1506 = vmax.xlane.f32.xlu0 %v1490
    %v1507 = vpop.xlane.xlu0 %1506
    %1508 = vmax.xlane.f32.xlu0 %v1491
    %v1509 = vpop.xlane.xlu0 %1508
    %1510 = vmax.xlane.f32.xlu0 %v1492
    %v1511 = vpop.xlane.xlu0 %1510
    %1512 = vmax.xlane.f32.xlu0 %v1493
    %v1513 = vpop.xlane.xlu0 %1512
    %1514 = vmax.xlane.f32.xlu0 %v1494
    %v1515 = vpop.xlane.xlu0 %1514
    %1516 = vmax.xlane.f32.xlu0 %v1495
    %v1517 = vpop.xlane.xlu0 %1516
    %1518 = vmax.xlane.f32.xlu0 %v1496
    %v1519 = vpop.xlane.xlu0 %1518
    %1520 = vmax.xlane.f32.xlu0 %v1497
    %v1521 = vpop.xlane.xlu0 %1520
    %1522 = vmax.xlane.f32.xlu0 %v1498
    %v1523 = vpop.xlane.xlu0 %1522
    %1524 = vmax.xlane.f32.xlu0 %v1499
    %v1525 = vpop.xlane.xlu0 %1524
    %1526 = vmax.xlane.f32.xlu0 %v1500
    %v1527 = vpop.xlane.xlu0 %1526
    %1528 = vmax.xlane.f32.xlu0 %v1501
    %v1529 = vpop.xlane.xlu0 %1528
    %1530 = vmax.xlane.f32.xlu0 %v1502
    %v1531 = vpop.xlane.xlu0 %1530
    %1532 = vmax.xlane.f32.xlu0 %v1503
    %v1533 = vpop.xlane.xlu0 %1532
    %1534 = vmax.xlane.f32.xlu0 %v1504
    %v1535 = vpop.xlane.xlu0 %1534
    %1536 = vmax.xlane.f32.xlu0 %v1505
    %v1537 = vpop.xlane.xlu0 %1536
    %v1538 = vsub.f32 %v1490, %v1507
    %v1539 = vsub.f32 %v1491, %v1509
    %v1540 = vsub.f32 %v1492, %v1511
    %v1541 = vsub.f32 %v1493, %v1513
    %v1542 = vsub.f32 %v1494, %v1515
    %v1543 = vsub.f32 %v1495, %v1517
    %v1544 = vsub.f32 %v1496, %v1519
    %v1545 = vsub.f32 %v1497, %v1521
    %v1546 = vsub.f32 %v1498, %v1523
    %v1547 = vsub.f32 %v1499, %v1525
    %v1548 = vsub.f32 %v1500, %v1527
    %v1549 = vsub.f32 %v1501, %v1529
    %v1550 = vsub.f32 %v1502, %v1531
    %v1551 = vsub.f32 %v1503, %v1533
    %v1552 = vsub.f32 %v1504, %v1535
    %v1553 = vsub.f32 %v1505, %v1537
    %v1554 = vmul.f32 %v1538, 1.442695
    %v1555 = vpow.pop %v1554
    %v1556 = vmul.f32 %v1539, 1.442695
    %v1557 = vpow.pop %v1556
    %v1558 = vmul.f32 %v1540, 1.442695
    %v1559 = vpow.pop %v1558
    %v1560 = vmul.f32 %v1541, 1.442695
    %v1561 = vpow.pop %v1560
    %v1562 = vmul.f32 %v1542, 1.442695
    %v1563 = vpow.pop %v1562
    %v1564 = vmul.f32 %v1543, 1.442695
    %v1565 = vpow.pop %v1564
    %v1566 = vmul.f32 %v1544, 1.442695
    %v1567 = vpow.pop %v1566
    %v1568 = vmul.f32 %v1545, 1.442695
    %v1569 = vpow.pop %v1568
    %v1570 = vmul.f32 %v1546, 1.442695
    %v1571 = vpow.pop %v1570
    %v1572 = vmul.f32 %v1547, 1.442695
    %v1573 = vpow.pop %v1572
    %v1574 = vmul.f32 %v1548, 1.442695
    %v1575 = vpow.pop %v1574
    %v1576 = vmul.f32 %v1549, 1.442695
    %v1577 = vpow.pop %v1576
    %v1578 = vmul.f32 %v1550, 1.442695
    %v1579 = vpow.pop %v1578
    %v1580 = vmul.f32 %v1551, 1.442695
    %v1581 = vpow.pop %v1580
    %v1582 = vmul.f32 %v1552, 1.442695
    %v1583 = vpow.pop %v1582
    %v1584 = vmul.f32 %v1553, 1.442695
    %v1585 = vpow.pop %v1584
    %1586 = vadd.xlane.f32.xlu0 %v1555
    %v1587 = vpop.xlane.xlu0 %1586
    %1588 = vadd.xlane.f32.xlu0 %v1557
    %v1589 = vpop.xlane.xlu0 %1588
    %1590 = vadd.xlane.f32.xlu0 %v1559
    %v1591 = vpop.xlane.xlu0 %1590
    %1592 = vadd.xlane.f32.xlu0 %v1561
    %v1593 = vpop.xlane.xlu0 %1592
    %1594 = vadd.xlane.f32.xlu0 %v1563
    %v1595 = vpop.xlane.xlu0 %1594
    %1596 = vadd.xlane.f32.xlu0 %v1565
    %v1597 = vpop.xlane.xlu0 %1596
    %1598 = vadd.xlane.f32.xlu0 %v1567
    %v1599 = vpop.xlane.xlu0 %1598
    %1600 = vadd.xlane.f32.xlu0 %v1569
    %v1601 = vpop.xlane.xlu0 %1600
    %1602 = vadd.xlane.f32.xlu0 %v1571
    %v1603 = vpop.xlane.xlu0 %1602
    %1604 = vadd.xlane.f32.xlu0 %v1573
    %v1605 = vpop.xlane.xlu0 %1604
    %1606 = vadd.xlane.f32.xlu0 %v1575
    %v1607 = vpop.xlane.xlu0 %1606
    %1608 = vadd.xlane.f32.xlu0 %v1577
    %v1609 = vpop.xlane.xlu0 %1608
    %1610 = vadd.xlane.f32.xlu0 %v1579
    %v1611 = vpop.xlane.xlu0 %1610
    %1612 = vadd.xlane.f32.xlu0 %v1581
    %v1613 = vpop.xlane.xlu0 %1612
    %1614 = vadd.xlane.f32.xlu0 %v1583
    %v1615 = vpop.xlane.xlu0 %1614
    %1616 = vadd.xlane.f32.xlu0 %v1585
    %v1617 = vpop.xlane.xlu0 %1616
    %v1618 = vmax.f32 %v1587, 1e-30
    %v1619 = vmax.f32 %v1589, 1e-30
    %v1620 = vmax.f32 %v1591, 1e-30
    %v1621 = vmax.f32 %v1593, 1e-30
    %v1622 = vmax.f32 %v1595, 1e-30
    %v1623 = vmax.f32 %v1597, 1e-30
    %v1624 = vmax.f32 %v1599, 1e-30
    %v1625 = vmax.f32 %v1601, 1e-30
    %v1626 = vmax.f32 %v1603, 1e-30
    %v1627 = vmax.f32 %v1605, 1e-30
    %v1628 = vmax.f32 %v1607, 1e-30
    %v1629 = vmax.f32 %v1609, 1e-30
    %v1630 = vmax.f32 %v1611, 1e-30
    %v1631 = vmax.f32 %v1613, 1e-30
    %v1632 = vmax.f32 %v1615, 1e-30
    %v1633 = vmax.f32 %v1617, 1e-30
    %v1634 = vrcp.pop %v1618
    %v1635 = vrcp.pop %v1619
    %v1636 = vrcp.pop %v1620
    %v1637 = vrcp.pop %v1621
    %v1638 = vrcp.pop %v1622
    %v1639 = vrcp.pop %v1623
    %v1640 = vrcp.pop %v1624
    %v1641 = vrcp.pop %v1625
    %v1642 = vrcp.pop %v1626
    %v1643 = vrcp.pop %v1627
    %v1644 = vrcp.pop %v1628
    %v1645 = vrcp.pop %v1629
    %v1646 = vrcp.pop %v1630
    %v1647 = vrcp.pop %v1631
    %v1648 = vrcp.pop %v1632
    %v1649 = vrcp.pop %v1633
    %v1650 = vmul.f32 %v1555, %v1634
    %v1651 = vmul.f32 %v1557, %v1635
    %v1652 = vmul.f32 %v1559, %v1636
    %v1653 = vmul.f32 %v1561, %v1637
    %v1654 = vmul.f32 %v1563, %v1638
    %v1655 = vmul.f32 %v1565, %v1639
    %v1656 = vmul.f32 %v1567, %v1640
    %v1657 = vmul.f32 %v1569, %v1641
    %v1658 = vmul.f32 %v1571, %v1642
    %v1659 = vmul.f32 %v1573, %v1643
    %v1660 = vmul.f32 %v1575, %v1644
    %v1661 = vmul.f32 %v1577, %v1645
    %v1662 = vmul.f32 %v1579, %v1646
    %v1663 = vmul.f32 %v1581, %v1647
    %v1664 = vmul.f32 %v1583, %v1648
    %v1665 = vmul.f32 %v1585, %v1649
    %v1666 = vpack.c.bf16 %v1651, %v1650
    %v1667 = vpack.c.bf16 %v1653, %v1652
    %v1668 = vpack.c.bf16 %v1655, %v1654
    %v1669 = vpack.c.bf16 %v1657, %v1656
    %v1670 = vpack.c.bf16 %v1659, %v1658
    %v1671 = vpack.c.bf16 %v1661, %v1660
    %v1672 = vpack.c.bf16 %v1663, %v1662
    %v1673 = vpack.c.bf16 %v1665, %v1664
    %1674 = vmatprep.subr.bf16.mxu0 0
    %1675 = vmatpush1.bf16.msra.mxu0 %v688
    %1676 = vmatprep.subr.bf16.mxu0 0
    %1677 = vmatpush1.bf16.msra.mxu0 %v687
    %1678 = vmatprep.subr.bf16.mxu0 0
    %1679 = vmatpush1.bf16.msra.mxu0 %v686
    %1680 = vmatprep.subr.bf16.mxu0 0
    %1681 = vmatpush1.bf16.msra.mxu0 %v685
    %1682 = vmatprep.subr.bf16.mxu0 0
    %1683 = vmatpush1.bf16.msra.mxu0 %v684
    %1684 = vmatprep.subr.bf16.mxu0 0
    %1685 = vmatpush1.bf16.msra.mxu0 %v683
    %1686 = vmatprep.subr.bf16.mxu0 0
    %1687 = vmatpush1.bf16.msra.mxu0 %v682
    %1688 = vmatprep.subr.bf16.mxu0 0
    %1689 = vmatpush1.bf16.msra.mxu0 %v681
    %1690 = vmatprep.subr.bf16.mxu0 0
    %1691 = vmatpush2.bf16.msra.mxu0 0
    %1692 = vmatprep.subr.bf16.mxu0 0
    %1693 = vmatpush2.bf16.msra.mxu0 0
    %1694 = vmatprep.subr.bf16.mxu0 0
    %1695 = vmatpush2.bf16.msra.mxu0 0
    %1696 = vmatprep.subr.bf16.mxu0 0
    %1697 = vmatpush2.bf16.msra.mxu0 0
    %1698 = vmatprep.subr.bf16.mxu0 0
    %1699 = vmatpush2.bf16.msra.mxu0 0
    %1700 = vmatprep.subr.bf16.mxu0 0
    %1701 = vmatpush2.bf16.msra.mxu0 0
    %1702 = vmatprep.subr.bf16.mxu0 0
    %1703 = vmatpush2.bf16.msra.mxu0 0
    %1704 = vmatprep.subr.bf16.mxu0 0
    %1705 = vmatpush2.bf16.msra.mxu0 0
    %1706 = vmatprep.mubr.bf16.mxu0 0
    %1707 = vmatmul.mubr.bf16.gmra.mxu0 %v1666
    %v1708 = vpop.f32.mrf.mxu0
    %v1709 = vadd.f32 0.0, %v1708
    %v1710 = vpop.f32.mrf.mxu0
    %v1711 = vpop.f32.mrf.mxu0
    %v1712 = vadd.f32 0.0, %v1711
    %v1713 = vpop.f32.mrf.mxu0
    %1714 = vmatprep.mubr.bf16.mxu0 0
    %1715 = vmatmul.mubr.bf16.gmra.mxu0 %v1667
    %v1716 = vpop.f32.mrf.mxu0
    %v1717 = vadd.f32 0.0, %v1716
    %v1718 = vpop.f32.mrf.mxu0
    %v1719 = vpop.f32.mrf.mxu0
    %v1720 = vadd.f32 0.0, %v1719
    %v1721 = vpop.f32.mrf.mxu0
    %1722 = vmatprep.mubr.bf16.mxu0 0
    %1723 = vmatmul.mubr.bf16.gmra.mxu0 %v1668
    %v1724 = vpop.f32.mrf.mxu0
    %v1725 = vadd.f32 0.0, %v1724
    %v1726 = vpop.f32.mrf.mxu0
    %v1727 = vpop.f32.mrf.mxu0
    %v1728 = vadd.f32 0.0, %v1727
    %v1729 = vpop.f32.mrf.mxu0
    %1730 = vmatprep.mubr.bf16.mxu0 0
    %1731 = vmatmul.mubr.bf16.gmra.mxu0 %v1669
    %v1732 = vpop.f32.mrf.mxu0
    %v1733 = vadd.f32 0.0, %v1732
    %v1734 = vpop.f32.mrf.mxu0
    %v1735 = vpop.f32.mrf.mxu0
    %v1736 = vadd.f32 0.0, %v1735
    %v1737 = vpop.f32.mrf.mxu0
    %1738 = vmatprep.mubr.bf16.mxu0 0
    %1739 = vmatmul.mubr.bf16.gmra.mxu0 %v1670
    %v1740 = vpop.f32.mrf.mxu0
    %v1741 = vadd.f32 0.0, %v1740
    %v1742 = vpop.f32.mrf.mxu0
    %v1743 = vpop.f32.mrf.mxu0
    %v1744 = vadd.f32 0.0, %v1743
    %v1745 = vpop.f32.mrf.mxu0
    %1746 = vmatprep.mubr.bf16.mxu0 0
    %1747 = vmatmul.mubr.bf16.gmra.mxu0 %v1671
    %v1748 = vpop.f32.mrf.mxu0
    %v1749 = vadd.f32 0.0, %v1748
    %v1750 = vpop.f32.mrf.mxu0
    %v1751 = vpop.f32.mrf.mxu0
    %v1752 = vadd.f32 0.0, %v1751
    %v1753 = vpop.f32.mrf.mxu0
    %1754 = vmatprep.mubr.bf16.mxu0 0
    %1755 = vmatmul.mubr.bf16.gmra.mxu0 %v1672
    %v1756 = vpop.f32.mrf.mxu0
    %v1757 = vadd.f32 0.0, %v1756
    %v1758 = vpop.f32.mrf.mxu0
    %v1759 = vpop.f32.mrf.mxu0
    %v1760 = vadd.f32 0.0, %v1759
    %v1761 = vpop.f32.mrf.mxu0
    %1762 = vmatprep.mubr.bf16.mxu0 0
    %1763 = vmatmul.mubr.bf16.gmra.mxu0 %v1673
    %v1764 = vpop.f32.mrf.mxu0
    %v1765 = vadd.f32 0.0, %v1764
    %v1766 = vpop.f32.mrf.mxu0
    %v1767 = vpop.f32.mrf.mxu0
    %v1768 = vadd.f32 0.0, %v1767
    %v1769 = vpop.f32.mrf.mxu0
    %1770 = vdwg.mxu0
    %v1771 = vlaneseq
    %v1772 = vshrl.u32 %v1771, 7
    %v1773 = vsub.s32 1, %v1772
    %v1774 = vrot.slane %v706, %v1773
    %v1775 = vmul.f32 %v1709, %v1774
    %v1776 = vmul.f32 %v1712, %v1774
    %v1777 = vmul.f32 %v1717, %v1774
    %v1778 = vmul.f32 %v1720, %v1774
    %v1779 = vmul.f32 %v1725, %v1774
    %v1780 = vmul.f32 %v1728, %v1774
    %v1781 = vmul.f32 %v1733, %v1774
    %v1782 = vmul.f32 %v1736, %v1774
    %v1783 = vmul.f32 %v1741, %v1774
    %v1784 = vmul.f32 %v1744, %v1774
    %v1785 = vmul.f32 %v1749, %v1774
    %v1786 = vmul.f32 %v1752, %v1774
    %v1787 = vmul.f32 %v1757, %v1774
    %v1788 = vmul.f32 %v1760, %v1774
    %v1789 = vmul.f32 %v1765, %v1774
    %v1790 = vmul.f32 %v1768, %v1774
    %v1791 = vadd.f32 %v1342, %v1775
    %v1792 = vadd.f32 %v1343, %v1776
    %v1793 = vadd.f32 %v1344, %v1777
    %v1794 = vadd.f32 %v1345, %v1778
    %v1795 = vadd.f32 %v1346, %v1779
    %v1796 = vadd.f32 %v1347, %v1780
    %v1797 = vadd.f32 %v1348, %v1781
    %v1798 = vadd.f32 %v1349, %v1782
    %v1799 = vadd.f32 %v1350, %v1783
    %v1800 = vadd.f32 %v1351, %v1784
    %v1801 = vadd.f32 %v1352, %v1785
    %v1802 = vadd.f32 %v1353, %v1786
    %v1803 = vadd.f32 %v1354, %v1787
    %v1804 = vadd.f32 %v1355, %v1788
    %v1805 = vadd.f32 %v1356, %v1789
    %v1806 = vadd.f32 %v1357, %v1790
    %v1808 = vlaneseq
    %v1809 = vshrl.u32 %v1808, 7
    %v1810 = vsub.s32 0, %v1809
    %v1811 = vrot.slane %v707, %v1810
    %v1813 = vadd.f32 %v1791, %v1811
    %v1814 = vadd.f32 %v1792, %v1811
    %v1815 = vadd.f32 %v1793, %v1811
    %v1816 = vadd.f32 %v1794, %v1811
    %v1817 = vadd.f32 %v1795, %v1811
    %v1818 = vadd.f32 %v1796, %v1811
    %v1819 = vadd.f32 %v1797, %v1811
    %v1820 = vadd.f32 %v1798, %v1811
    %v1821 = vadd.f32 %v1799, %v1811
    %v1822 = vadd.f32 %v1800, %v1811
    %v1823 = vadd.f32 %v1801, %v1811
    %v1824 = vadd.f32 %v1802, %v1811
    %v1825 = vadd.f32 %v1803, %v1811
    %v1826 = vadd.f32 %v1804, %v1811
    %v1827 = vadd.f32 %v1805, %v1811
    %v1828 = vadd.f32 %v1806, %v1811
    %v1829 = vld [vmem:[#allocation8] sm:$0xf]
    %v1830 = vld [vmem:[#allocation8 + $0x4] sm:$0xf]
    %v1831 = vld [vmem:[#allocation8 + $0x8] sm:$0xf]
    %v1832 = vld [vmem:[#allocation8 + $0xc] sm:$0xf]
    %v1833 = vld [vmem:[#allocation8 + $0x10] sm:$0xf]
    %v1834 = vld [vmem:[#allocation8 + $0x14] sm:$0xf]
    %v1835 = vld [vmem:[#allocation8 + $0x18] sm:$0xf]
    %v1836 = vld [vmem:[#allocation8 + $0x1c] sm:$0xf]
    %v1837 = vld [vmem:[%s12] sm:$0x1]
    %v1839 = vlaneseq
    %v1840 = vshrl.u32 %v1839, 7
    %v1841 = vsub.s32 0, %v1840
    %v1842 = vrot.slane %v1837, %v1841
    %v1852 = vunpack.c.l.b16 %v1829
    %v1853 = vunpack.c.l.b16 %v1830
    %v1854 = vunpack.c.l.b16 %v1831
    %v1855 = vunpack.c.l.b16 %v1832
    %v1856 = vunpack.c.l.b16 %v1833
    %v1857 = vunpack.c.l.b16 %v1834
    %v1858 = vunpack.c.l.b16 %v1835
    %v1859 = vunpack.c.l.b16 %v1836
    %v1860 = vpack.c.b16 %v1853, %v1852
    %v1861 = vpack.c.b16 %v1855, %v1854
    %v1862 = vpack.c.b16 %v1857, %v1856
    %v1863 = vpack.c.b16 %v1859, %v1858
    %1868 = vmatprep.subr.bf16.mxu0 0
    %1869 = vmatpush1.bf16.msra.mxu0 0
    %1870 = vmatprep.subr.bf16.mxu0 0
    %1871 = vmatpush1.bf16.msra.mxu0 0
    %1872 = vmatprep.subr.bf16.mxu0 0
    %1873 = vmatpush1.bf16.msra.mxu0 0
    %1874 = vmatprep.subr.bf16.mxu0 0
    %1875 = vmatpush1.bf16.msra.mxu0 0
    %1876 = vmatprep.subr.bf16.mxu0 0
    %1877 = vmatpush1.bf16.msra.mxu0 %v1863
    %1878 = vmatprep.subr.bf16.mxu0 0
    %1879 = vmatpush1.bf16.msra.mxu0 %v1862
    %1880 = vmatprep.subr.bf16.mxu0 0
    %1881 = vmatpush1.bf16.msra.mxu0 %v1861
    %1882 = vmatprep.subr.bf16.mxu0 0
    %1883 = vmatpush1.bf16.msra.mxu0 %v1860
    %1884 = vmatprep.subr.bf16.mxu0 0
    %1885 = vmatpush2.bf16.msra.mxu0 0
    %1886 = vmatprep.subr.bf16.mxu0 0
    %1887 = vmatpush2.bf16.msra.mxu0 0
    %1888 = vmatprep.subr.bf16.mxu0 0
    %1889 = vmatpush2.bf16.msra.mxu0 0
    %1890 = vmatprep.subr.bf16.mxu0 0
    %1891 = vmatpush2.bf16.msra.mxu0 0
    %1892 = vmatprep.subr.bf16.mxu0 0
    %1893 = vmatpush2.bf16.msra.mxu0 0
    %1894 = vmatprep.subr.bf16.mxu0 0
    %1895 = vmatpush2.bf16.msra.mxu0 0
    %1896 = vmatprep.subr.bf16.mxu0 0
    %1897 = vmatpush2.bf16.msra.mxu0 0
    %1898 = vmatprep.subr.bf16.mxu0 0
    %1899 = vmatpush2.bf16.msra.mxu0 0
    %1900 = vmatprep.mubr.bf16.mxu0 0
    %1901 = vmatmul.mubr.bf16.gmra.mxu0 %v561
    %v1902 = vpop.f32.mrf.mxu0
    %v1903 = vadd.f32 %v1842, %v1902
    %v1904 = vpop.f32.mrf.mxu0
    %v1905 = vpop.f32.mrf.mxu0
    %v1906 = vadd.f32 %v1842, %v1905
    %v1907 = vpop.f32.mrf.mxu0
    %1908 = vmatprep.mubr.bf16.mxu0 0
    %1909 = vmatmul.mubr.bf16.gmra.mxu0 %v564
    %v1910 = vpop.f32.mrf.mxu0
    %v1911 = vadd.f32 %v1842, %v1910
    %v1912 = vpop.f32.mrf.mxu0
    %v1913 = vpop.f32.mrf.mxu0
    %v1914 = vadd.f32 %v1842, %v1913
    %v1915 = vpop.f32.mrf.mxu0
    %1916 = vmatprep.mubr.bf16.mxu0 0
    %1917 = vmatmul.mubr.bf16.gmra.mxu0 %v567
    %v1918 = vpop.f32.mrf.mxu0
    %v1919 = vadd.f32 %v1842, %v1918
    %v1920 = vpop.f32.mrf.mxu0
    %v1921 = vpop.f32.mrf.mxu0
    %v1922 = vadd.f32 %v1842, %v1921
    %v1923 = vpop.f32.mrf.mxu0
    %1924 = vmatprep.mubr.bf16.mxu0 0
    %1925 = vmatmul.mubr.bf16.gmra.mxu0 %v570
    %v1926 = vpop.f32.mrf.mxu0
    %v1927 = vadd.f32 %v1842, %v1926
    %v1928 = vpop.f32.mrf.mxu0
    %v1929 = vpop.f32.mrf.mxu0
    %v1930 = vadd.f32 %v1842, %v1929
    %v1931 = vpop.f32.mrf.mxu0
    %1932 = vmatprep.mubr.bf16.mxu0 0
    %1933 = vmatmul.mubr.bf16.gmra.mxu0 %v573
    %v1934 = vpop.f32.mrf.mxu0
    %v1935 = vadd.f32 %v1842, %v1934
    %v1936 = vpop.f32.mrf.mxu0
    %v1937 = vpop.f32.mrf.mxu0
    %v1938 = vadd.f32 %v1842, %v1937
    %v1939 = vpop.f32.mrf.mxu0
    %1940 = vmatprep.mubr.bf16.mxu0 0
    %1941 = vmatmul.mubr.bf16.gmra.mxu0 %v576
    %v1942 = vpop.f32.mrf.mxu0
    %v1943 = vadd.f32 %v1842, %v1942
    %v1944 = vpop.f32.mrf.mxu0
    %v1945 = vpop.f32.mrf.mxu0
    %v1946 = vadd.f32 %v1842, %v1945
    %v1947 = vpop.f32.mrf.mxu0
    %1948 = vmatprep.mubr.bf16.mxu0 0
    %1949 = vmatmul.mubr.bf16.gmra.mxu0 %v579
    %v1950 = vpop.f32.mrf.mxu0
    %v1951 = vadd.f32 %v1842, %v1950
    %v1952 = vpop.f32.mrf.mxu0
    %v1953 = vpop.f32.mrf.mxu0
    %v1954 = vadd.f32 %v1842, %v1953
    %v1955 = vpop.f32.mrf.mxu0
    %1956 = vmatprep.mubr.bf16.mxu0 0
    %1957 = vmatmul.mubr.bf16.gmra.mxu0 %v582
    %v1958 = vpop.f32.mrf.mxu0
    %v1959 = vadd.f32 %v1842, %v1958
    %v1960 = vpop.f32.mrf.mxu0
    %v1961 = vpop.f32.mrf.mxu0
    %v1962 = vadd.f32 %v1842, %v1961
    %v1963 = vpop.f32.mrf.mxu0
    %1964 = vdwg.mxu0
    %v1965 = vadd.f32 %v1813, %v1903
    %v1966 = vadd.f32 %v1814, %v1906
    %v1967 = vadd.f32 %v1815, %v1911
    %v1968 = vadd.f32 %v1816, %v1914
    %v1969 = vadd.f32 %v1817, %v1919
    %v1970 = vadd.f32 %v1818, %v1922
    %v1971 = vadd.f32 %v1819, %v1927
    %v1972 = vadd.f32 %v1820, %v1930
    %v1973 = vadd.f32 %v1821, %v1935
    %v1974 = vadd.f32 %v1822, %v1938
    %v1975 = vadd.f32 %v1823, %v1943
    %v1976 = vadd.f32 %v1824, %v1946
    %v1977 = vadd.f32 %v1825, %v1951
    %v1978 = vadd.f32 %v1826, %v1954
    %v1979 = vadd.f32 %v1827, %v1959
    %v1980 = vadd.f32 %v1828, %v1962
    %v1981 = vmax.f32 %v1965, 0.0
    %v1982 = vmax.f32 %v1966, 0.0
    %v1983 = vmax.f32 %v1967, 0.0
    %v1984 = vmax.f32 %v1968, 0.0
    %v1985 = vmax.f32 %v1969, 0.0
    %v1986 = vmax.f32 %v1970, 0.0
    %v1987 = vmax.f32 %v1971, 0.0
    %v1988 = vmax.f32 %v1972, 0.0
    %v1989 = vmax.f32 %v1973, 0.0
    %v1990 = vmax.f32 %v1974, 0.0
    %v1991 = vmax.f32 %v1975, 0.0
    %v1992 = vmax.f32 %v1976, 0.0
    %v1993 = vmax.f32 %v1977, 0.0
    %v1994 = vmax.f32 %v1978, 0.0
    %v1995 = vmax.f32 %v1979, 0.0
    %v1996 = vmax.f32 %v1980, 0.0
    %v1997 = vpack.c.bf16 %v1982, %v1981
    %v1998 = vpack.c.bf16 %v1984, %v1983
    %v1999 = vpack.c.bf16 %v1986, %v1985
    %v2000 = vpack.c.bf16 %v1988, %v1987
    %v2001 = vpack.c.bf16 %v1990, %v1989
    %v2002 = vpack.c.bf16 %v1992, %v1991
    %v2003 = vpack.c.bf16 %v1994, %v1993
    %v2004 = vpack.c.bf16 %v1996, %v1995
    %v2005 = vld [vmem:[%s13] sm:$0xf]
    %v2006 = vld [vmem:[%s13 + $0x4] sm:$0xf]
    %v2007 = vld [vmem:[%s13 + $0x8] sm:$0xf]
    %v2008 = vld [vmem:[%s13 + $0xc] sm:$0xf]
    %v2009 = vld [vmem:[%s13 + $0x10] sm:$0xf]
    %v2010 = vld [vmem:[%s13 + $0x14] sm:$0xf]
    %v2011 = vld [vmem:[%s13 + $0x18] sm:$0xf]
    %v2012 = vld [vmem:[%s13 + $0x1c] sm:$0xf]
    %v2013 = vld [vmem:[%s13 + $0x20] sm:$0xf]
    %v2014 = vld [vmem:[%s13 + $0x24] sm:$0xf]
    %v2015 = vld [vmem:[%s13 + $0x28] sm:$0xf]
    %v2016 = vld [vmem:[%s13 + $0x2c] sm:$0xf]
    %v2017 = vld [vmem:[%s13 + $0x30] sm:$0xf]
    %v2018 = vld [vmem:[%s13 + $0x34] sm:$0xf]
    %v2019 = vld [vmem:[%s13 + $0x38] sm:$0xf]
    %v2020 = vld [vmem:[%s13 + $0x3c] sm:$0xf]
    %v2037 = vunpack.c.l.b16 %v2005
    %v2038 = vunpack.c.l.b16 %v2006
    %v2039 = vunpack.c.l.b16 %v2007
    %v2040 = vunpack.c.l.b16 %v2008
    %v2041 = vunpack.c.l.b16 %v2009
    %v2042 = vunpack.c.l.b16 %v2010
    %v2043 = vunpack.c.l.b16 %v2011
    %v2044 = vunpack.c.l.b16 %v2012
    %v2045 = vunpack.c.l.b16 %v2013
    %v2046 = vunpack.c.l.b16 %v2014
    %v2047 = vunpack.c.l.b16 %v2015
    %v2048 = vunpack.c.l.b16 %v2016
    %v2049 = vunpack.c.l.b16 %v2017
    %v2050 = vunpack.c.l.b16 %v2018
    %v2051 = vunpack.c.l.b16 %v2019
    %v2052 = vunpack.c.l.b16 %v2020
    %v2053 = vpack.c.b16 %v2038, %v2037
    %v2054 = vpack.c.b16 %v2040, %v2039
    %v2055 = vpack.c.b16 %v2042, %v2041
    %v2056 = vpack.c.b16 %v2044, %v2043
    %v2057 = vpack.c.b16 %v2046, %v2045
    %v2058 = vpack.c.b16 %v2048, %v2047
    %v2059 = vpack.c.b16 %v2050, %v2049
    %v2060 = vpack.c.b16 %v2052, %v2051
    %2069 = vmatprep.subr.bf16.mxu0 0
    %2070 = vmatpush1.bf16.msra.mxu0 %v2060
    %2071 = vmatprep.subr.bf16.mxu0 0
    %2072 = vmatpush1.bf16.msra.mxu0 %v2059
    %2073 = vmatprep.subr.bf16.mxu0 0
    %2074 = vmatpush1.bf16.msra.mxu0 %v2058
    %2075 = vmatprep.subr.bf16.mxu0 0
    %2076 = vmatpush1.bf16.msra.mxu0 %v2057
    %2077 = vmatprep.subr.bf16.mxu0 0
    %2078 = vmatpush1.bf16.msra.mxu0 %v2056
    %2079 = vmatprep.subr.bf16.mxu0 0
    %2080 = vmatpush1.bf16.msra.mxu0 %v2055
    %2081 = vmatprep.subr.bf16.mxu0 0
    %2082 = vmatpush1.bf16.msra.mxu0 %v2054
    %2083 = vmatprep.subr.bf16.mxu0 0
    %2084 = vmatpush1.bf16.msra.mxu0 %v2053
    %2085 = vmatprep.subr.bf16.mxu0 0
    %2086 = vmatpush2.bf16.msra.mxu0 0
    %2087 = vmatprep.subr.bf16.mxu0 0
    %2088 = vmatpush2.bf16.msra.mxu0 0
    %2089 = vmatprep.subr.bf16.mxu0 0
    %2090 = vmatpush2.bf16.msra.mxu0 0
    %2091 = vmatprep.subr.bf16.mxu0 0
    %2092 = vmatpush2.bf16.msra.mxu0 0
    %2093 = vmatprep.subr.bf16.mxu0 0
    %2094 = vmatpush2.bf16.msra.mxu0 0
    %2095 = vmatprep.subr.bf16.mxu0 0
    %2096 = vmatpush2.bf16.msra.mxu0 0
    %2097 = vmatprep.subr.bf16.mxu0 0
    %2098 = vmatpush2.bf16.msra.mxu0 0
    %2099 = vmatprep.subr.bf16.mxu0 0
    %2100 = vmatpush2.bf16.msra.mxu0 0
    %2101 = vmatprep.mubr.bf16.mxu0 0
    %2102 = vmatmul.mubr.bf16.gmra.mxu0 %v1997
    %v2103 = vpop.f32.mrf.mxu0
    %v2104 = vadd.f32 0.0, %v2103
    %v2105 = vpop.f32.mrf.mxu0
    %v2106 = vpop.f32.mrf.mxu0
    %v2107 = vadd.f32 0.0, %v2106
    %v2108 = vpop.f32.mrf.mxu0
    %2109 = vmatprep.mubr.bf16.mxu0 0
    %2110 = vmatmul.mubr.bf16.gmra.mxu0 %v1998
    %v2111 = vpop.f32.mrf.mxu0
    %v2112 = vadd.f32 0.0, %v2111
    %v2113 = vpop.f32.mrf.mxu0
    %v2114 = vpop.f32.mrf.mxu0
    %v2115 = vadd.f32 0.0, %v2114
    %v2116 = vpop.f32.mrf.mxu0
    %2117 = vmatprep.mubr.bf16.mxu0 0
    %2118 = vmatmul.mubr.bf16.gmra.mxu0 %v1999
    %v2119 = vpop.f32.mrf.mxu0
    %v2120 = vadd.f32 0.0, %v2119
    %v2121 = vpop.f32.mrf.mxu0
    %v2122 = vpop.f32.mrf.mxu0
    %v2123 = vadd.f32 0.0, %v2122
    %v2124 = vpop.f32.mrf.mxu0
    %2125 = vmatprep.mubr.bf16.mxu0 0
    %2126 = vmatmul.mubr.bf16.gmra.mxu0 %v2000
    %v2127 = vpop.f32.mrf.mxu0
    %v2128 = vadd.f32 0.0, %v2127
    %v2129 = vpop.f32.mrf.mxu0
    %v2130 = vpop.f32.mrf.mxu0
    %v2131 = vadd.f32 0.0, %v2130
    %v2132 = vpop.f32.mrf.mxu0
    %2133 = vmatprep.mubr.bf16.mxu0 0
    %2134 = vmatmul.mubr.bf16.gmra.mxu0 %v2001
    %v2135 = vpop.f32.mrf.mxu0
    %v2136 = vadd.f32 0.0, %v2135
    %v2137 = vpop.f32.mrf.mxu0
    %v2138 = vpop.f32.mrf.mxu0
    %v2139 = vadd.f32 0.0, %v2138
    %v2140 = vpop.f32.mrf.mxu0
    %2141 = vmatprep.mubr.bf16.mxu0 0
    %2142 = vmatmul.mubr.bf16.gmra.mxu0 %v2002
    %v2143 = vpop.f32.mrf.mxu0
    %v2144 = vadd.f32 0.0, %v2143
    %v2145 = vpop.f32.mrf.mxu0
    %v2146 = vpop.f32.mrf.mxu0
    %v2147 = vadd.f32 0.0, %v2146
    %v2148 = vpop.f32.mrf.mxu0
    %2149 = vmatprep.mubr.bf16.mxu0 0
    %2150 = vmatmul.mubr.bf16.gmra.mxu0 %v2003
    %v2151 = vpop.f32.mrf.mxu0
    %v2152 = vadd.f32 0.0, %v2151
    %v2153 = vpop.f32.mrf.mxu0
    %v2154 = vpop.f32.mrf.mxu0
    %v2155 = vadd.f32 0.0, %v2154
    %v2156 = vpop.f32.mrf.mxu0
    %2157 = vmatprep.mubr.bf16.mxu0 0
    %2158 = vmatmul.mubr.bf16.gmra.mxu0 %v2004
    %v2159 = vpop.f32.mrf.mxu0
    %v2160 = vadd.f32 0.0, %v2159
    %v2161 = vpop.f32.mrf.mxu0
    %v2162 = vpop.f32.mrf.mxu0
    %v2163 = vadd.f32 0.0, %v2162
    %v2164 = vpop.f32.mrf.mxu0
    %2165 = vdwg.mxu0
    %v2166 = vpack.c.bf16 %v2107, %v2104
    %v2167 = vpack.c.bf16 %v2115, %v2112
    %v2168 = vpack.c.bf16 %v2123, %v2120
    %v2169 = vpack.c.bf16 %v2131, %v2128
    %v2170 = vpack.c.bf16 %v2139, %v2136
    %v2171 = vpack.c.bf16 %v2147, %v2144
    %v2172 = vpack.c.bf16 %v2155, %v2152
    %v2173 = vpack.c.bf16 %v2163, %v2160
    %v2174 = vld [vmem:[%s14] sm:$0x1]
    %v2175 = vld [vmem:[%s15] sm:$0xf]
    %v2176 = vld [vmem:[%s15 + $0x4] sm:$0xf]
    %v2177 = vld [vmem:[%s15 + $0x8] sm:$0xf]
    %v2178 = vld [vmem:[%s15 + $0xc] sm:$0xf]
    %v2179 = vld [vmem:[%s15 + $0x10] sm:$0xf]
    %v2180 = vld [vmem:[%s15 + $0x14] sm:$0xf]
    %v2181 = vld [vmem:[%s15 + $0x18] sm:$0xf]
    %v2182 = vld [vmem:[%s15 + $0x1c] sm:$0xf]
    %v2183 = vld [vmem:[%s15 + $0x20] sm:$0xf]
    %v2184 = vld [vmem:[%s15 + $0x24] sm:$0xf]
    %v2185 = vld [vmem:[%s15 + $0x28] sm:$0xf]
    %v2186 = vld [vmem:[%s15 + $0x2c] sm:$0xf]
    %v2187 = vld [vmem:[%s15 + $0x30] sm:$0xf]
    %v2188 = vld [vmem:[%s15 + $0x34] sm:$0xf]
    %v2189 = vld [vmem:[%s15 + $0x38] sm:$0xf]
    %v2190 = vld [vmem:[%s15 + $0x3c] sm:$0xf]
    %v2191 = vld [vmem:[%s16] sm:$0x1]
    %2192 = vmatprep.subr.bf16.mxu0 0
    %2193 = vmatpush1.bf16.xpose.msra.mxu0 %v2173
    %2194 = vmatprep.subr.bf16.mxu0 0
    %2195 = vmatpush1.bf16.xpose.msra.mxu0 %v2172
    %2196 = vmatprep.subr.bf16.mxu0 0
    %2197 = vmatpush1.bf16.xpose.msra.mxu0 %v2171
    %2198 = vmatprep.subr.bf16.mxu0 0
    %2199 = vmatpush1.bf16.xpose.msra.mxu0 %v2170
    %2200 = vmatprep.subr.bf16.mxu0 0
    %2201 = vmatpush1.bf16.xpose.msra.mxu0 %v2169
    %2202 = vmatprep.subr.bf16.mxu0 0
    %2203 = vmatpush1.bf16.xpose.msra.mxu0 %v2168
    %2204 = vmatprep.subr.bf16.mxu0 0
    %2205 = vmatpush1.bf16.xpose.msra.mxu0 %v2167
    %2206 = vmatprep.subr.bf16.mxu0 0
    %2207 = vmatpush1.bf16.xpose.msra.mxu0 %v2166
    %2208 = vmatprep.subr.bf16.mxu0 0
    %2209 = vmatpush2.bf16.xpose.msra.mxu0 0
    %2210 = vmatprep.subr.bf16.mxu0 0
    %2211 = vmatpush2.bf16.xpose.msra.mxu0 0
    %2212 = vmatprep.subr.bf16.mxu0 0
    %2213 = vmatpush2.bf16.xpose.msra.mxu0 0
    %2214 = vmatprep.subr.bf16.mxu0 0
    %2215 = vmatpush2.bf16.xpose.msra.mxu0 0
    %2216 = vmatprep.subr.bf16.mxu0 0
    %2217 = vmatpush2.bf16.xpose.msra.mxu0 0
    %2218 = vmatprep.subr.bf16.mxu0 0
    %2219 = vmatpush2.bf16.xpose.msra.mxu0 0
    %2220 = vmatprep.subr.bf16.mxu0 0
    %2221 = vmatpush2.bf16.xpose.msra.mxu0 0
    %2222 = vmatprep.subr.bf16.mxu0 0
    %2223 = vmatpush2.bf16.xpose.msra.mxu0 0
    %2224 = vmatprep.mubr.bf16.mxu0 0
    %2225 = vmatmul.mubr.bf16.gmra.mxu0 %v2174
    %v2226 = vpop.f32.mrf.mxu0
    %v2227 = vadd.f32 0.0, %v2226
    %v2228 = vpop.f32.mrf.mxu0
    %v2229 = vpop.f32.mrf.mxu0
    %v2230 = vpop.f32.mrf.mxu0
    %2231 = vdwg.mxu0
    %v2248 = vunpack.c.l.b16 %v2175
    %v2249 = vunpack.c.l.b16 %v2176
    %v2250 = vunpack.c.l.b16 %v2177
    %v2251 = vunpack.c.l.b16 %v2178
    %v2252 = vunpack.c.l.b16 %v2179
    %v2253 = vunpack.c.l.b16 %v2180
    %v2254 = vunpack.c.l.b16 %v2181
    %v2255 = vunpack.c.l.b16 %v2182
    %v2256 = vunpack.c.l.b16 %v2183
    %v2257 = vunpack.c.l.b16 %v2184
    %v2258 = vunpack.c.l.b16 %v2185
    %v2259 = vunpack.c.l.b16 %v2186
    %v2260 = vunpack.c.l.b16 %v2187
    %v2261 = vunpack.c.l.b16 %v2188
    %v2262 = vunpack.c.l.b16 %v2189
    %v2263 = vunpack.c.l.b16 %v2190
    %v2264 = vpack.c.b16 %v2249, %v2248
    %v2265 = vpack.c.b16 %v2251, %v2250
    %v2266 = vpack.c.b16 %v2253, %v2252
    %v2267 = vpack.c.b16 %v2255, %v2254
    %v2268 = vpack.c.b16 %v2257, %v2256
    %v2269 = vpack.c.b16 %v2259, %v2258
    %v2270 = vpack.c.b16 %v2261, %v2260
    %v2271 = vpack.c.b16 %v2263, %v2262
    %2280 = vmatprep.subr.bf16.mxu0 0
    %2281 = vmatpush1.bf16.msra.mxu0 %v2271
    %2282 = vmatprep.subr.bf16.mxu0 0
    %2283 = vmatpush1.bf16.msra.mxu0 %v2270
    %2284 = vmatprep.subr.bf16.mxu0 0
    %2285 = vmatpush1.bf16.msra.mxu0 %v2269
    %2286 = vmatprep.subr.bf16.mxu0 0
    %2287 = vmatpush1.bf16.msra.mxu0 %v2268
    %2288 = vmatprep.subr.bf16.mxu0 0
    %2289 = vmatpush1.bf16.msra.mxu0 %v2267
    %2290 = vmatprep.subr.bf16.mxu0 0
    %2291 = vmatpush1.bf16.msra.mxu0 %v2266
    %2292 = vmatprep.subr.bf16.mxu0 0
    %2293 = vmatpush1.bf16.msra.mxu0 %v2265
    %2294 = vmatprep.subr.bf16.mxu0 0
    %2295 = vmatpush1.bf16.msra.mxu0 %v2264
    %2296 = vmatprep.subr.bf16.mxu0 0
    %2297 = vmatpush2.bf16.msra.mxu0 0
    %2298 = vmatprep.subr.bf16.mxu0 0
    %2299 = vmatpush2.bf16.msra.mxu0 0
    %2300 = vmatprep.subr.bf16.mxu0 0
    %2301 = vmatpush2.bf16.msra.mxu0 0
    %2302 = vmatprep.subr.bf16.mxu0 0
    %2303 = vmatpush2.bf16.msra.mxu0 0
    %2304 = vmatprep.subr.bf16.mxu0 0
    %2305 = vmatpush2.bf16.msra.mxu0 0
    %2306 = vmatprep.subr.bf16.mxu0 0
    %2307 = vmatpush2.bf16.msra.mxu0 0
    %2308 = vmatprep.subr.bf16.mxu0 0
    %2309 = vmatpush2.bf16.msra.mxu0 0
    %2310 = vmatprep.subr.bf16.mxu0 0
    %2311 = vmatpush2.bf16.msra.mxu0 0
    %2312 = vmatprep.mubr.bf16.mxu0 0
    %2313 = vmatmul.mubr.bf16.gmra.mxu0 %v2166
    %v2314 = vpop.f32.mrf.mxu0
    %v2315 = vadd.f32 0.0, %v2314
    %v2316 = vpop.f32.mrf.mxu0
    %v2317 = vpop.f32.mrf.mxu0
    %v2318 = vadd.f32 0.0, %v2317
    %v2319 = vpop.f32.mrf.mxu0
    %2320 = vmatprep.mubr.bf16.mxu0 0
    %2321 = vmatmul.mubr.bf16.gmra.mxu0 %v2167
    %v2322 = vpop.f32.mrf.mxu0
    %v2323 = vadd.f32 0.0, %v2322
    %v2324 = vpop.f32.mrf.mxu0
    %v2325 = vpop.f32.mrf.mxu0
    %v2326 = vadd.f32 0.0, %v2325
    %v2327 = vpop.f32.mrf.mxu0
    %2328 = vmatprep.mubr.bf16.mxu0 0
    %2329 = vmatmul.mubr.bf16.gmra.mxu0 %v2168
    %v2330 = vpop.f32.mrf.mxu0
    %v2331 = vadd.f32 0.0, %v2330
    %v2332 = vpop.f32.mrf.mxu0
    %v2333 = vpop.f32.mrf.mxu0
    %v2334 = vadd.f32 0.0, %v2333
    %v2335 = vpop.f32.mrf.mxu0
    %2336 = vmatprep.mubr.bf16.mxu0 0
    %2337 = vmatmul.mubr.bf16.gmra.mxu0 %v2169
    %v2338 = vpop.f32.mrf.mxu0
    %v2339 = vadd.f32 0.0, %v2338
    %v2340 = vpop.f32.mrf.mxu0
    %v2341 = vpop.f32.mrf.mxu0
    %v2342 = vadd.f32 0.0, %v2341
    %v2343 = vpop.f32.mrf.mxu0
    %2344 = vmatprep.mubr.bf16.mxu0 0
    %2345 = vmatmul.mubr.bf16.gmra.mxu0 %v2170
    %v2346 = vpop.f32.mrf.mxu0
    %v2347 = vadd.f32 0.0, %v2346
    %v2348 = vpop.f32.mrf.mxu0
    %v2349 = vpop.f32.mrf.mxu0
    %v2350 = vadd.f32 0.0, %v2349
    %v2351 = vpop.f32.mrf.mxu0
    %2352 = vmatprep.mubr.bf16.mxu0 0
    %2353 = vmatmul.mubr.bf16.gmra.mxu0 %v2171
    %v2354 = vpop.f32.mrf.mxu0
    %v2355 = vadd.f32 0.0, %v2354
    %v2356 = vpop.f32.mrf.mxu0
    %v2357 = vpop.f32.mrf.mxu0
    %v2358 = vadd.f32 0.0, %v2357
    %v2359 = vpop.f32.mrf.mxu0
    %2360 = vmatprep.mubr.bf16.mxu0 0
    %2361 = vmatmul.mubr.bf16.gmra.mxu0 %v2172
    %v2362 = vpop.f32.mrf.mxu0
    %v2363 = vadd.f32 0.0, %v2362
    %v2364 = vpop.f32.mrf.mxu0
    %v2365 = vpop.f32.mrf.mxu0
    %v2366 = vadd.f32 0.0, %v2365
    %v2367 = vpop.f32.mrf.mxu0
    %2368 = vmatprep.mubr.bf16.mxu0 0
    %2369 = vmatmul.mubr.bf16.gmra.mxu0 %v2173
    %v2370 = vpop.f32.mrf.mxu0
    %v2371 = vadd.f32 0.0, %v2370
    %v2372 = vpop.f32.mrf.mxu0
    %v2373 = vpop.f32.mrf.mxu0
    %v2374 = vadd.f32 0.0, %v2373
    %v2375 = vpop.f32.mrf.mxu0
    %2376 = vdwg.mxu0
    %2378 = vset.pattern.permute.xlu0 0
    %2379 = vperm.xlu0 %2378, %v2315
    %v2380 = vpop.permute.xlu0 %2379
    %2383 = vset.pattern.permute.xlu0 0
    %2384 = vperm.xlu0 %2383, %v2318
    %v2385 = vpop.permute.xlu0 %2384
    %2388 = vset.pattern.permute.xlu0 0
    %2389 = vperm.xlu0 %2388, %v2323
    %v2390 = vpop.permute.xlu0 %2389
    %2393 = vset.pattern.permute.xlu0 0
    %2394 = vperm.xlu0 %2393, %v2326
    %v2395 = vpop.permute.xlu0 %2394
    %2398 = vset.pattern.permute.xlu0 0
    %2399 = vperm.xlu0 %2398, %v2331
    %v2400 = vpop.permute.xlu0 %2399
    %2403 = vset.pattern.permute.xlu0 0
    %2404 = vperm.xlu0 %2403, %v2334
    %v2405 = vpop.permute.xlu0 %2404
    %2408 = vset.pattern.permute.xlu0 0
    %2409 = vperm.xlu0 %2408, %v2339
    %v2410 = vpop.permute.xlu0 %2409
    %2413 = vset.pattern.permute.xlu0 0
    %2414 = vperm.xlu0 %2413, %v2342
    %v2415 = vpop.permute.xlu0 %2414
    %2418 = vset.pattern.permute.xlu0 0
    %2419 = vperm.xlu0 %2418, %v2347
    %v2420 = vpop.permute.xlu0 %2419
    %2423 = vset.pattern.permute.xlu0 0
    %2424 = vperm.xlu0 %2423, %v2350
    %v2425 = vpop.permute.xlu0 %2424
    %2428 = vset.pattern.permute.xlu0 0
    %2429 = vperm.xlu0 %2428, %v2355
    %v2430 = vpop.permute.xlu0 %2429
    %2433 = vset.pattern.permute.xlu0 0
    %2434 = vperm.xlu0 %2433, %v2358
    %v2435 = vpop.permute.xlu0 %2434
    %2438 = vset.pattern.permute.xlu0 0
    %2439 = vperm.xlu0 %2438, %v2363
    %v2440 = vpop.permute.xlu0 %2439
    %2443 = vset.pattern.permute.xlu0 0
    %2444 = vperm.xlu0 %2443, %v2366
    %v2445 = vpop.permute.xlu0 %2444
    %2448 = vset.pattern.permute.xlu0 0
    %2449 = vperm.xlu0 %2448, %v2371
    %v2450 = vpop.permute.xlu0 %2449
    %2453 = vset.pattern.permute.xlu0 0
    %2454 = vperm.xlu0 %2453, %v2374
    %v2455 = vpop.permute.xlu0 %2454
    %v2457 = vlaneseq
    %v2458 = vshrl.u32 %v2457, 7
    %v2459 = vsub.s32 0, %v2458
    %v2460 = vrot.slane %v2227, %v2459
    %v2461 = vadd.f32 %v2380, %v2460
    %v2462 = vadd.f32 %v2385, %v2460
    %v2463 = vadd.f32 %v2390, %v2460
    %v2464 = vadd.f32 %v2395, %v2460
    %v2465 = vadd.f32 %v2400, %v2460
    %v2466 = vadd.f32 %v2405, %v2460
    %v2467 = vadd.f32 %v2410, %v2460
    %v2468 = vadd.f32 %v2415, %v2460
    %v2469 = vadd.f32 %v2420, %v2460
    %v2470 = vadd.f32 %v2425, %v2460
    %v2471 = vadd.f32 %v2430, %v2460
    %v2472 = vadd.f32 %v2435, %v2460
    %v2473 = vadd.f32 %v2440, %v2460
    %v2474 = vadd.f32 %v2445, %v2460
    %v2475 = vadd.f32 %v2450, %v2460
    %v2476 = vadd.f32 %v2455, %v2460
    %vm2477 = vcmp.gt.f32.partialorder %v2461, 0.0
    %vm2478 = vcmp.gt.f32.partialorder %v2462, 0.0
    %vm2479 = vcmp.gt.f32.partialorder %v2463, 0.0
    %vm2480 = vcmp.gt.f32.partialorder %v2464, 0.0
    %vm2481 = vcmp.gt.f32.partialorder %v2465, 0.0
    %vm2482 = vcmp.gt.f32.partialorder %v2466, 0.0
    %vm2483 = vcmp.gt.f32.partialorder %v2467, 0.0
    %vm2484 = vcmp.gt.f32.partialorder %v2468, 0.0
    %vm2485 = vcmp.gt.f32.partialorder %v2469, 0.0
    %vm2486 = vcmp.gt.f32.partialorder %v2470, 0.0
    %vm2487 = vcmp.gt.f32.partialorder %v2471, 0.0
    %vm2488 = vcmp.gt.f32.partialorder %v2472, 0.0
    %vm2489 = vcmp.gt.f32.partialorder %v2473, 0.0
    %vm2490 = vcmp.gt.f32.partialorder %v2474, 0.0
    %vm2491 = vcmp.gt.f32.partialorder %v2475, 0.0
    %vm2492 = vcmp.gt.f32.partialorder %v2476, 0.0
    %v2493 = vmul.f32 %v2461, 0.2
    %v2494 = vmul.f32 %v2462, 0.2
    %v2495 = vmul.f32 %v2463, 0.2
    %v2496 = vmul.f32 %v2464, 0.2
    %v2497 = vmul.f32 %v2465, 0.2
    %v2498 = vmul.f32 %v2466, 0.2
    %v2499 = vmul.f32 %v2467, 0.2
    %v2500 = vmul.f32 %v2468, 0.2
    %v2501 = vmul.f32 %v2469, 0.2
    %v2502 = vmul.f32 %v2470, 0.2
    %v2503 = vmul.f32 %v2471, 0.2
    %v2504 = vmul.f32 %v2472, 0.2
    %v2505 = vmul.f32 %v2473, 0.2
    %v2506 = vmul.f32 %v2474, 0.2
    %v2507 = vmul.f32 %v2475, 0.2
    %v2508 = vmul.f32 %v2476, 0.2
    %v2509 = vsel %vm2477, %v2461, %v2493
    %v2510 = vsel %vm2478, %v2462, %v2494
    %v2511 = vsel %vm2479, %v2463, %v2495
    %v2512 = vsel %vm2480, %v2464, %v2496
    %v2513 = vsel %vm2481, %v2465, %v2497
    %v2514 = vsel %vm2482, %v2466, %v2498
    %v2515 = vsel %vm2483, %v2467, %v2499
    %v2516 = vsel %vm2484, %v2468, %v2500
    %v2517 = vsel %vm2485, %v2469, %v2501
    %v2518 = vsel %vm2486, %v2470, %v2502
    %v2519 = vsel %vm2487, %v2471, %v2503
    %v2520 = vsel %vm2488, %v2472, %v2504
    %v2521 = vsel %vm2489, %v2473, %v2505
    %v2522 = vsel %vm2490, %v2474, %v2506
    %v2523 = vsel %vm2491, %v2475, %v2507
    %v2524 = vsel %vm2492, %v2476, %v2508
    %v2525 = vsel %vm1041, %v2509, -1e+30
    %v2526 = vsel %vm1042, %v2510, -1e+30
    %v2527 = vsel %vm1043, %v2511, -1e+30
    %v2528 = vsel %vm1044, %v2512, -1e+30
    %v2529 = vsel %vm1045, %v2513, -1e+30
    %v2530 = vsel %vm1046, %v2514, -1e+30
    %v2531 = vsel %vm1047, %v2515, -1e+30
    %v2532 = vsel %vm1048, %v2516, -1e+30
    %v2533 = vsel %vm1049, %v2517, -1e+30
    %v2534 = vsel %vm1050, %v2518, -1e+30
    %v2535 = vsel %vm1051, %v2519, -1e+30
    %v2536 = vsel %vm1052, %v2520, -1e+30
    %v2537 = vsel %vm1053, %v2521, -1e+30
    %v2538 = vsel %vm1054, %v2522, -1e+30
    %v2539 = vsel %vm1055, %v2523, -1e+30
    %v2540 = vsel %vm1056, %v2524, -1e+30
    %2541 = vmax.xlane.f32.xlu0 %v2525
    %v2542 = vpop.xlane.xlu0 %2541
    %2543 = vmax.xlane.f32.xlu0 %v2526
    %v2544 = vpop.xlane.xlu0 %2543
    %2545 = vmax.xlane.f32.xlu0 %v2527
    %v2546 = vpop.xlane.xlu0 %2545
    %2547 = vmax.xlane.f32.xlu0 %v2528
    %v2548 = vpop.xlane.xlu0 %2547
    %2549 = vmax.xlane.f32.xlu0 %v2529
    %v2550 = vpop.xlane.xlu0 %2549
    %2551 = vmax.xlane.f32.xlu0 %v2530
    %v2552 = vpop.xlane.xlu0 %2551
    %2553 = vmax.xlane.f32.xlu0 %v2531
    %v2554 = vpop.xlane.xlu0 %2553
    %2555 = vmax.xlane.f32.xlu0 %v2532
    %v2556 = vpop.xlane.xlu0 %2555
    %2557 = vmax.xlane.f32.xlu0 %v2533
    %v2558 = vpop.xlane.xlu0 %2557
    %2559 = vmax.xlane.f32.xlu0 %v2534
    %v2560 = vpop.xlane.xlu0 %2559
    %2561 = vmax.xlane.f32.xlu0 %v2535
    %v2562 = vpop.xlane.xlu0 %2561
    %2563 = vmax.xlane.f32.xlu0 %v2536
    %v2564 = vpop.xlane.xlu0 %2563
    %2565 = vmax.xlane.f32.xlu0 %v2537
    %v2566 = vpop.xlane.xlu0 %2565
    %2567 = vmax.xlane.f32.xlu0 %v2538
    %v2568 = vpop.xlane.xlu0 %2567
    %2569 = vmax.xlane.f32.xlu0 %v2539
    %v2570 = vpop.xlane.xlu0 %2569
    %2571 = vmax.xlane.f32.xlu0 %v2540
    %v2572 = vpop.xlane.xlu0 %2571
    %v2573 = vsub.f32 %v2525, %v2542
    %v2574 = vsub.f32 %v2526, %v2544
    %v2575 = vsub.f32 %v2527, %v2546
    %v2576 = vsub.f32 %v2528, %v2548
    %v2577 = vsub.f32 %v2529, %v2550
    %v2578 = vsub.f32 %v2530, %v2552
    %v2579 = vsub.f32 %v2531, %v2554
    %v2580 = vsub.f32 %v2532, %v2556
    %v2581 = vsub.f32 %v2533, %v2558
    %v2582 = vsub.f32 %v2534, %v2560
    %v2583 = vsub.f32 %v2535, %v2562
    %v2584 = vsub.f32 %v2536, %v2564
    %v2585 = vsub.f32 %v2537, %v2566
    %v2586 = vsub.f32 %v2538, %v2568
    %v2587 = vsub.f32 %v2539, %v2570
    %v2588 = vsub.f32 %v2540, %v2572
    %v2589 = vmul.f32 %v2573, 1.442695
    %v2590 = vpow.pop %v2589
    %v2591 = vmul.f32 %v2574, 1.442695
    %v2592 = vpow.pop %v2591
    %v2593 = vmul.f32 %v2575, 1.442695
    %v2594 = vpow.pop %v2593
    %v2595 = vmul.f32 %v2576, 1.442695
    %v2596 = vpow.pop %v2595
    %v2597 = vmul.f32 %v2577, 1.442695
    %v2598 = vpow.pop %v2597
    %v2599 = vmul.f32 %v2578, 1.442695
    %v2600 = vpow.pop %v2599
    %v2601 = vmul.f32 %v2579, 1.442695
    %v2602 = vpow.pop %v2601
    %v2603 = vmul.f32 %v2580, 1.442695
    %v2604 = vpow.pop %v2603
    %v2605 = vmul.f32 %v2581, 1.442695
    %v2606 = vpow.pop %v2605
    %v2607 = vmul.f32 %v2582, 1.442695
    %v2608 = vpow.pop %v2607
    %v2609 = vmul.f32 %v2583, 1.442695
    %v2610 = vpow.pop %v2609
    %v2611 = vmul.f32 %v2584, 1.442695
    %v2612 = vpow.pop %v2611
    %v2613 = vmul.f32 %v2585, 1.442695
    %v2614 = vpow.pop %v2613
    %v2615 = vmul.f32 %v2586, 1.442695
    %v2616 = vpow.pop %v2615
    %v2617 = vmul.f32 %v2587, 1.442695
    %v2618 = vpow.pop %v2617
    %v2619 = vmul.f32 %v2588, 1.442695
    %v2620 = vpow.pop %v2619
    %2621 = vadd.xlane.f32.xlu0 %v2590
    %v2622 = vpop.xlane.xlu0 %2621
    %2623 = vadd.xlane.f32.xlu0 %v2592
    %v2624 = vpop.xlane.xlu0 %2623
    %2625 = vadd.xlane.f32.xlu0 %v2594
    %v2626 = vpop.xlane.xlu0 %2625
    %2627 = vadd.xlane.f32.xlu0 %v2596
    %v2628 = vpop.xlane.xlu0 %2627
    %2629 = vadd.xlane.f32.xlu0 %v2598
    %v2630 = vpop.xlane.xlu0 %2629
    %2631 = vadd.xlane.f32.xlu0 %v2600
    %v2632 = vpop.xlane.xlu0 %2631
    %2633 = vadd.xlane.f32.xlu0 %v2602
    %v2634 = vpop.xlane.xlu0 %2633
    %2635 = vadd.xlane.f32.xlu0 %v2604
    %v2636 = vpop.xlane.xlu0 %2635
    %2637 = vadd.xlane.f32.xlu0 %v2606
    %v2638 = vpop.xlane.xlu0 %2637
    %2639 = vadd.xlane.f32.xlu0 %v2608
    %v2640 = vpop.xlane.xlu0 %2639
    %2641 = vadd.xlane.f32.xlu0 %v2610
    %v2642 = vpop.xlane.xlu0 %2641
    %2643 = vadd.xlane.f32.xlu0 %v2612
    %v2644 = vpop.xlane.xlu0 %2643
    %2645 = vadd.xlane.f32.xlu0 %v2614
    %v2646 = vpop.xlane.xlu0 %2645
    %2647 = vadd.xlane.f32.xlu0 %v2616
    %v2648 = vpop.xlane.xlu0 %2647
    %2649 = vadd.xlane.f32.xlu0 %v2618
    %v2650 = vpop.xlane.xlu0 %2649
    %2651 = vadd.xlane.f32.xlu0 %v2620
    %v2652 = vpop.xlane.xlu0 %2651
    %v2653 = vmax.f32 %v2622, 1e-30
    %v2654 = vmax.f32 %v2624, 1e-30
    %v2655 = vmax.f32 %v2626, 1e-30
    %v2656 = vmax.f32 %v2628, 1e-30
    %v2657 = vmax.f32 %v2630, 1e-30
    %v2658 = vmax.f32 %v2632, 1e-30
    %v2659 = vmax.f32 %v2634, 1e-30
    %v2660 = vmax.f32 %v2636, 1e-30
    %v2661 = vmax.f32 %v2638, 1e-30
    %v2662 = vmax.f32 %v2640, 1e-30
    %v2663 = vmax.f32 %v2642, 1e-30
    %v2664 = vmax.f32 %v2644, 1e-30
    %v2665 = vmax.f32 %v2646, 1e-30
    %v2666 = vmax.f32 %v2648, 1e-30
    %v2667 = vmax.f32 %v2650, 1e-30
    %v2668 = vmax.f32 %v2652, 1e-30
    %v2669 = vrcp.pop %v2653
    %v2670 = vrcp.pop %v2654
    %v2671 = vrcp.pop %v2655
    %v2672 = vrcp.pop %v2656
    %v2673 = vrcp.pop %v2657
    %v2674 = vrcp.pop %v2658
    %v2675 = vrcp.pop %v2659
    %v2676 = vrcp.pop %v2660
    %v2677 = vrcp.pop %v2661
    %v2678 = vrcp.pop %v2662
    %v2679 = vrcp.pop %v2663
    %v2680 = vrcp.pop %v2664
    %v2681 = vrcp.pop %v2665
    %v2682 = vrcp.pop %v2666
    %v2683 = vrcp.pop %v2667
    %v2684 = vrcp.pop %v2668
    %v2685 = vmul.f32 %v2590, %v2669
    %v2686 = vmul.f32 %v2592, %v2670
    %v2687 = vmul.f32 %v2594, %v2671
    %v2688 = vmul.f32 %v2596, %v2672
    %v2689 = vmul.f32 %v2598, %v2673
    %v2690 = vmul.f32 %v2600, %v2674
    %v2691 = vmul.f32 %v2602, %v2675
    %v2692 = vmul.f32 %v2604, %v2676
    %v2693 = vmul.f32 %v2606, %v2677
    %v2694 = vmul.f32 %v2608, %v2678
    %v2695 = vmul.f32 %v2610, %v2679
    %v2696 = vmul.f32 %v2612, %v2680
    %v2697 = vmul.f32 %v2614, %v2681
    %v2698 = vmul.f32 %v2616, %v2682
    %v2699 = vmul.f32 %v2618, %v2683
    %v2700 = vmul.f32 %v2620, %v2684
    %v2701 = vpack.c.bf16 %v2686, %v2685
    %v2702 = vpack.c.bf16 %v2688, %v2687
    %v2703 = vpack.c.bf16 %v2690, %v2689
    %v2704 = vpack.c.bf16 %v2692, %v2691
    %v2705 = vpack.c.bf16 %v2694, %v2693
    %v2706 = vpack.c.bf16 %v2696, %v2695
    %v2707 = vpack.c.bf16 %v2698, %v2697
    %v2708 = vpack.c.bf16 %v2700, %v2699
    %v2710 = vlaneseq
    %v2711 = vshrl.u32 %v2710, 7
    %v2712 = vsub.s32 0, %v2711
    %v2713 = vrot.slane %v2191, %v2712
    %2715 = vmatprep.subr.bf16.mxu0 0
    %2716 = vmatpush1.bf16.msra.mxu0 %v2173
    %2717 = vmatprep.subr.bf16.mxu0 0
    %2718 = vmatpush1.bf16.msra.mxu0 %v2172
    %2719 = vmatprep.subr.bf16.mxu0 0
    %2720 = vmatpush1.bf16.msra.mxu0 %v2171
    %2721 = vmatprep.subr.bf16.mxu0 0
    %2722 = vmatpush1.bf16.msra.mxu0 %v2170
    %2723 = vmatprep.subr.bf16.mxu0 0
    %2724 = vmatpush1.bf16.msra.mxu0 %v2169
    %2725 = vmatprep.subr.bf16.mxu0 0
    %2726 = vmatpush1.bf16.msra.mxu0 %v2168
    %2727 = vmatprep.subr.bf16.mxu0 0
    %2728 = vmatpush1.bf16.msra.mxu0 %v2167
    %2729 = vmatprep.subr.bf16.mxu0 0
    %2730 = vmatpush1.bf16.msra.mxu0 %v2166
    %2731 = vmatprep.subr.bf16.mxu0 0
    %2732 = vmatpush2.bf16.msra.mxu0 0
    %2733 = vmatprep.subr.bf16.mxu0 0
    %2734 = vmatpush2.bf16.msra.mxu0 0
    %2735 = vmatprep.subr.bf16.mxu0 0
    %2736 = vmatpush2.bf16.msra.mxu0 0
    %2737 = vmatprep.subr.bf16.mxu0 0
    %2738 = vmatpush2.bf16.msra.mxu0 0
    %2739 = vmatprep.subr.bf16.mxu0 0
    %2740 = vmatpush2.bf16.msra.mxu0 0
    %2741 = vmatprep.subr.bf16.mxu0 0
    %2742 = vmatpush2.bf16.msra.mxu0 0
    %2743 = vmatprep.subr.bf16.mxu0 0
    %2744 = vmatpush2.bf16.msra.mxu0 0
    %2745 = vmatprep.subr.bf16.mxu0 0
    %2746 = vmatpush2.bf16.msra.mxu0 0
    %2747 = vmatprep.mubr.bf16.mxu0 0
    %2748 = vmatmul.mubr.bf16.gmra.mxu0 %v2701
    %v2749 = vpop.f32.mrf.mxu0
    %v2750 = vadd.f32 %v2713, %v2749
    %v2751 = vpop.f32.mrf.mxu0
    %v2752 = vpop.f32.mrf.mxu0
    %v2753 = vadd.f32 %v2713, %v2752
    %v2754 = vpop.f32.mrf.mxu0
    %2755 = vmatprep.mubr.bf16.mxu0 0
    %2756 = vmatmul.mubr.bf16.gmra.mxu0 %v2702
    %v2757 = vpop.f32.mrf.mxu0
    %v2758 = vadd.f32 %v2713, %v2757
    %v2759 = vpop.f32.mrf.mxu0
    %v2760 = vpop.f32.mrf.mxu0
    %v2761 = vadd.f32 %v2713, %v2760
    %v2762 = vpop.f32.mrf.mxu0
    %2763 = vmatprep.mubr.bf16.mxu0 0
    %2764 = vmatmul.mubr.bf16.gmra.mxu0 %v2703
    %v2765 = vpop.f32.mrf.mxu0
    %v2766 = vadd.f32 %v2713, %v2765
    %v2767 = vpop.f32.mrf.mxu0
    %v2768 = vpop.f32.mrf.mxu0
    %v2769 = vadd.f32 %v2713, %v2768
    %v2770 = vpop.f32.mrf.mxu0
    %2771 = vmatprep.mubr.bf16.mxu0 0
    %2772 = vmatmul.mubr.bf16.gmra.mxu0 %v2704
    %v2773 = vpop.f32.mrf.mxu0
    %v2774 = vadd.f32 %v2713, %v2773
    %v2775 = vpop.f32.mrf.mxu0
    %v2776 = vpop.f32.mrf.mxu0
    %v2777 = vadd.f32 %v2713, %v2776
    %v2778 = vpop.f32.mrf.mxu0
    %2779 = vmatprep.mubr.bf16.mxu0 0
    %2780 = vmatmul.mubr.bf16.gmra.mxu0 %v2705
    %v2781 = vpop.f32.mrf.mxu0
    %v2782 = vadd.f32 %v2713, %v2781
    %v2783 = vpop.f32.mrf.mxu0
    %v2784 = vpop.f32.mrf.mxu0
    %v2785 = vadd.f32 %v2713, %v2784
    %v2786 = vpop.f32.mrf.mxu0
    %2787 = vmatprep.mubr.bf16.mxu0 0
    %2788 = vmatmul.mubr.bf16.gmra.mxu0 %v2706
    %v2789 = vpop.f32.mrf.mxu0
    %v2790 = vadd.f32 %v2713, %v2789
    %v2791 = vpop.f32.mrf.mxu0
    %v2792 = vpop.f32.mrf.mxu0
    %v2793 = vadd.f32 %v2713, %v2792
    %v2794 = vpop.f32.mrf.mxu0
    %2795 = vmatprep.mubr.bf16.mxu0 0
    %2796 = vmatmul.mubr.bf16.gmra.mxu0 %v2707
    %v2797 = vpop.f32.mrf.mxu0
    %v2798 = vadd.f32 %v2713, %v2797
    %v2799 = vpop.f32.mrf.mxu0
    %v2800 = vpop.f32.mrf.mxu0
    %v2801 = vadd.f32 %v2713, %v2800
    %v2802 = vpop.f32.mrf.mxu0
    %2803 = vmatprep.mubr.bf16.mxu0 0
    %2804 = vmatmul.mubr.bf16.gmra.mxu0 %v2708
    %v2805 = vpop.f32.mrf.mxu0
    %v2806 = vadd.f32 %v2713, %v2805
    %v2807 = vpop.f32.mrf.mxu0
    %v2808 = vpop.f32.mrf.mxu0
    %v2809 = vadd.f32 %v2713, %v2808
    %v2810 = vpop.f32.mrf.mxu0
    %2811 = vdwg.mxu0
    %v2812 = vld [vmem:[%s17] sm:$0xf]
    %v2813 = vld [vmem:[%s17 + $0x4] sm:$0xf]
    %v2814 = vld [vmem:[%s17 + $0x8] sm:$0xf]
    %v2815 = vld [vmem:[%s17 + $0xc] sm:$0xf]
    %v2816 = vld [vmem:[%s17 + $0x10] sm:$0xf]
    %v2817 = vld [vmem:[%s17 + $0x14] sm:$0xf]
    %v2818 = vld [vmem:[%s17 + $0x18] sm:$0xf]
    %v2819 = vld [vmem:[%s17 + $0x1c] sm:$0xf]
    %v2820 = vld [vmem:[%s17 + $0x20] sm:$0xf]
    %v2821 = vld [vmem:[%s17 + $0x24] sm:$0xf]
    %v2822 = vld [vmem:[%s17 + $0x28] sm:$0xf]
    %v2823 = vld [vmem:[%s17 + $0x2c] sm:$0xf]
    %v2824 = vld [vmem:[%s17 + $0x30] sm:$0xf]
    %v2825 = vld [vmem:[%s17 + $0x34] sm:$0xf]
    %v2826 = vld [vmem:[%s17 + $0x38] sm:$0xf]
    %v2827 = vld [vmem:[%s17 + $0x3c] sm:$0xf]
    %v2828 = vld [vmem:[%s18] sm:$0x1]
    %v2830 = vlaneseq
    %v2831 = vshrl.u32 %v2830, 7
    %v2832 = vsub.s32 0, %v2831
    %v2833 = vrot.slane %v2828, %v2832
    %v2851 = vunpack.c.l.b16 %v2812
    %v2852 = vunpack.c.l.b16 %v2813
    %v2853 = vunpack.c.l.b16 %v2814
    %v2854 = vunpack.c.l.b16 %v2815
    %v2855 = vunpack.c.l.b16 %v2816
    %v2856 = vunpack.c.l.b16 %v2817
    %v2857 = vunpack.c.l.b16 %v2818
    %v2858 = vunpack.c.l.b16 %v2819
    %v2859 = vunpack.c.l.b16 %v2820
    %v2860 = vunpack.c.l.b16 %v2821
    %v2861 = vunpack.c.l.b16 %v2822
    %v2862 = vunpack.c.l.b16 %v2823
    %v2863 = vunpack.c.l.b16 %v2824
    %v2864 = vunpack.c.l.b16 %v2825
    %v2865 = vunpack.c.l.b16 %v2826
    %v2866 = vunpack.c.l.b16 %v2827
    %v2867 = vpack.c.b16 %v2852, %v2851
    %v2868 = vpack.c.b16 %v2854, %v2853
    %v2869 = vpack.c.b16 %v2856, %v2855
    %v2870 = vpack.c.b16 %v2858, %v2857
    %v2871 = vpack.c.b16 %v2860, %v2859
    %v2872 = vpack.c.b16 %v2862, %v2861
    %v2873 = vpack.c.b16 %v2864, %v2863
    %v2874 = vpack.c.b16 %v2866, %v2865
    %2883 = vmatprep.subr.bf16.mxu0 0
    %2884 = vmatpush1.bf16.msra.mxu0 %v2874
    %2885 = vmatprep.subr.bf16.mxu0 0
    %2886 = vmatpush1.bf16.msra.mxu0 %v2873
    %2887 = vmatprep.subr.bf16.mxu0 0
    %2888 = vmatpush1.bf16.msra.mxu0 %v2872
    %2889 = vmatprep.subr.bf16.mxu0 0
    %2890 = vmatpush1.bf16.msra.mxu0 %v2871
    %2891 = vmatprep.subr.bf16.mxu0 0
    %2892 = vmatpush1.bf16.msra.mxu0 %v2870
    %2893 = vmatprep.subr.bf16.mxu0 0
    %2894 = vmatpush1.bf16.msra.mxu0 %v2869
    %2895 = vmatprep.subr.bf16.mxu0 0
    %2896 = vmatpush1.bf16.msra.mxu0 %v2868
    %2897 = vmatprep.subr.bf16.mxu0 0
    %2898 = vmatpush1.bf16.msra.mxu0 %v2867
    %2899 = vmatprep.subr.bf16.mxu0 0
    %2900 = vmatpush2.bf16.msra.mxu0 0
    %2901 = vmatprep.subr.bf16.mxu0 0
    %2902 = vmatpush2.bf16.msra.mxu0 0
    %2903 = vmatprep.subr.bf16.mxu0 0
    %2904 = vmatpush2.bf16.msra.mxu0 0
    %2905 = vmatprep.subr.bf16.mxu0 0
    %2906 = vmatpush2.bf16.msra.mxu0 0
    %2907 = vmatprep.subr.bf16.mxu0 0
    %2908 = vmatpush2.bf16.msra.mxu0 0
    %2909 = vmatprep.subr.bf16.mxu0 0
    %2910 = vmatpush2.bf16.msra.mxu0 0
    %2911 = vmatprep.subr.bf16.mxu0 0
    %2912 = vmatpush2.bf16.msra.mxu0 0
    %2913 = vmatprep.subr.bf16.mxu0 0
    %2914 = vmatpush2.bf16.msra.mxu0 0
    %2915 = vmatprep.mubr.bf16.mxu0 0
    %2916 = vmatmul.mubr.bf16.gmra.mxu0 %v1997
    %v2917 = vpop.f32.mrf.mxu0
    %v2918 = vadd.f32 %v2833, %v2917
    %v2919 = vpop.f32.mrf.mxu0
    %v2920 = vpop.f32.mrf.mxu0
    %v2921 = vadd.f32 %v2833, %v2920
    %v2922 = vpop.f32.mrf.mxu0
    %2923 = vmatprep.mubr.bf16.mxu0 0
    %2924 = vmatmul.mubr.bf16.gmra.mxu0 %v1998
    %v2925 = vpop.f32.mrf.mxu0
    %v2926 = vadd.f32 %v2833, %v2925
    %v2927 = vpop.f32.mrf.mxu0
    %v2928 = vpop.f32.mrf.mxu0
    %v2929 = vadd.f32 %v2833, %v2928
    %v2930 = vpop.f32.mrf.mxu0
    %2931 = vmatprep.mubr.bf16.mxu0 0
    %2932 = vmatmul.mubr.bf16.gmra.mxu0 %v1999
    %v2933 = vpop.f32.mrf.mxu0
    %v2934 = vadd.f32 %v2833, %v2933
    %v2935 = vpop.f32.mrf.mxu0
    %v2936 = vpop.f32.mrf.mxu0
    %v2937 = vadd.f32 %v2833, %v2936
    %v2938 = vpop.f32.mrf.mxu0
    %2939 = vmatprep.mubr.bf16.mxu0 0
    %2940 = vmatmul.mubr.bf16.gmra.mxu0 %v2000
    %v2941 = vpop.f32.mrf.mxu0
    %v2942 = vadd.f32 %v2833, %v2941
    %v2943 = vpop.f32.mrf.mxu0
    %v2944 = vpop.f32.mrf.mxu0
    %v2945 = vadd.f32 %v2833, %v2944
    %v2946 = vpop.f32.mrf.mxu0
    %2947 = vmatprep.mubr.bf16.mxu0 0
    %2948 = vmatmul.mubr.bf16.gmra.mxu0 %v2001
    %v2949 = vpop.f32.mrf.mxu0
    %v2950 = vadd.f32 %v2833, %v2949
    %v2951 = vpop.f32.mrf.mxu0
    %v2952 = vpop.f32.mrf.mxu0
    %v2953 = vadd.f32 %v2833, %v2952
    %v2954 = vpop.f32.mrf.mxu0
    %2955 = vmatprep.mubr.bf16.mxu0 0
    %2956 = vmatmul.mubr.bf16.gmra.mxu0 %v2002
    %v2957 = vpop.f32.mrf.mxu0
    %v2958 = vadd.f32 %v2833, %v2957
    %v2959 = vpop.f32.mrf.mxu0
    %v2960 = vpop.f32.mrf.mxu0
    %v2961 = vadd.f32 %v2833, %v2960
    %v2962 = vpop.f32.mrf.mxu0
    %2963 = vmatprep.mubr.bf16.mxu0 0
    %2964 = vmatmul.mubr.bf16.gmra.mxu0 %v2003
    %v2965 = vpop.f32.mrf.mxu0
    %v2966 = vadd.f32 %v2833, %v2965
    %v2967 = vpop.f32.mrf.mxu0
    %v2968 = vpop.f32.mrf.mxu0
    %v2969 = vadd.f32 %v2833, %v2968
    %v2970 = vpop.f32.mrf.mxu0
    %2971 = vmatprep.mubr.bf16.mxu0 0
    %2972 = vmatmul.mubr.bf16.gmra.mxu0 %v2004
    %v2973 = vpop.f32.mrf.mxu0
    %v2974 = vadd.f32 %v2833, %v2973
    %v2975 = vpop.f32.mrf.mxu0
    %v2976 = vpop.f32.mrf.mxu0
    %v2977 = vadd.f32 %v2833, %v2976
    %v2978 = vpop.f32.mrf.mxu0
    %2979 = vdwg.mxu0
    %v2980 = vadd.f32 %v2750, %v2918
    %v2981 = vadd.f32 %v2753, %v2921
    %v2982 = vadd.f32 %v2758, %v2926
    %v2983 = vadd.f32 %v2761, %v2929
    %v2984 = vadd.f32 %v2766, %v2934
    %v2985 = vadd.f32 %v2769, %v2937
    %v2986 = vadd.f32 %v2774, %v2942
    %v2987 = vadd.f32 %v2777, %v2945
    %v2988 = vadd.f32 %v2782, %v2950
    %v2989 = vadd.f32 %v2785, %v2953
    %v2990 = vadd.f32 %v2790, %v2958
    %v2991 = vadd.f32 %v2793, %v2961
    %v2992 = vadd.f32 %v2798, %v2966
    %v2993 = vadd.f32 %v2801, %v2969
    %v2994 = vadd.f32 %v2806, %v2974
    %v2995 = vadd.f32 %v2809, %v2977
    %2996 = vst [vmem:[#allocation10] sm:$0xff] %v2980
    %2997 = vst [vmem:[#allocation10 + $0x8] sm:$0xff] %v2981
    %2998 = vst [vmem:[#allocation10 + $0x10] sm:$0xff] %v2982
    %2999 = vst [vmem:[#allocation10 + $0x18] sm:$0xff] %v2983
    %3000 = vst [vmem:[#allocation10 + $0x20] sm:$0xff] %v2984
    %3001 = vst [vmem:[#allocation10 + $0x28] sm:$0xff] %v2985
    %3002 = vst [vmem:[#allocation10 + $0x30] sm:$0xff] %v2986
    %3003 = vst [vmem:[#allocation10 + $0x38] sm:$0xff] %v2987
    %3004 = vst [vmem:[#allocation10 + $0x40] sm:$0xff] %v2988
    %3005 = vst [vmem:[#allocation10 + $0x48] sm:$0xff] %v2989
    %3006 = vst [vmem:[#allocation10 + $0x50] sm:$0xff] %v2990
    %3007 = vst [vmem:[#allocation10 + $0x58] sm:$0xff] %v2991
    %3008 = vst [vmem:[#allocation10 + $0x60] sm:$0xff] %v2992
    %3009 = vst [vmem:[#allocation10 + $0x68] sm:$0xff] %v2993
    %3010 = vst [vmem:[#allocation10 + $0x70] sm:$0xff] %v2994
    %3011 = vst [vmem:[#allocation10 + $0x78] sm:$0xff] %v2995
    // Predicated region
    $region94: #{tpu_custom_call.1} parent=1 // pred_check
      _
    $region95: #{tpu_custom_call.1} parent=1 // pred_check_branch
      %3013 = sbr.rel (0) target = $region97
    $region96: #{tpu_custom_call.1} parent=1 // pred_region
      %s3015 = ssub.s32 2048, 2048
      %3016 = vsyncadd [#allocation4], %s3015
      %s3017 = sshll.u32 [#allocation10], 4
      %s3018 = int_to_ptr.vmem [resolvable:$true] %s3017
      %3023 = dma.vmem_to_hbm [thread:$0]  %s3018, 2048, %s19, [#allocation4], 128, 128, 8
    $region97: #{tpu_custom_call.1} parent=1 // pred_fallthru
      _
    // Predicated region
    $region98: #{tpu_custom_call.1} parent=1 // pred_check
      _
    $region99: #{tpu_custom_call.1} parent=1 // pred_check_branch
      %3025 = sbr.rel (0) target = $region101
    $region100: #{tpu_custom_call.1} parent=1 // pred_region
      %3026 = dma.done [#allocation4], 2048
    $region101: #{tpu_custom_call.1} parent=1 // pred_fallthru
      _
    %3027 = vsyncpa [#allocation3], 1
    %3028 = vsyncpa [#allocation6], 1
    %3029 = vsyncpa [#allocation9], 1
    %3030 = vsyncpa [#allocation4], 1

</llo_original>
